<compile_context>
chip_gen: v6e
topology: v6e:2x2x1
jax: 0.10.0
libtpu: 0.0.40
codegen_flags: <defaults>
</compile_context>

<pallas_src>
import math
import functools
import numpy as np
import jax
import jax.numpy as jnp
from jax.experimental import pallas as pl
from jax.experimental.pallas import tpu as pltpu


def encoder_layer_kernel(H, EPS,
                         x_ref, mask_ref,
                         a1_ref, b1_ref,
                         wqkv_ref, bqkv_ref,
                         wo_ref, bo_ref,
                         a2_ref, b2_ref,
                         w1_ref, c1_ref, w2_ref, c2_ref,
                         o_ref):
    Bb, S, D = x_ref.shape
    dk = D // H
    N = Bb * S
    cdt = wqkv_ref.dtype               # matmul-input dtype (f32 or bf16); accum is f32

    x = x_ref[...].reshape(N, D)       # leading-dim merge only (free)
    # int8 mask -> f32 once; the masked_fill itself is fused into the score path.
    mask_is_zero = mask_ref[...].astype(jnp.float32) == 0.0        # (Bb, S, S) bool

    def norm(v, a_ref, b_ref):
        mean = jnp.mean(v, axis=-1, keepdims=True)
        c = v - mean
        # torch.std(..., unbiased=True): divide by (D - 1)
        var = jnp.sum(c * c, axis=-1, keepdims=True) * (1.0 / (D - 1))
        inv = 1.0 / (jnp.sqrt(var) + EPS)        # exact divide on (N,1) only
        return a_ref[...] * (c * inv) + b_ref[...]

    # ---------------- multi-head self-attention (pre-norm) ----------------
    x2 = norm(x, a1_ref, b1_ref)                                   # (N, D) f32
    # Fused lane-dense QKV projection: one (N,D)x(D,3D) matmul, f32 accumulation.
    qkv = jnp.dot(x2.astype(cdt), wqkv_ref[...],
                  preferred_element_type=jnp.float32) + bqkv_ref[...]   # (N, 3D)
    qkv = qkv.astype(cdt)              # cast once before the head relayout

    def split_heads(t2d):
        # (N, D) -> (Bb*H, S, dk): pure data relayout (static lane slices stacked
        # on a leading axis); all matmuls below stay batched over Bb*H.
        parts = [t2d[:, h * dk:(h + 1) * dk].reshape(Bb, 1, S, dk)
                 for h in range(H)]
        t = parts[0] if H == 1 else jnp.concatenate(parts, axis=1)   # (Bb, H, S, dk)
        return t.reshape(Bb * H, S, dk)

    q = split_heads(qkv[:, 0 * D:1 * D])       # 1/sqrt(dk) already folded into wq/bq
    k = split_heads(qkv[:, 1 * D:2 * D])
    v = split_heads(qkv[:, 2 * D:3 * D])

    # Batched attention over (Bb*H) — doc-endorsed einsum forms.
    s = jnp.einsum('bqd,bkd->bqk', q, k,
                   preferred_element_type=jnp.float32)              # (Bb*H, S, S)
    s = s.reshape(Bb, H, S, S)
    s = jnp.where(mask_is_zero[:, None, :, :], -1e10, s)            # masked_fill
    s = s.reshape(Bb * H, S, S)
    s = s - jnp.max(s, axis=-1, keepdims=True)
    p = jnp.exp(s)
    p = p * pl.reciprocal(jnp.sum(p, axis=-1, keepdims=True), approx=True)

    ctx = jnp.einsum('bqk,bkd->bqd', p.astype(cdt), v,
                     preferred_element_type=jnp.float32)            # (Bb*H, S, dk)

    # Merge heads back to (N, D) (relayout only), then ONE K=D output projection.
    c4 = ctx.reshape(Bb, H, S, dk)
    cols = [c4[:, h].reshape(N, dk) for h in range(H)]
    concat = cols[0] if H == 1 else jnp.concatenate(cols, axis=-1)  # (N, D)
    attn = jnp.dot(concat.astype(cdt), wo_ref[...],
                   preferred_element_type=jnp.float32) + bo_ref[...]

    x = x + attn                      # dropout_1 -> identity (eval)

    # ---------------- position-wise feed-forward ----------------
    x2 = norm(x, a2_ref, b2_ref)
    h1 = jnp.dot(x2.astype(cdt), w1_ref[...],
                 preferred_element_type=jnp.float32) + c1_ref[...]
    h1 = jnp.maximum(h1, 0.0)
    ff = jnp.dot(h1.astype(cdt), w2_ref[...],
                 preferred_element_type=jnp.float32) + c2_ref[...]

    y = x + ff                        # dropout_2 -> identity (eval)
    o_ref[...] = y.reshape(Bb, S, D).astype(o_ref.dtype)   # leading-dim split (free)


def encoder_layer(x, mask, p, head, *, eps=1e-6, batch_block=1,
                  param_dtype=jnp.float32):
    B, S, D = x.shape
    H = head
    assert D % H == 0
    dk = D // H
    d_ff = p["w1"].shape[1]
    Bb = batch_block
    assert B % Bb == 0, "batch_block must divide the batch size"

    wd = param_dtype
    f32 = jnp.float32
    scale = 1.0 / math.sqrt(dk)

    # Fused lane-dense QKV weight/bias, built once in the wrapper (free XLA work);
    # the 1/sqrt(dk) attention scale is folded into the Q column block.
    wqkv = jnp.concatenate([p["wq"] * scale, p["wk"], p["wv"]], axis=1).astype(wd)   # (D, 3D)
    bqkv = jnp.concatenate([p["bq"] * scale, p["bk"], p["bv"]], axis=1).astype(f32)  # (1, 3D)

    operands = (
        x.astype(f32),
        mask.astype(jnp.int8),                 # 4x smaller mask DMA / VMEM footprint
        p["a1"].astype(f32), p["b1"].astype(f32),
        wqkv, bqkv,
        p["wo"].astype(wd), p["bo"].astype(f32),
        p["a2"].astype(f32), p["b2"].astype(f32),
        p["w1"].astype(wd), p["c1"].astype(f32),
        p["w2"].astype(wd), p["c2"].astype(f32),
    )

    def rep(shape):
        # Full-array weight/bias block, resident across the grid. NOTE: the
        # index_map returns a block index per dim; keep it in sync if the
        # block_shape ever stops being the full array.
        nd = len(shape)
        return pl.BlockSpec(shape, lambda b, _nd=nd: (0,) * _nd)

    in_specs = [
        pl.BlockSpec((Bb, S, D), lambda b: (b, 0, 0)),      # x
        pl.BlockSpec((Bb, S, S), lambda b: (b, 0, 0)),      # mask (int8)
        rep((1, D)), rep((1, D)),                           # norm1 a, b
        rep((D, 3 * D)), rep((1, 3 * D)),                   # fused wqkv, bqkv
        rep((D, D)), rep((1, D)),                           # wo, bo
        rep((1, D)), rep((1, D)),                           # norm2 a, b
        rep((D, d_ff)), rep((1, d_ff)),                     # ffn linear_1
        rep((d_ff, D)), rep((1, D)),                        # ffn linear_2
    ]

    # Explicit VMEM budget (double-buffered I/O blocks + resident weights + f32
    # working set).  Clamped; large-S / large-d_ff configs need the KV / FFN
    # tiling TODOs before they fit v7x's 64 MiB VMEM.
    wbytes = jnp.dtype(wd).itemsize
    vmem_est = (
        2 * (Bb * S * D * 4 + Bb * S * S * 1 + Bb * S * D * 4)            # x, mask, out blocks
        + 2 * (D * 3 * D + D * D + D * d_ff + d_ff * D) * wbytes          # weights (buffered)
        + 4 * (3 * Bb * S * D + 2 * Bb * H * S * S + 2 * Bb * S * D
               + Bb * S * d_ff + 4 * Bb * S * D)                          # f32 working set
    )
    vmem_limit = int(min(100 * 1024 * 1024,
                         max(32 * 1024 * 1024, int(1.3 * vmem_est))))

    kernel = functools.partial(encoder_layer_kernel, H, eps)
    return pl.pallas_call(
        kernel,
        out_shape=jax.ShapeDtypeStruct((B, S, D), jnp.float32),
        grid=(B // Bb,),
        in_specs=in_specs,
        out_specs=pl.BlockSpec((Bb, S, D), lambda b: (b, 0, 0)),
        compiler_params=pltpu.CompilerParams(
            dimension_semantics=("parallel",),      # batch blocks are independent
            vmem_limit_bytes=vmem_limit),
    )(*operands)


def reference(x, mask, p, head, eps=1e-6):
    """Pure-JAX mirror of the PyTorch forward (eval mode) for validation."""
    B, S, D = x.shape
    dk = D // head

    def norm(v, a, b):
        mean = v.mean(-1, keepdims=True)
        var = ((v - mean) ** 2).sum(-1, keepdims=True) / (D - 1)
        std = jnp.sqrt(var)
        return a * (v - mean) / (std + eps) + b

    x2 = norm(x, p["a1"], p["b1"])
    q = (x2 @ p["wq"] + p["bq"]).reshape(B, S, head, dk).transpose(0, 2, 1, 3)
    k = (x2 @ p["wk"] + p["bk"]).reshape(B, S, head, dk).transpose(0, 2, 1, 3)
    v = (x2 @ p["wv"] + p["bv"]).reshape(B, S, head, dk).transpose(0, 2, 1, 3)
    s = jnp.einsum("bhqd,bhkd->bhqk", q, k) / math.sqrt(dk)
    s = jnp.where(mask[:, None, :, :] == 0, -1e10, s)
    a = jax.nn.softmax(s, axis=-1)
    o = jnp.einsum("bhqk,bhkd->bhqd", a, v).transpose(0, 2, 1, 3).reshape(B, S, D)
    o = o @ p["wo"] + p["bo"]
    x = x + o
    x2 = norm(x, p["a2"], p["b2"])
    h = jax.nn.relu(x2 @ p["w1"] + p["c1"])
    x = x + (h @ p["w2"] + p["c2"])
    return x


if __name__ == "__main__":
    B, S, D, H = 4, 8, 32, 4
    D_FF = 2048  # FeedForward default d_ff

    key = jax.random.PRNGKey(0)
    ks = jax.random.split(key, 16)

    def w(k, shape, scale=0.02):
        return (scale * jax.random.normal(k, shape)).astype(jnp.float32)

    params = {
        # Norm params as in __init__ (ones / zeros), kept (1, D) for the kernel
        "a1": jnp.ones((1, D), jnp.float32),
        "b1": jnp.zeros((1, D), jnp.float32),
        "a2": jnp.ones((1, D), jnp.float32),
        "b2": jnp.zeros((1, D), jnp.float32),
        # attention projections, stored as (in, out) so the kernel does x @ W + b
        "wq": w(ks[0], (D, D)), "bq": w(ks[1], (1, D)),
        "wk": w(ks[2], (D, D)), "bk": w(ks[3], (1, D)),
        "wv": w(ks[4], (D, D)), "bv": w(ks[5], (1, D)),
        "wo": w(ks[6], (D, D)), "bo": w(ks[7], (1, D)),
        # feed-forward
        "w1": w(ks[8], (D, D_FF)), "c1": w(ks[9], (1, D_FF)),
        "w2": w(ks[10], (D_FF, D)), "c2": w(ks[11], (1, D)),
    }

    x = jax.random.normal(ks[12], (B, S, D), jnp.float32)
    mask = jnp.ones((B, S, S), jnp.float32)
    mask = mask.at[:, :, -2:].set(0.0)      # mask out the last two key positions
    mask = mask.at[2, :, -4:].set(0.0)      # a batch element with a shorter context

    ref = jax.block_until_ready(reference(x, mask, params, head=H))

    # f32 weights; 2 batch rows per grid step -> grid of 2 (both v7x TCs get work).
    out_f32 = jax.block_until_ready(
        encoder_layer(x, mask, params, head=H, batch_block=2))
    # tolerance covers the approx (EUP) reciprocal used for the softmax denominator.
    np.testing.assert_allclose(np.asarray(out_f32), np.asarray(ref),
                               rtol=1e-2, atol=1e-2)

    # bf16 weights + bf16 matmul inputs with f32 accumulation (v6e/v7x MXU path).
    out_bf16 = jax.block_until_ready(
        encoder_layer(x, mask, params, head=H, batch_block=2,
                      param_dtype=jnp.bfloat16))
    np.testing.assert_allclose(np.asarray(out_bf16), np.asarray(ref),
                               rtol=2.5e-2, atol=2.5e-2)

    print("KERNEL_OK")
</pallas_src>

<mosaic_0001>
module attributes {stable_mosaic.version = 11 : i64} {
  func.func @encoder_layer_kernel(%arg0: i32, %arg1: memref<2x8x32xf32, #tpu.memory_space<vmem>>, %arg2: memref<2x8x8xi8, #tpu.memory_space<vmem>>, %arg3: memref<1x32xf32, #tpu.memory_space<vmem>>, %arg4: memref<1x32xf32, #tpu.memory_space<vmem>>, %arg5: memref<32x96xf32, #tpu.memory_space<vmem>>, %arg6: memref<1x96xf32, #tpu.memory_space<vmem>>, %arg7: memref<32x32xf32, #tpu.memory_space<vmem>>, %arg8: memref<1x32xf32, #tpu.memory_space<vmem>>, %arg9: memref<1x32xf32, #tpu.memory_space<vmem>>, %arg10: memref<1x32xf32, #tpu.memory_space<vmem>>, %arg11: memref<32x2048xf32, #tpu.memory_space<vmem>>, %arg12: memref<1x2048xf32, #tpu.memory_space<vmem>>, %arg13: memref<2048x32xf32, #tpu.memory_space<vmem>>, %arg14: memref<1x32xf32, #tpu.memory_space<vmem>>, %arg15: memref<2x8x32xf32, #tpu.memory_space<vmem>>) attributes {dimension_semantics = [#tpu.dimension_semantics<parallel>], iteration_bounds = array<i64: 2>, scalar_prefetch = 0 : i64, scratch_operands = 0 : i64, tpu.core_type = #tpu.core_type<tc>, window_params = [{transform_indices = @transform_0, window_bounds = array<i64: 2, 8, 32>}, {transform_indices = @transform_1, window_bounds = array<i64: 2, 8, 8>}, {pipeline_mode = #tpu.pipeline_mode<synchronous>, transform_indices = @transform_2, window_bounds = array<i64: 1, 32>}, {pipeline_mode = #tpu.pipeline_mode<synchronous>, transform_indices = @transform_3, window_bounds = array<i64: 1, 32>}, {pipeline_mode = #tpu.pipeline_mode<synchronous>, transform_indices = @transform_4, window_bounds = array<i64: 32, 96>}, {pipeline_mode = #tpu.pipeline_mode<synchronous>, transform_indices = @transform_5, window_bounds = array<i64: 1, 96>}, {pipeline_mode = #tpu.pipeline_mode<synchronous>, transform_indices = @transform_6, window_bounds = array<i64: 32, 32>}, {pipeline_mode = #tpu.pipeline_mode<synchronous>, transform_indices = @transform_7, window_bounds = array<i64: 1, 32>}, {pipeline_mode = #tpu.pipeline_mode<synchronous>, transform_indices = @transform_8, window_bounds = array<i64: 1, 32>}, {pipeline_mode = #tpu.pipeline_mode<synchronous>, transform_indices = @transform_9, window_bounds = array<i64: 1, 32>}, {pipeline_mode = #tpu.pipeline_mode<synchronous>, transform_indices = @transform_10, window_bounds = array<i64: 32, 2048>}, {pipeline_mode = #tpu.pipeline_mode<synchronous>, transform_indices = @transform_11, window_bounds = array<i64: 1, 2048>}, {pipeline_mode = #tpu.pipeline_mode<synchronous>, transform_indices = @transform_12, window_bounds = array<i64: 2048, 32>}, {pipeline_mode = #tpu.pipeline_mode<synchronous>, transform_indices = @transform_13, window_bounds = array<i64: 1, 32>}, {transform_indices = @transform_14, window_bounds = array<i64: 2, 8, 32>}]} {
    %c0 = arith.constant 0 : index
    %c0_0 = arith.constant 0 : index
    %c0_1 = arith.constant 0 : index
    %0 = vector.load %arg1[%c0, %c0_0, %c0_1] : memref<2x8x32xf32, #tpu.memory_space<vmem>>, vector<2x8x32xf32>
    %1 = vector.shape_cast %0 : vector<2x8x32xf32> to vector<16x32xf32>
    %c0_2 = arith.constant 0 : index
    %c0_3 = arith.constant 0 : index
    %c0_4 = arith.constant 0 : index
    %2 = vector.load %arg2[%c0_2, %c0_3, %c0_4] : memref<2x8x8xi8, #tpu.memory_space<vmem>>, vector<2x8x8xi8>
    %3 = arith.sitofp %2 : vector<2x8x8xi8> to vector<2x8x8xf32>
    %cst = arith.constant 0.000000e+00 : f32
    %4 = vector.broadcast %cst : f32 to vector<2x8x8xf32>
    %5 = arith.cmpf oeq, %3, %4 : vector<2x8x8xf32>
    %cst_5 = arith.constant dense<0.000000e+00> : vector<16xf32>
    %6 = vector.multi_reduction <add>, %1, %cst_5 [1] : vector<16x32xf32> to vector<16xf32>
    %7 = vector.shape_cast %6 : vector<16xf32> to vector<16x1xf32>
    %cst_6 = arith.constant 3.200000e+01 : f32
    %8 = vector.broadcast %cst_6 : f32 to vector<16x1xf32>
    %9 = arith.divf %7, %8 : vector<16x1xf32>
    %10 = vector.broadcast %9 : vector<16x1xf32> to vector<16x32xf32>
    %11 = arith.subf %1, %10 : vector<16x32xf32>
    %12 = arith.mulf %11, %11 : vector<16x32xf32>
    %cst_7 = arith.constant dense<0.000000e+00> : vector<16xf32>
    %13 = vector.multi_reduction <add>, %12, %cst_7 [1] : vector<16x32xf32> to vector<16xf32>
    %14 = vector.shape_cast %13 : vector<16xf32> to vector<16x1xf32>
    %cst_8 = arith.constant 0.0322580636 : f32
    %15 = vector.broadcast %cst_8 : f32 to vector<16x1xf32>
    %16 = arith.mulf %14, %15 : vector<16x1xf32>
    %17 = math.sqrt %16 : vector<16x1xf32>
    %cst_9 = arith.constant 9.99999997E-7 : f32
    %18 = vector.broadcast %cst_9 : f32 to vector<16x1xf32>
    %19 = arith.addf %17, %18 : vector<16x1xf32>
    %cst_10 = arith.constant 1.000000e+00 : f32
    %20 = vector.broadcast %cst_10 : f32 to vector<16x1xf32>
    %21 = arith.divf %20, %19 : vector<16x1xf32>
    %c0_11 = arith.constant 0 : index
    %c0_12 = arith.constant 0 : index
    %22 = vector.load %arg3[%c0_11, %c0_12] : memref<1x32xf32, #tpu.memory_space<vmem>>, vector<1x32xf32>
    %23 = vector.broadcast %21 : vector<16x1xf32> to vector<16x32xf32>
    %24 = arith.mulf %11, %23 : vector<16x32xf32>
    %25 = vector.broadcast %22 : vector<1x32xf32> to vector<16x32xf32>
    %26 = arith.mulf %25, %24 : vector<16x32xf32>
    %c0_13 = arith.constant 0 : index
    %c0_14 = arith.constant 0 : index
    %27 = vector.load %arg4[%c0_13, %c0_14] : memref<1x32xf32, #tpu.memory_space<vmem>>, vector<1x32xf32>
    %28 = vector.broadcast %27 : vector<1x32xf32> to vector<16x32xf32>
    %29 = arith.addf %26, %28 : vector<16x32xf32>
    %c0_15 = arith.constant 0 : index
    %c0_16 = arith.constant 0 : index
    %30 = vector.load %arg5[%c0_15, %c0_16] : memref<32x96xf32, #tpu.memory_space<vmem>>, vector<32x96xf32>
    %cst_17 = arith.constant dense<0.000000e+00> : vector<16x96xf32>
    %31 = tpu.matmul %29, %30, %cst_17 {dimension_numbers = #tpu.dot_dimension_numbers<[1], [0], [0], [1], [0, 0, 1, 1], [], []>} : vector<16x32xf32>, vector<32x96xf32>, vector<16x96xf32> -> vector<16x96xf32>
    %c0_18 = arith.constant 0 : index
    %c0_19 = arith.constant 0 : index
    %32 = vector.load %arg6[%c0_18, %c0_19] : memref<1x96xf32, #tpu.memory_space<vmem>>, vector<1x96xf32>
    %33 = vector.broadcast %32 : vector<1x96xf32> to vector<16x96xf32>
    %34 = arith.addf %31, %33 : vector<16x96xf32>
    %35 = vector.extract_strided_slice %34 {offsets = [0, 0], sizes = [16, 32], strides = [1, 1]} : vector<16x96xf32> to vector<16x32xf32>
    %36 = vector.extract_strided_slice %35 {offsets = [0, 0], sizes = [16, 8], strides = [1, 1]} : vector<16x32xf32> to vector<16x8xf32>
    %37 = vector.shape_cast %36 : vector<16x8xf32> to vector<2x1x8x8xf32>
    %38 = vector.extract_strided_slice %35 {offsets = [0, 8], sizes = [16, 8], strides = [1, 1]} : vector<16x32xf32> to vector<16x8xf32>
    %39 = vector.shape_cast %38 : vector<16x8xf32> to vector<2x1x8x8xf32>
    %40 = vector.extract_strided_slice %35 {offsets = [0, 16], sizes = [16, 8], strides = [1, 1]} : vector<16x32xf32> to vector<16x8xf32>
    %41 = vector.shape_cast %40 : vector<16x8xf32> to vector<2x1x8x8xf32>
    %42 = vector.extract_strided_slice %35 {offsets = [0, 24], sizes = [16, 8], strides = [1, 1]} : vector<16x32xf32> to vector<16x8xf32>
    %43 = vector.shape_cast %42 : vector<16x8xf32> to vector<2x1x8x8xf32>
    %44 = tpu.concatenate %37, %39, %41, %43 in 1 : vector<2x1x8x8xf32>, vector<2x1x8x8xf32>, vector<2x1x8x8xf32>, vector<2x1x8x8xf32> -> vector<2x4x8x8xf32>
    %45 = vector.shape_cast %44 : vector<2x4x8x8xf32> to vector<8x8x8xf32>
    %46 = vector.extract_strided_slice %34 {offsets = [0, 32], sizes = [16, 32], strides = [1, 1]} : vector<16x96xf32> to vector<16x32xf32>
    %47 = vector.extract_strided_slice %46 {offsets = [0, 0], sizes = [16, 8], strides = [1, 1]} : vector<16x32xf32> to vector<16x8xf32>
    %48 = vector.shape_cast %47 : vector<16x8xf32> to vector<2x1x8x8xf32>
    %49 = vector.extract_strided_slice %46 {offsets = [0, 8], sizes = [16, 8], strides = [1, 1]} : vector<16x32xf32> to vector<16x8xf32>
    %50 = vector.shape_cast %49 : vector<16x8xf32> to vector<2x1x8x8xf32>
    %51 = vector.extract_strided_slice %46 {offsets = [0, 16], sizes = [16, 8], strides = [1, 1]} : vector<16x32xf32> to vector<16x8xf32>
    %52 = vector.shape_cast %51 : vector<16x8xf32> to vector<2x1x8x8xf32>
    %53 = vector.extract_strided_slice %46 {offsets = [0, 24], sizes = [16, 8], strides = [1, 1]} : vector<16x32xf32> to vector<16x8xf32>
    %54 = vector.shape_cast %53 : vector<16x8xf32> to vector<2x1x8x8xf32>
    %55 = tpu.concatenate %48, %50, %52, %54 in 1 : vector<2x1x8x8xf32>, vector<2x1x8x8xf32>, vector<2x1x8x8xf32>, vector<2x1x8x8xf32> -> vector<2x4x8x8xf32>
    %56 = vector.shape_cast %55 : vector<2x4x8x8xf32> to vector<8x8x8xf32>
    %57 = vector.extract_strided_slice %34 {offsets = [0, 64], sizes = [16, 32], strides = [1, 1]} : vector<16x96xf32> to vector<16x32xf32>
    %58 = vector.extract_strided_slice %57 {offsets = [0, 0], sizes = [16, 8], strides = [1, 1]} : vector<16x32xf32> to vector<16x8xf32>
    %59 = vector.shape_cast %58 : vector<16x8xf32> to vector<2x1x8x8xf32>
    %60 = vector.extract_strided_slice %57 {offsets = [0, 8], sizes = [16, 8], strides = [1, 1]} : vector<16x32xf32> to vector<16x8xf32>
    %61 = vector.shape_cast %60 : vector<16x8xf32> to vector<2x1x8x8xf32>
    %62 = vector.extract_strided_slice %57 {offsets = [0, 16], sizes = [16, 8], strides = [1, 1]} : vector<16x32xf32> to vector<16x8xf32>
    %63 = vector.shape_cast %62 : vector<16x8xf32> to vector<2x1x8x8xf32>
    %64 = vector.extract_strided_slice %57 {offsets = [0, 24], sizes = [16, 8], strides = [1, 1]} : vector<16x32xf32> to vector<16x8xf32>
    %65 = vector.shape_cast %64 : vector<16x8xf32> to vector<2x1x8x8xf32>
    %66 = tpu.concatenate %59, %61, %63, %65 in 1 : vector<2x1x8x8xf32>, vector<2x1x8x8xf32>, vector<2x1x8x8xf32>, vector<2x1x8x8xf32> -> vector<2x4x8x8xf32>
    %67 = vector.shape_cast %66 : vector<2x4x8x8xf32> to vector<8x8x8xf32>
    "tpu.trace_start"() <{level = 10 : i32, message = "bqd,bkd->bqk"}> : () -> ()
    %cst_20 = arith.constant dense<0.000000e+00> : vector<8x8x8xf32>
    %68 = tpu.matmul %45, %56, %cst_20 {dimension_numbers = #tpu.dot_dimension_numbers<[2], [2], [1], [1], [0, 0, 0, 1, 1, 1], [0], [0]>} : vector<8x8x8xf32>, vector<8x8x8xf32>, vector<8x8x8xf32> -> vector<8x8x8xf32>
    "tpu.trace_stop"() : () -> ()
    %69 = vector.shape_cast %68 : vector<8x8x8xf32> to vector<2x4x8x8xf32>
    %70 = vector.shape_cast %5 : vector<2x8x8xi1> to vector<2x1x8x8xi1>
    %cst_21 = arith.constant -1.000000e+10 : f32
    %71 = vector.shape_cast %70 : vector<2x1x8x8xi1> to vector<2x1x8x8xi1>
    %72 = vector.broadcast %71 : vector<2x1x8x8xi1> to vector<2x4x8x8xi1>
    %73 = vector.broadcast %cst_21 : f32 to vector<2x4x8x8xf32>
    %74 = arith.select %72, %73, %69 : vector<2x4x8x8xi1>, vector<2x4x8x8xf32>
    %75 = vector.shape_cast %74 : vector<2x4x8x8xf32> to vector<8x8x8xf32>
    %cst_22 = arith.constant dense<0xFF800000> : vector<8x8xf32>
    %76 = vector.multi_reduction <maximumf>, %75, %cst_22 [2] : vector<8x8x8xf32> to vector<8x8xf32>
    %77 = vector.shape_cast %76 : vector<8x8xf32> to vector<8x8x1xf32>
    %78 = vector.broadcast %77 : vector<8x8x1xf32> to vector<8x8x8xf32>
    %79 = arith.subf %75, %78 : vector<8x8x8xf32>
    %80 = math.exp %79 : vector<8x8x8xf32>
    %cst_23 = arith.constant dense<0.000000e+00> : vector<8x8xf32>
    %81 = vector.multi_reduction <add>, %80, %cst_23 [2] : vector<8x8x8xf32> to vector<8x8xf32>
    %82 = vector.shape_cast %81 : vector<8x8xf32> to vector<8x8x1xf32>
    %83 = tpu.reciprocal %82 {approx = true} : vector<8x8x1xf32> -> vector<8x8x1xf32>
    %84 = vector.broadcast %83 : vector<8x8x1xf32> to vector<8x8x8xf32>
    %85 = arith.mulf %80, %84 : vector<8x8x8xf32>
    "tpu.trace_start"() <{level = 10 : i32, message = "bqk,bkd->bqd"}> : () -> ()
    %cst_24 = arith.constant dense<0.000000e+00> : vector<8x8x8xf32>
    %86 = tpu.matmul %85, %67, %cst_24 {dimension_numbers = #tpu.dot_dimension_numbers<[2], [1], [1], [2], [0, 0, 0, 1, 1, 2], [0], [0]>} : vector<8x8x8xf32>, vector<8x8x8xf32>, vector<8x8x8xf32> -> vector<8x8x8xf32>
    "tpu.trace_stop"() : () -> ()
    %87 = vector.shape_cast %86 : vector<8x8x8xf32> to vector<2x4x8x8xf32>
    %88 = vector.extract_strided_slice %87 {offsets = [0, 0, 0, 0], sizes = [2, 1, 8, 8], strides = [1, 1, 1, 1]} : vector<2x4x8x8xf32> to vector<2x1x8x8xf32>
    %89 = vector.shape_cast %88 : vector<2x1x8x8xf32> to vector<2x8x8xf32>
    %90 = vector.shape_cast %89 : vector<2x8x8xf32> to vector<16x8xf32>
    %91 = vector.extract_strided_slice %87 {offsets = [0, 1, 0, 0], sizes = [2, 1, 8, 8], strides = [1, 1, 1, 1]} : vector<2x4x8x8xf32> to vector<2x1x8x8xf32>
    %92 = vector.shape_cast %91 : vector<2x1x8x8xf32> to vector<2x8x8xf32>
    %93 = vector.shape_cast %92 : vector<2x8x8xf32> to vector<16x8xf32>
    %94 = vector.extract_strided_slice %87 {offsets = [0, 2, 0, 0], sizes = [2, 1, 8, 8], strides = [1, 1, 1, 1]} : vector<2x4x8x8xf32> to vector<2x1x8x8xf32>
    %95 = vector.shape_cast %94 : vector<2x1x8x8xf32> to vector<2x8x8xf32>
    %96 = vector.shape_cast %95 : vector<2x8x8xf32> to vector<16x8xf32>
    %97 = vector.extract_strided_slice %87 {offsets = [0, 3, 0, 0], sizes = [2, 1, 8, 8], strides = [1, 1, 1, 1]} : vector<2x4x8x8xf32> to vector<2x1x8x8xf32>
    %98 = vector.shape_cast %97 : vector<2x1x8x8xf32> to vector<2x8x8xf32>
    %99 = vector.shape_cast %98 : vector<2x8x8xf32> to vector<16x8xf32>
    %100 = tpu.concatenate %90, %93, %96, %99 in 1 : vector<16x8xf32>, vector<16x8xf32>, vector<16x8xf32>, vector<16x8xf32> -> vector<16x32xf32>
    %c0_25 = arith.constant 0 : index
    %c0_26 = arith.constant 0 : index
    %101 = vector.load %arg7[%c0_25, %c0_26] : memref<32x32xf32, #tpu.memory_space<vmem>>, vector<32x32xf32>
    %cst_27 = arith.constant dense<0.000000e+00> : vector<16x32xf32>
    %102 = tpu.matmul %100, %101, %cst_27 {dimension_numbers = #tpu.dot_dimension_numbers<[1], [0], [0], [1], [0, 0, 1, 1], [], []>} : vector<16x32xf32>, vector<32x32xf32>, vector<16x32xf32> -> vector<16x32xf32>
    %c0_28 = arith.constant 0 : index
    %c0_29 = arith.constant 0 : index
    %103 = vector.load %arg8[%c0_28, %c0_29] : memref<1x32xf32, #tpu.memory_space<vmem>>, vector<1x32xf32>
    %104 = vector.broadcast %103 : vector<1x32xf32> to vector<16x32xf32>
    %105 = arith.addf %102, %104 : vector<16x32xf32>
    %106 = arith.addf %1, %105 : vector<16x32xf32>
    %cst_30 = arith.constant dense<0.000000e+00> : vector<16xf32>
    %107 = vector.multi_reduction <add>, %106, %cst_30 [1] : vector<16x32xf32> to vector<16xf32>
    %108 = vector.shape_cast %107 : vector<16xf32> to vector<16x1xf32>
    %cst_31 = arith.constant 3.200000e+01 : f32
    %109 = vector.broadcast %cst_31 : f32 to vector<16x1xf32>
    %110 = arith.divf %108, %109 : vector<16x1xf32>
    %111 = vector.broadcast %110 : vector<16x1xf32> to vector<16x32xf32>
    %112 = arith.subf %106, %111 : vector<16x32xf32>
    %113 = arith.mulf %112, %112 : vector<16x32xf32>
    %cst_32 = arith.constant dense<0.000000e+00> : vector<16xf32>
    %114 = vector.multi_reduction <add>, %113, %cst_32 [1] : vector<16x32xf32> to vector<16xf32>
    %115 = vector.shape_cast %114 : vector<16xf32> to vector<16x1xf32>
    %cst_33 = arith.constant 0.0322580636 : f32
    %116 = vector.broadcast %cst_33 : f32 to vector<16x1xf32>
    %117 = arith.mulf %115, %116 : vector<16x1xf32>
    %118 = math.sqrt %117 : vector<16x1xf32>
    %cst_34 = arith.constant 9.99999997E-7 : f32
    %119 = vector.broadcast %cst_34 : f32 to vector<16x1xf32>
    %120 = arith.addf %118, %119 : vector<16x1xf32>
    %cst_35 = arith.constant 1.000000e+00 : f32
    %121 = vector.broadcast %cst_35 : f32 to vector<16x1xf32>
    %122 = arith.divf %121, %120 : vector<16x1xf32>
    %c0_36 = arith.constant 0 : index
    %c0_37 = arith.constant 0 : index
    %123 = vector.load %arg9[%c0_36, %c0_37] : memref<1x32xf32, #tpu.memory_space<vmem>>, vector<1x32xf32>
    %124 = vector.broadcast %122 : vector<16x1xf32> to vector<16x32xf32>
    %125 = arith.mulf %112, %124 : vector<16x32xf32>
    %126 = vector.broadcast %123 : vector<1x32xf32> to vector<16x32xf32>
    %127 = arith.mulf %126, %125 : vector<16x32xf32>
    %c0_38 = arith.constant 0 : index
    %c0_39 = arith.constant 0 : index
    %128 = vector.load %arg10[%c0_38, %c0_39] : memref<1x32xf32, #tpu.memory_space<vmem>>, vector<1x32xf32>
    %129 = vector.broadcast %128 : vector<1x32xf32> to vector<16x32xf32>
    %130 = arith.addf %127, %129 : vector<16x32xf32>
    %c0_40 = arith.constant 0 : index
    %c0_41 = arith.constant 0 : index
    %131 = vector.load %arg11[%c0_40, %c0_41] : memref<32x2048xf32, #tpu.memory_space<vmem>>, vector<32x2048xf32>
    %cst_42 = arith.constant dense<0.000000e+00> : vector<16x2048xf32>
    %132 = tpu.matmul %130, %131, %cst_42 {dimension_numbers = #tpu.dot_dimension_numbers<[1], [0], [0], [1], [0, 0, 1, 1], [], []>} : vector<16x32xf32>, vector<32x2048xf32>, vector<16x2048xf32> -> vector<16x2048xf32>
    %c0_43 = arith.constant 0 : index
    %c0_44 = arith.constant 0 : index
    %133 = vector.load %arg12[%c0_43, %c0_44] : memref<1x2048xf32, #tpu.memory_space<vmem>>, vector<1x2048xf32>
    %134 = vector.broadcast %133 : vector<1x2048xf32> to vector<16x2048xf32>
    %135 = arith.addf %132, %134 : vector<16x2048xf32>
    %cst_45 = arith.constant 0.000000e+00 : f32
    %136 = vector.broadcast %cst_45 : f32 to vector<16x2048xf32>
    %137 = arith.maximumf %135, %136 : vector<16x2048xf32>
    %c0_46 = arith.constant 0 : index
    %c0_47 = arith.constant 0 : index
    %138 = vector.load %arg13[%c0_46, %c0_47] : memref<2048x32xf32, #tpu.memory_space<vmem>>, vector<2048x32xf32>
    %cst_48 = arith.constant dense<0.000000e+00> : vector<16x32xf32>
    %139 = tpu.matmul %137, %138, %cst_48 {dimension_numbers = #tpu.dot_dimension_numbers<[1], [0], [0], [1], [0, 0, 1, 1], [], []>} : vector<16x2048xf32>, vector<2048x32xf32>, vector<16x32xf32> -> vector<16x32xf32>
    %c0_49 = arith.constant 0 : index
    %c0_50 = arith.constant 0 : index
    %140 = vector.load %arg14[%c0_49, %c0_50] : memref<1x32xf32, #tpu.memory_space<vmem>>, vector<1x32xf32>
    %141 = vector.broadcast %140 : vector<1x32xf32> to vector<16x32xf32>
    %142 = arith.addf %139, %141 : vector<16x32xf32>
    %143 = arith.addf %106, %142 : vector<16x32xf32>
    %144 = vector.shape_cast %143 : vector<16x32xf32> to vector<2x8x32xf32>
    %c0_51 = arith.constant 0 : index
    %c0_52 = arith.constant 0 : index
    %c0_53 = arith.constant 0 : index
    %145 = vector.load %arg15[%c0_51, %c0_52, %c0_53] : memref<2x8x32xf32, #tpu.memory_space<vmem>>, vector<2x8x32xf32>
    tpu.vector_store %arg15[%c0_51, %c0_52, %c0_53], %144 {strides = array<i32>} : memref<2x8x32xf32, #tpu.memory_space<vmem>>, vector<2x8x32xf32>,
    return
  }
  func.func @transform_0(%arg0: i32) -> (i32, i32, i32) {
    %c0_i32 = arith.constant 0 : i32
    %c0_i32_0 = arith.constant 0 : i32
    %c0_i32_1 = arith.constant 0 : i32
    return %arg0, %c0_i32, %c0_i32_0 : i32, i32, i32
  }
  func.func @transform_1(%arg0: i32) -> (i32, i32, i32) {
    %c0_i32 = arith.constant 0 : i32
    %c0_i32_0 = arith.constant 0 : i32
    %c0_i32_1 = arith.constant 0 : i32
    return %arg0, %c0_i32, %c0_i32_0 : i32, i32, i32
  }
  func.func @transform_2(%arg0: i32) -> (i32, i32) {
    %c0_i32 = arith.constant 0 : i32
    %c0_i32_0 = arith.constant 0 : i32
    %c0_i32_1 = arith.constant 0 : i32
    return %c0_i32, %c0_i32_0 : i32, i32
  }
  func.func @transform_3(%arg0: i32) -> (i32, i32) {
    %c0_i32 = arith.constant 0 : i32
    %c0_i32_0 = arith.constant 0 : i32
    %c0_i32_1 = arith.constant 0 : i32
    return %c0_i32, %c0_i32_0 : i32, i32
  }
  func.func @transform_4(%arg0: i32) -> (i32, i32) {
    %c0_i32 = arith.constant 0 : i32
    %c0_i32_0 = arith.constant 0 : i32
    %c0_i32_1 = arith.constant 0 : i32
    return %c0_i32, %c0_i32_0 : i32, i32
  }
  func.func @transform_5(%arg0: i32) -> (i32, i32) {
    %c0_i32 = arith.constant 0 : i32
    %c0_i32_0 = arith.constant 0 : i32
    %c0_i32_1 = arith.constant 0 : i32
    return %c0_i32, %c0_i32_0 : i32, i32
  }
  func.func @transform_6(%arg0: i32) -> (i32, i32) {
    %c0_i32 = arith.constant 0 : i32
    %c0_i32_0 = arith.constant 0 : i32
    %c0_i32_1 = arith.constant 0 : i32
    return %c0_i32, %c0_i32_0 : i32, i32
  }
  func.func @transform_7(%arg0: i32) -> (i32, i32) {
    %c0_i32 = arith.constant 0 : i32
    %c0_i32_0 = arith.constant 0 : i32
    %c0_i32_1 = arith.constant 0 : i32
    return %c0_i32, %c0_i32_0 : i32, i32
  }
  func.func @transform_8(%arg0: i32) -> (i32, i32) {
    %c0_i32 = arith.constant 0 : i32
    %c0_i32_0 = arith.constant 0 : i32
    %c0_i32_1 = arith.constant 0 : i32
    return %c0_i32, %c0_i32_0 : i32, i32
  }
  func.func @transform_9(%arg0: i32) -> (i32, i32) {
    %c0_i32 = arith.constant 0 : i32
    %c0_i32_0 = arith.constant 0 : i32
    %c0_i32_1 = arith.constant 0 : i32
    return %c0_i32, %c0_i32_0 : i32, i32
  }
  func.func @transform_10(%arg0: i32) -> (i32, i32) {
    %c0_i32 = arith.constant 0 : i32
    %c0_i32_0 = arith.constant 0 : i32
    %c0_i32_1 = arith.constant 0 : i32
    return %c0_i32, %c0_i32_0 : i32, i32
  }
  func.func @transform_11(%arg0: i32) -> (i32, i32) {
    %c0_i32 = arith.constant 0 : i32
    %c0_i32_0 = arith.constant 0 : i32
    %c0_i32_1 = arith.constant 0 : i32
    return %c0_i32, %c0_i32_0 : i32, i32
  }
  func.func @transform_12(%arg0: i32) -> (i32, i32) {
    %c0_i32 = arith.constant 0 : i32
    %c0_i32_0 = arith.constant 0 : i32
    %c0_i32_1 = arith.constant 0 : i32
    return %c0_i32, %c0_i32_0 : i32, i32
  }
  func.func @transform_13(%arg0: i32) -> (i32, i32) {
    %c0_i32 = arith.constant 0 : i32
    %c0_i32_0 = arith.constant 0 : i32
    %c0_i32_1 = arith.constant 0 : i32
    return %c0_i32, %c0_i32_0 : i32, i32
  }
  func.func @transform_14(%arg0: i32) -> (i32, i32, i32) {
    %c0_i32 = arith.constant 0 : i32
    %c0_i32_0 = arith.constant 0 : i32
    %c0_i32_1 = arith.constant 0 : i32
    return %arg0, %c0_i32, %c0_i32_0 : i32, i32, i32
  }
}

</mosaic_0001>

<llo_original>
// kernel: tpu_custom_call.1
$region0: #{tpu_custom_call.1}
  #allocation0 [shape = 'u32[]', space=smem, size = 0x4, offset = 0x4, fixed_abs, tag = 'smem constant byte address 0x4 - core index']
  #allocation1 [shape = 'u32[144,128]{1,0:T(1,128)}', space=vmem, size = 0x12000, scoped, tag = 'internal scratch']
  %s0 = inlined_call_operand.vmem [shape: f32[4,8,32], index: 0, kind: input, shape index: {}]
  %s1 = inlined_call_operand.vmem [shape: s8[4,8,8], index: 1, kind: input, shape index: {}]
  %s2 = inlined_call_operand.vmem [shape: f32[1,32], index: 2, kind: input, shape index: {}]
  %s3 = inlined_call_operand.vmem [shape: f32[1,32], index: 3, kind: input, shape index: {}]
  %s4 = inlined_call_operand.vmem [shape: f32[32,96], index: 4, kind: input, shape index: {}]
  %s5 = inlined_call_operand.vmem [shape: f32[1,96], index: 5, kind: input, shape index: {}]
  %s6 = inlined_call_operand.vmem [shape: f32[32,32], index: 6, kind: input, shape index: {}]
  %s7 = inlined_call_operand.vmem [shape: f32[1,32], index: 7, kind: input, shape index: {}]
  %s8 = inlined_call_operand.vmem [shape: f32[1,32], index: 8, kind: input, shape index: {}]
  %s9 = inlined_call_operand.vmem [shape: f32[1,32], index: 9, kind: input, shape index: {}]
  %s10 = inlined_call_operand.vmem [shape: f32[32,2048], index: 10, kind: input, shape index: {}]
  %s11 = inlined_call_operand.vmem [shape: f32[1,2048], index: 11, kind: input, shape index: {}]
  %s12 = inlined_call_operand.vmem [shape: f32[2048,32], index: 12, kind: input, shape index: {}]
  %s13 = inlined_call_operand.vmem [shape: f32[1,32], index: 13, kind: input, shape index: {}]
  %s14 = inlined_call_operand.hbm [shape: f32[4,8,32], index: 14, kind: output, shape index: {}]
  %s15 = sld [smem:[#allocation0]]
  $region89: #{tpu_custom_call.1} parent=0
    _
  %s17 = ssub.s32 1, %s15
  %s18 = scalar_select 0, %s17, %s15
  $region1: #{tpu_custom_call.1} parent=0
    #allocation2 [shape = 'u8[16384]{0}', space=vmem, size = 0x4000, scoped, tag = 'output window, operand 0']
    #allocation3 [shape = 's32[2]{0}', space=sflag, size = 0x8, scoped, tag = 'scoped memory for tpu_custom_call.1']
    %19 = vsyncpa [#allocation3], 0
    %s20 = scalar_lea.sflag [#allocation3], 1
    %21 = vsyncpa %s20, 0
    loop: start=0, step=1, limit=4
    $region2: #{tpu_custom_call.1} parent=1 // loop_pre_header
      _
    $region3: #{tpu_custom_call.1} parent=1 // loop_header
      %s23 = sphi 0, %s27
      %p24 = scmp.ge.s32.totalorder %s23, 4
      %s33 = sphi 0, %s35
      %s36 = sphi 0, %s33
      %s37 = sphi 0, %s36
      %s53 = sphi 0, %s37
      %s59 = sphi 0, %s61
      %s62 = sphi 0, %s59
      %s63 = sphi 0, %s62
      %s79 = sphi 0, %s63
      %s83 = sphi 0, %s83
      %s85 = sphi 0, %s83
      %s86 = sphi 0, %s85
      %s100 = sphi 0, %s86
      %s104 = sphi 0, %s104
      %s106 = sphi 0, %s104
      %s107 = sphi 0, %s106
      %s121 = sphi 0, %s107
      %s125 = sphi 0, %s125
      %s127 = sphi 0, %s125
      %s128 = sphi 0, %s127
      %s142 = sphi 0, %s128
      %s146 = sphi 0, %s146
      %s148 = sphi 0, %s146
      %s149 = sphi 0, %s148
      %s163 = sphi 0, %s149
      %s167 = sphi 0, %s167
      %s169 = sphi 0, %s167
      %s170 = sphi 0, %s169
      %s184 = sphi 0, %s170
      %s188 = sphi 0, %s188
      %s190 = sphi 0, %s188
      %s191 = sphi 0, %s190
      %s205 = sphi 0, %s191
      %s209 = sphi 0, %s209
      %s211 = sphi 0, %s209
      %s212 = sphi 0, %s211
      %s226 = sphi 0, %s212
      %s230 = sphi 0, %s230
      %s232 = sphi 0, %s230
      %s233 = sphi 0, %s232
      %s247 = sphi 0, %s233
      %s251 = sphi 0, %s251
      %s253 = sphi 0, %s251
      %s254 = sphi 0, %s253
      %s268 = sphi 0, %s254
      %s272 = sphi 0, %s272
      %s274 = sphi 0, %s272
      %s275 = sphi 0, %s274
      %s289 = sphi 0, %s275
      %s293 = sphi 0, %s293
      %s295 = sphi 0, %s293
      %s296 = sphi 0, %s295
      %s310 = sphi 0, %s296
      %s314 = sphi 0, %s314
      %s316 = sphi 0, %s314
      %s317 = sphi 0, %s316
      %s331 = sphi 0, %s317
      %s337 = sphi 0, %s339
      %s340 = sphi 0, %s337
      %s341 = sphi 0, %s340
      %s357 = sphi 0, %s341
    $region4: #{tpu_custom_call.1} parent=1 // loop_header_branch
      %26 = sbr.rel (%p24) target = $region8
    $region5: #{tpu_custom_call.1} parent=1 // loop_body
      %s28 = ssub.s32 %s23, 1
      %s29 = ssub.s32 %s23, 2
      %s30 = sadd.s32 %s23, 1
      %s31 = ssub.s32 %s23, %s30
      %p32 = scmp.eq.s32.totalorder %s31, 0
      %s34 = sadd.s32 %s33, 1
      %s35 = scalar_select %p32, %s33, %s34
      %p38 = pneg %p32
      %p39 = scmp.eq.s32.totalorder %s23, 1
      %p40 = por %p38, %p39
      %p41 = scmp.ne.s32.totalorder %s33, %s36
      %p42 = scmp.eq.s32.totalorder %s23, 0
      %p43 = por %p41, %p42
      %p44 = scmp.ne.s32.totalorder %s33, %s36
      %p45 = scmp.eq.s32.totalorder %s28, 1
      %p46 = por %p44, %p45
      %p47 = scmp.ne.s32.totalorder %s36, %s37
      %p48 = scmp.eq.s32.totalorder %s28, 0
      %p49 = por %p47, %p48
      %p50 = scmp.ne.s32.totalorder %s36, %s37
      %p51 = scmp.eq.s32.totalorder %s29, 1
      %p52 = por %p50, %p51
      %p54 = scmp.ne.s32.totalorder %s37, %s53
      %p55 = scmp.eq.s32.totalorder %s29, 0
      %p56 = por %p54, %p55
      %s57 = ssub.s32 %s23, %s30
      %p58 = scmp.eq.s32.totalorder %s57, 0
      %s60 = sadd.s32 %s59, 1
      %s61 = scalar_select %p58, %s59, %s60
      %p64 = pneg %p58
      %p65 = scmp.eq.s32.totalorder %s23, 1
      %p66 = por %p64, %p65
      %p67 = scmp.ne.s32.totalorder %s59, %s62
      %p68 = scmp.eq.s32.totalorder %s23, 0
      %p69 = por %p67, %p68
      %p70 = scmp.ne.s32.totalorder %s59, %s62
      %p71 = scmp.eq.s32.totalorder %s28, 1
      %p72 = por %p70, %p71
      %p73 = scmp.ne.s32.totalorder %s62, %s63
      %p74 = scmp.eq.s32.totalorder %s28, 0
      %p75 = por %p73, %p74
      %p76 = scmp.ne.s32.totalorder %s62, %s63
      %p77 = scmp.eq.s32.totalorder %s29, 1
      %p78 = por %p76, %p77
      %p80 = scmp.ne.s32.totalorder %s63, %s79
      %p81 = scmp.eq.s32.totalorder %s29, 0
      %p82 = por %p80, %p81
      %s84 = sadd.s32 %s83, 1
      %p87 = scmp.eq.s32.totalorder %s23, 1
      %p88 = scmp.ne.s32.totalorder %s83, %s85
      %p89 = scmp.eq.s32.totalorder %s23, 0
      %p90 = por %p88, %p89
      %p91 = scmp.ne.s32.totalorder %s83, %s85
      %p92 = scmp.eq.s32.totalorder %s28, 1
      %p93 = por %p91, %p92
      %p94 = scmp.ne.s32.totalorder %s85, %s86
      %p95 = scmp.eq.s32.totalorder %s28, 0
      %p96 = por %p94, %p95
      %p97 = scmp.ne.s32.totalorder %s85, %s86
      %p98 = scmp.eq.s32.totalorder %s29, 1
      %p99 = por %p97, %p98
      %p101 = scmp.ne.s32.totalorder %s86, %s100
      %p102 = scmp.eq.s32.totalorder %s29, 0
      %p103 = por %p101, %p102
      %s105 = sadd.s32 %s104, 1
      %p108 = scmp.eq.s32.totalorder %s23, 1
      %p109 = scmp.ne.s32.totalorder %s104, %s106
      %p110 = scmp.eq.s32.totalorder %s23, 0
      %p111 = por %p109, %p110
      %p112 = scmp.ne.s32.totalorder %s104, %s106
      %p113 = scmp.eq.s32.totalorder %s28, 1
      %p114 = por %p112, %p113
      %p115 = scmp.ne.s32.totalorder %s106, %s107
      %p116 = scmp.eq.s32.totalorder %s28, 0
      %p117 = por %p115, %p116
      %p118 = scmp.ne.s32.totalorder %s106, %s107
      %p119 = scmp.eq.s32.totalorder %s29, 1
      %p120 = por %p118, %p119
      %p122 = scmp.ne.s32.totalorder %s107, %s121
      %p123 = scmp.eq.s32.totalorder %s29, 0
      %p124 = por %p122, %p123
      %s126 = sadd.s32 %s125, 1
      %p129 = scmp.eq.s32.totalorder %s23, 1
      %p130 = scmp.ne.s32.totalorder %s125, %s127
      %p131 = scmp.eq.s32.totalorder %s23, 0
      %p132 = por %p130, %p131
      %p133 = scmp.ne.s32.totalorder %s125, %s127
      %p134 = scmp.eq.s32.totalorder %s28, 1
      %p135 = por %p133, %p134
      %p136 = scmp.ne.s32.totalorder %s127, %s128
      %p137 = scmp.eq.s32.totalorder %s28, 0
      %p138 = por %p136, %p137
      %p139 = scmp.ne.s32.totalorder %s127, %s128
      %p140 = scmp.eq.s32.totalorder %s29, 1
      %p141 = por %p139, %p140
      %p143 = scmp.ne.s32.totalorder %s128, %s142
      %p144 = scmp.eq.s32.totalorder %s29, 0
      %p145 = por %p143, %p144
      %s147 = sadd.s32 %s146, 1
      %p150 = scmp.eq.s32.totalorder %s23, 1
      %p151 = scmp.ne.s32.totalorder %s146, %s148
      %p152 = scmp.eq.s32.totalorder %s23, 0
      %p153 = por %p151, %p152
      %p154 = scmp.ne.s32.totalorder %s146, %s148
      %p155 = scmp.eq.s32.totalorder %s28, 1
      %p156 = por %p154, %p155
      %p157 = scmp.ne.s32.totalorder %s148, %s149
      %p158 = scmp.eq.s32.totalorder %s28, 0
      %p159 = por %p157, %p158
      %p160 = scmp.ne.s32.totalorder %s148, %s149
      %p161 = scmp.eq.s32.totalorder %s29, 1
      %p162 = por %p160, %p161
      %p164 = scmp.ne.s32.totalorder %s149, %s163
      %p165 = scmp.eq.s32.totalorder %s29, 0
      %p166 = por %p164, %p165
      %s168 = sadd.s32 %s167, 1
      %p171 = scmp.eq.s32.totalorder %s23, 1
      %p172 = scmp.ne.s32.totalorder %s167, %s169
      %p173 = scmp.eq.s32.totalorder %s23, 0
      %p174 = por %p172, %p173
      %p175 = scmp.ne.s32.totalorder %s167, %s169
      %p176 = scmp.eq.s32.totalorder %s28, 1
      %p177 = por %p175, %p176
      %p178 = scmp.ne.s32.totalorder %s169, %s170
      %p179 = scmp.eq.s32.totalorder %s28, 0
      %p180 = por %p178, %p179
      %p181 = scmp.ne.s32.totalorder %s169, %s170
      %p182 = scmp.eq.s32.totalorder %s29, 1
      %p183 = por %p181, %p182
      %p185 = scmp.ne.s32.totalorder %s170, %s184
      %p186 = scmp.eq.s32.totalorder %s29, 0
      %p187 = por %p185, %p186
      %s189 = sadd.s32 %s188, 1
      %p192 = scmp.eq.s32.totalorder %s23, 1
      %p193 = scmp.ne.s32.totalorder %s188, %s190
      %p194 = scmp.eq.s32.totalorder %s23, 0
      %p195 = por %p193, %p194
      %p196 = scmp.ne.s32.totalorder %s188, %s190
      %p197 = scmp.eq.s32.totalorder %s28, 1
      %p198 = por %p196, %p197
      %p199 = scmp.ne.s32.totalorder %s190, %s191
      %p200 = scmp.eq.s32.totalorder %s28, 0
      %p201 = por %p199, %p200
      %p202 = scmp.ne.s32.totalorder %s190, %s191
      %p203 = scmp.eq.s32.totalorder %s29, 1
      %p204 = por %p202, %p203
      %p206 = scmp.ne.s32.totalorder %s191, %s205
      %p207 = scmp.eq.s32.totalorder %s29, 0
      %p208 = por %p206, %p207
      %s210 = sadd.s32 %s209, 1
      %p213 = scmp.eq.s32.totalorder %s23, 1
      %p214 = scmp.ne.s32.totalorder %s209, %s211
      %p215 = scmp.eq.s32.totalorder %s23, 0
      %p216 = por %p214, %p215
      %p217 = scmp.ne.s32.totalorder %s209, %s211
      %p218 = scmp.eq.s32.totalorder %s28, 1
      %p219 = por %p217, %p218
      %p220 = scmp.ne.s32.totalorder %s211, %s212
      %p221 = scmp.eq.s32.totalorder %s28, 0
      %p222 = por %p220, %p221
      %p223 = scmp.ne.s32.totalorder %s211, %s212
      %p224 = scmp.eq.s32.totalorder %s29, 1
      %p225 = por %p223, %p224
      %p227 = scmp.ne.s32.totalorder %s212, %s226
      %p228 = scmp.eq.s32.totalorder %s29, 0
      %p229 = por %p227, %p228
      %s231 = sadd.s32 %s230, 1
      %p234 = scmp.eq.s32.totalorder %s23, 1
      %p235 = scmp.ne.s32.totalorder %s230, %s232
      %p236 = scmp.eq.s32.totalorder %s23, 0
      %p237 = por %p235, %p236
      %p238 = scmp.ne.s32.totalorder %s230, %s232
      %p239 = scmp.eq.s32.totalorder %s28, 1
      %p240 = por %p238, %p239
      %p241 = scmp.ne.s32.totalorder %s232, %s233
      %p242 = scmp.eq.s32.totalorder %s28, 0
      %p243 = por %p241, %p242
      %p244 = scmp.ne.s32.totalorder %s232, %s233
      %p245 = scmp.eq.s32.totalorder %s29, 1
      %p246 = por %p244, %p245
      %p248 = scmp.ne.s32.totalorder %s233, %s247
      %p249 = scmp.eq.s32.totalorder %s29, 0
      %p250 = por %p248, %p249
      %s252 = sadd.s32 %s251, 1
      %p255 = scmp.eq.s32.totalorder %s23, 1
      %p256 = scmp.ne.s32.totalorder %s251, %s253
      %p257 = scmp.eq.s32.totalorder %s23, 0
      %p258 = por %p256, %p257
      %p259 = scmp.ne.s32.totalorder %s251, %s253
      %p260 = scmp.eq.s32.totalorder %s28, 1
      %p261 = por %p259, %p260
      %p262 = scmp.ne.s32.totalorder %s253, %s254
      %p263 = scmp.eq.s32.totalorder %s28, 0
      %p264 = por %p262, %p263
      %p265 = scmp.ne.s32.totalorder %s253, %s254
      %p266 = scmp.eq.s32.totalorder %s29, 1
      %p267 = por %p265, %p266
      %p269 = scmp.ne.s32.totalorder %s254, %s268
      %p270 = scmp.eq.s32.totalorder %s29, 0
      %p271 = por %p269, %p270
      %s273 = sadd.s32 %s272, 1
      %p276 = scmp.eq.s32.totalorder %s23, 1
      %p277 = scmp.ne.s32.totalorder %s272, %s274
      %p278 = scmp.eq.s32.totalorder %s23, 0
      %p279 = por %p277, %p278
      %p280 = scmp.ne.s32.totalorder %s272, %s274
      %p281 = scmp.eq.s32.totalorder %s28, 1
      %p282 = por %p280, %p281
      %p283 = scmp.ne.s32.totalorder %s274, %s275
      %p284 = scmp.eq.s32.totalorder %s28, 0
      %p285 = por %p283, %p284
      %p286 = scmp.ne.s32.totalorder %s274, %s275
      %p287 = scmp.eq.s32.totalorder %s29, 1
      %p288 = por %p286, %p287
      %p290 = scmp.ne.s32.totalorder %s275, %s289
      %p291 = scmp.eq.s32.totalorder %s29, 0
      %p292 = por %p290, %p291
      %s294 = sadd.s32 %s293, 1
      %p297 = scmp.eq.s32.totalorder %s23, 1
      %p298 = scmp.ne.s32.totalorder %s293, %s295
      %p299 = scmp.eq.s32.totalorder %s23, 0
      %p300 = por %p298, %p299
      %p301 = scmp.ne.s32.totalorder %s293, %s295
      %p302 = scmp.eq.s32.totalorder %s28, 1
      %p303 = por %p301, %p302
      %p304 = scmp.ne.s32.totalorder %s295, %s296
      %p305 = scmp.eq.s32.totalorder %s28, 0
      %p306 = por %p304, %p305
      %p307 = scmp.ne.s32.totalorder %s295, %s296
      %p308 = scmp.eq.s32.totalorder %s29, 1
      %p309 = por %p307, %p308
      %p311 = scmp.ne.s32.totalorder %s296, %s310
      %p312 = scmp.eq.s32.totalorder %s29, 0
      %p313 = por %p311, %p312
      %s315 = sadd.s32 %s314, 1
      %p318 = scmp.eq.s32.totalorder %s23, 1
      %p319 = scmp.ne.s32.totalorder %s314, %s316
      %p320 = scmp.eq.s32.totalorder %s23, 0
      %p321 = por %p319, %p320
      %p322 = scmp.ne.s32.totalorder %s314, %s316
      %p323 = scmp.eq.s32.totalorder %s28, 1
      %p324 = por %p322, %p323
      %p325 = scmp.ne.s32.totalorder %s316, %s317
      %p326 = scmp.eq.s32.totalorder %s28, 0
      %p327 = por %p325, %p326
      %p328 = scmp.ne.s32.totalorder %s316, %s317
      %p329 = scmp.eq.s32.totalorder %s29, 1
      %p330 = por %p328, %p329
      %p332 = scmp.ne.s32.totalorder %s317, %s331
      %p333 = scmp.eq.s32.totalorder %s29, 0
      %p334 = por %p332, %p333
      %s335 = ssub.s32 %s23, %s30
      %p336 = scmp.eq.s32.totalorder %s335, 0
      %s338 = sadd.s32 %s337, 1
      %s339 = scalar_select %p336, %s337, %s338
      %p342 = pneg %p336
      %p343 = scmp.eq.s32.totalorder %s23, 1
      %p344 = por %p342, %p343
      %p345 = scmp.ne.s32.totalorder %s337, %s340
      %p346 = scmp.eq.s32.totalorder %s23, 0
      %p347 = por %p345, %p346
      %p348 = scmp.ne.s32.totalorder %s337, %s340
      %p349 = scmp.eq.s32.totalorder %s28, 1
      %p350 = por %p348, %p349
      %p351 = scmp.ne.s32.totalorder %s340, %s341
      %p352 = scmp.eq.s32.totalorder %s28, 0
      %p353 = por %p351, %p352
      %p354 = scmp.ne.s32.totalorder %s340, %s341
      %p355 = scmp.eq.s32.totalorder %s29, 1
      %p356 = por %p354, %p355
      %p358 = scmp.ne.s32.totalorder %s341, %s357
      %p359 = scmp.eq.s32.totalorder %s29, 0
      %p360 = por %p358, %p359
      %p361 = scmp.le.s32.totalorder 1, %s23
      %p362 = scmp.lt.s32.totalorder %s23, 3
      %p363 = pnand %p361, %p362
      %p364 = pneg %p363
      // Predicated region
      $region9: #{tpu_custom_call.1} parent=5 // pred_check
        _
      $region10: #{tpu_custom_call.1} parent=5 // pred_check_branch
        %366 = sbr.rel (%p363) target = $region12
      $region11: #{tpu_custom_call.1} parent=5 // pred_region
        %s367 = ssub.s32 %s23, 1
        // Predicated region
        $region13: #{tpu_custom_call.1} parent=11 // pred_check
          %p368 = pneg %p96
        $region14: #{tpu_custom_call.1} parent=11 // pred_check_branch
          %370 = sbr.rel (%p368) target = $region16
        $region15: #{tpu_custom_call.1} parent=11 // pred_region
          _
        $region16: #{tpu_custom_call.1} parent=11 // pred_fallthru
          _
        // Predicated region
        $region17: #{tpu_custom_call.1} parent=11 // pred_check
          %p371 = pneg %p117
        $region18: #{tpu_custom_call.1} parent=11 // pred_check_branch
          %373 = sbr.rel (%p371) target = $region20
        $region19: #{tpu_custom_call.1} parent=11 // pred_region
          _
        $region20: #{tpu_custom_call.1} parent=11 // pred_fallthru
          _
        // Predicated region
        $region21: #{tpu_custom_call.1} parent=11 // pred_check
          %p374 = pneg %p138
        $region22: #{tpu_custom_call.1} parent=11 // pred_check_branch
          %376 = sbr.rel (%p374) target = $region24
        $region23: #{tpu_custom_call.1} parent=11 // pred_region
          _
        $region24: #{tpu_custom_call.1} parent=11 // pred_fallthru
          _
        // Predicated region
        $region25: #{tpu_custom_call.1} parent=11 // pred_check
          %p377 = pneg %p159
        $region26: #{tpu_custom_call.1} parent=11 // pred_check_branch
          %379 = sbr.rel (%p377) target = $region28
        $region27: #{tpu_custom_call.1} parent=11 // pred_region
          _
        $region28: #{tpu_custom_call.1} parent=11 // pred_fallthru
          _
        // Predicated region
        $region29: #{tpu_custom_call.1} parent=11 // pred_check
          %p380 = pneg %p180
        $region30: #{tpu_custom_call.1} parent=11 // pred_check_branch
          %382 = sbr.rel (%p380) target = $region32
        $region31: #{tpu_custom_call.1} parent=11 // pred_region
          _
        $region32: #{tpu_custom_call.1} parent=11 // pred_fallthru
          _
        // Predicated region
        $region33: #{tpu_custom_call.1} parent=11 // pred_check
          %p383 = pneg %p201
        $region34: #{tpu_custom_call.1} parent=11 // pred_check_branch
          %385 = sbr.rel (%p383) target = $region36
        $region35: #{tpu_custom_call.1} parent=11 // pred_region
          _
        $region36: #{tpu_custom_call.1} parent=11 // pred_fallthru
          _
        // Predicated region
        $region37: #{tpu_custom_call.1} parent=11 // pred_check
          %p386 = pneg %p222
        $region38: #{tpu_custom_call.1} parent=11 // pred_check_branch
          %388 = sbr.rel (%p386) target = $region40
        $region39: #{tpu_custom_call.1} parent=11 // pred_region
          _
        $region40: #{tpu_custom_call.1} parent=11 // pred_fallthru
          _
        // Predicated region
        $region41: #{tpu_custom_call.1} parent=11 // pred_check
          %p389 = pneg %p243
        $region42: #{tpu_custom_call.1} parent=11 // pred_check_branch
          %391 = sbr.rel (%p389) target = $region44
        $region43: #{tpu_custom_call.1} parent=11 // pred_region
          _
        $region44: #{tpu_custom_call.1} parent=11 // pred_fallthru
          _
        // Predicated region
        $region45: #{tpu_custom_call.1} parent=11 // pred_check
          %p392 = pneg %p264
        $region46: #{tpu_custom_call.1} parent=11 // pred_check_branch
          %394 = sbr.rel (%p392) target = $region48
        $region47: #{tpu_custom_call.1} parent=11 // pred_region
          _
        $region48: #{tpu_custom_call.1} parent=11 // pred_fallthru
          _
        // Predicated region
        $region49: #{tpu_custom_call.1} parent=11 // pred_check
          %p395 = pneg %p285
        $region50: #{tpu_custom_call.1} parent=11 // pred_check_branch
          %397 = sbr.rel (%p395) target = $region52
        $region51: #{tpu_custom_call.1} parent=11 // pred_region
          _
        $region52: #{tpu_custom_call.1} parent=11 // pred_fallthru
          _
        // Predicated region
        $region53: #{tpu_custom_call.1} parent=11 // pred_check
          %p398 = pneg %p306
        $region54: #{tpu_custom_call.1} parent=11 // pred_check_branch
          %400 = sbr.rel (%p398) target = $region56
        $region55: #{tpu_custom_call.1} parent=11 // pred_region
          _
        $region56: #{tpu_custom_call.1} parent=11 // pred_fallthru
          _
        // Predicated region
        $region57: #{tpu_custom_call.1} parent=11 // pred_check
          %p401 = pneg %p327
        $region58: #{tpu_custom_call.1} parent=11 // pred_check_branch
          %403 = sbr.rel (%p401) target = $region60
        $region59: #{tpu_custom_call.1} parent=11 // pred_region
          _
        $region60: #{tpu_custom_call.1} parent=11 // pred_fallthru
          _
      $region12: #{tpu_custom_call.1} parent=5 // pred_fallthru
        _
      %p404 = scmp.lt.s32.totalorder %s23, 2
      // Predicated region
      $region61: #{tpu_custom_call.1} parent=5 // pred_check
        %p405 = pneg %p404
      $region62: #{tpu_custom_call.1} parent=5 // pred_check_branch
        %407 = sbr.rel (%p405) target = $region64
      $region63: #{tpu_custom_call.1} parent=5 // pred_region
        // Predicated region
        $region65: #{tpu_custom_call.1} parent=63 // pred_check
          %p408 = pneg %p43
        $region66: #{tpu_custom_call.1} parent=63 // pred_check_branch
          %410 = sbr.rel (%p408) target = $region68
        $region67: #{tpu_custom_call.1} parent=63 // pred_region
          %s411 = smul.u32 2, %s23
          %p412 = scmp.lt.s32.totalorder %s411, 3
          %s413 = scalar_select %p412, %s411, 3
          %s414 = smul.addr %s413, 8
          %s415 = scalar_lea.vmem %s0, %s414
          %s416 = smul.u32 2, %s23
        $region68: #{tpu_custom_call.1} parent=63 // pred_fallthru
          _
        // Predicated region
        $region69: #{tpu_custom_call.1} parent=63 // pred_check
          %p417 = pneg %p69
        $region70: #{tpu_custom_call.1} parent=63 // pred_check_branch
          %419 = sbr.rel (%p417) target = $region72
        $region71: #{tpu_custom_call.1} parent=63 // pred_region
          %s420 = smul.u32 2, %s23
          %p421 = scmp.lt.s32.totalorder %s420, 3
          %s422 = scalar_select %p421, %s420, 3
          %s423 = smul.addr %s422, 2
          %s424 = scalar_lea.vmem %s1, %s423
          %s425 = smul.u32 2, %s23
        $region72: #{tpu_custom_call.1} parent=63 // pred_fallthru
          _
      $region64: #{tpu_custom_call.1} parent=5 // pred_fallthru
        _
      %p426 = scmp.le.s32.totalorder 1, %s23
      %p427 = scmp.lt.s32.totalorder %s23, 3
      %p428 = pnand %p426, %p427
      %p429 = pneg %p428
      // Predicated region
      $region73: #{tpu_custom_call.1} parent=5 // pred_check
        _
      $region74: #{tpu_custom_call.1} parent=5 // pred_check_branch
        %431 = sbr.rel (%p428) target = $region76
      $region75: #{tpu_custom_call.1} parent=5 // pred_region
        %s432 = ssub.s32 %s23, 1
        %s433 = smul.u32 2, %s28
        %p434 = scmp.lt.s32.totalorder %s433, 3
        %s435 = scalar_select %p434, %s433, 3
        %s436 = smul.addr %s435, 8
        %s437 = scalar_lea.vmem %s0, %s436
        %p438 = pneg %p49
        %p439 = pneg %p46
        %s440 = smul.u32 2, %s28
        %p441 = scmp.lt.s32.totalorder %s440, 3
        %s442 = scalar_select %p441, %s440, 3
        %s443 = smul.addr %s442, 2
        %s444 = scalar_lea.vmem %s1, %s443
        %p445 = pneg %p75
        %p446 = pneg %p72
        %p447 = pneg %p96
        %p448 = pneg %p93
        %p449 = pneg %p117
        %p450 = pneg %p114
        %p451 = pneg %p138
        %p452 = pneg %p135
        %p453 = pneg %p159
        %p454 = pneg %p156
        %p455 = pneg %p180
        %p456 = pneg %p177
        %p457 = pneg %p201
        %p458 = pneg %p198
        %p459 = pneg %p222
        %p460 = pneg %p219
        %p461 = pneg %p243
        %p462 = pneg %p240
        %p463 = pneg %p264
        %p464 = pneg %p261
        %p465 = pneg %p285
        %p466 = pneg %p282
        %p467 = pneg %p306
        %p468 = pneg %p303
        %p469 = pneg %p327
        %p470 = pneg %p324
        %p471 = pneg %p353
        %p472 = pneg %p350
        %s473 = sand.u32 %s340, 1
        %s474 = scalar_lea.sflag [#allocation3], %s473
        %s475 = sand.u32 %s340, 1
        %s476 = smul.addr %s475, 16
        %s477 = scalar_lea.vmem [#allocation2], %s476
        %s478 = smul.u32 2, %s28
        %p479 = scmp.lt.s32.totalorder %s478, 3
        %s480 = scalar_select %p479, %s478, 3
        %s481 = smul.addr %s480, 8
        %s482 = scalar_lea.vmem %s0, %s481
        %s483 = smul.u32 2, %s28
        %s484 = smul.u32 2, %s28
        %p485 = scmp.lt.s32.totalorder %s484, 3
        %s486 = scalar_select %p485, %s484, 3
        %s487 = smul.addr %s486, 2
        %s488 = scalar_lea.vmem %s1, %s487
        %s489 = smul.u32 2, %s28
        %s490 = smul.u32 2, %s28
        %v491 = vld [vmem:[%s482] sm:$0xff]
        %v492 = vld [vmem:[%s482 + $0x8] sm:$0xff]
        %v493 = vld [vmem:[%s488] sm:$0x3]
        %v494 = vld [vmem:[%s488 + $0x2] sm:$0x3]
        %v495 = vunpack.c.0.s8 %v493
        %v496 = vunpack.c.0.s8 %v494
        %v497 = vcvt.s32.f32 %v495
        %v498 = vcvt.s32.f32 %v496
        %vm499 = vcmp.eq.f32.partialorder %v497, 0.0
        %vm500 = vcmp.eq.f32.partialorder %v498, 0.0
        %vm501 = vcmask 261120
        %v502 = vsel %vm501, %v491, 0.0
        %503 = vadd.xlane.f32.xlu0 %v502
        %v504 = vpop.xlane.xlu0 %503
        %v505 = vsel %vm501, %v492, 0.0
        %506 = vadd.xlane.f32.xlu0 %v505
        %v507 = vpop.xlane.xlu0 %506
        %v508 = vrcp.pop 32.0
        %v509 = vmul.f32 %v504, %v508
        %v510 = vmul.f32 %v507, %v508
        %v511 = vsub.f32 %v491, %v509
        %v512 = vsub.f32 %v492, %v510
        %v513 = vmul.f32 %v511, %v511
        %v514 = vmul.f32 %v512, %v512
        %v515 = vsel %vm501, %v513, 0.0
        %516 = vadd.xlane.f32.xlu0 %v515
        %v517 = vpop.xlane.xlu0 %516
        %v518 = vsel %vm501, %v514, 0.0
        %519 = vadd.xlane.f32.xlu0 %v518
        %v520 = vpop.xlane.xlu0 %519
        %v521 = vmul.f32 %v517, 0.032258064
        %v522 = vmul.f32 %v520, 0.032258064
        %v523 = vrsqrt.pop %v521
        %v524 = vmul.f32 %v521, %v523
        %vm525 = vcmp.eq.f32.partialorder %v521, inf
        %v526 = vsel %vm525, %v521, %v524
        %vm527 = vcmp.eq.f32.partialorder %v521, 0.0
        %v528 = vand.u32 %v521, 2147483648
        %v529 = vsel %vm527, %v528, %v526
        %v530 = vrsqrt.pop %v522
        %v531 = vmul.f32 %v522, %v530
        %vm532 = vcmp.eq.f32.partialorder %v522, inf
        %v533 = vsel %vm532, %v522, %v531
        %vm534 = vcmp.eq.f32.partialorder %v522, 0.0
        %v535 = vand.u32 %v522, 2147483648
        %v536 = vsel %vm534, %v535, %v533
        %v537 = vadd.f32 %v529, 1e-06
        %v538 = vadd.f32 %v536, 1e-06
        %v539 = vrcp.pop %v537
        %v540 = vmul.f32 1.0, %v539
        %v541 = vrcp.pop %v538
        %v542 = vmul.f32 1.0, %v541
        %v543 = vld [vmem:[%s2] sm:$0x1]
        %v544 = vmul.f32 %v511, %v540
        %v545 = vmul.f32 %v512, %v542
        %v547 = vlaneseq
        %v548 = vshrl.u32 %v547, 7
        %v549 = vsub.s32 0, %v548
        %v550 = vrot.slane %v543, %v549
        %v552 = vmul.f32 %v550, %v544
        %v553 = vmul.f32 %v550, %v545
        %v554 = vld [vmem:[%s3] sm:$0x1]
        %v556 = vlaneseq
        %v557 = vshrl.u32 %v556, 7
        %v558 = vsub.s32 0, %v557
        %v559 = vrot.slane %v554, %v558
        %v561 = vadd.f32 %v552, %v559
        %v562 = vadd.f32 %v553, %v559
        %v563 = vld [vmem:[%s4] sm:$0xff]
        %v564 = vld [vmem:[%s4 + $0x8] sm:$0xff]
        %v565 = vld [vmem:[%s4 + $0x10] sm:$0xff]
        %v566 = vld [vmem:[%s4 + $0x18] sm:$0xff]
        %v567 = vld [vmem:[%s5] sm:$0x1]
        %v569 = vlaneseq
        %v570 = vshrl.u32 %v569, 7
        %v571 = vsub.s32 0, %v570
        %v572 = vrot.slane %v567, %v571
        %v575 = vsel %vm501, %v561, 0
        %v578 = vsel %vm501, %v562, 0
        %580 = vmatprep.subr.mxu0 0.0
        %581 = vmatpush1.msra.mxu0 0.0
        %582 = vmatprep.subr.mxu0 0.0
        %583 = vmatpush1.msra.mxu0 0.0
        %584 = vmatprep.subr.mxu0 0.0
        %585 = vmatpush1.msra.mxu0 0.0
        %586 = vmatprep.subr.mxu0 0.0
        %587 = vmatpush1.msra.mxu0 0.0
        %588 = vmatprep.subr.mxu0 0.0
        %589 = vmatpush1.msra.mxu0 0.0
        %590 = vmatprep.subr.mxu0 0.0
        %591 = vmatpush1.msra.mxu0 0.0
        %592 = vmatprep.subr.mxu0 0.0
        %593 = vmatpush1.msra.mxu0 0.0
        %594 = vmatprep.subr.mxu0 0.0
        %595 = vmatpush1.msra.mxu0 0.0
        %596 = vmatprep.subr.mxu0 0.0
        %597 = vmatpush1.msra.mxu0 0.0
        %598 = vmatprep.subr.mxu0 0.0
        %599 = vmatpush1.msra.mxu0 0.0
        %600 = vmatprep.subr.mxu0 0.0
        %601 = vmatpush1.msra.mxu0 0.0
        %602 = vmatprep.subr.mxu0 0.0
        %603 = vmatpush1.msra.mxu0 0.0
        %604 = vmatprep.subr.mxu0 0.0
        %605 = vmatpush1.msra.mxu0 %v566
        %606 = vmatprep.subr.mxu0 0.0
        %607 = vmatpush1.msra.mxu0 %v565
        %608 = vmatprep.subr.mxu0 0.0
        %609 = vmatpush1.msra.mxu0 %v564
        %610 = vmatprep.subr.mxu0 0.0
        %611 = vmatpush1.msra.mxu0 %v563
        %612 = vmatprep.subr.mxu0 0.0
        %613 = vmatpush2.msra.mxu0 0.0
        %614 = vmatprep.subr.mxu0 0.0
        %615 = vmatpush2.msra.mxu0 0.0
        %616 = vmatprep.subr.mxu0 0.0
        %617 = vmatpush2.msra.mxu0 0.0
        %618 = vmatprep.subr.mxu0 0.0
        %619 = vmatpush2.msra.mxu0 0.0
        %620 = vmatprep.subr.mxu0 0.0
        %621 = vmatpush2.msra.mxu0 0.0
        %622 = vmatprep.subr.mxu0 0.0
        %623 = vmatpush2.msra.mxu0 0.0
        %624 = vmatprep.subr.mxu0 0.0
        %625 = vmatpush2.msra.mxu0 0.0
        %626 = vmatprep.subr.mxu0 0.0
        %627 = vmatpush2.msra.mxu0 0.0
        %628 = vmatprep.subr.mxu0 0.0
        %629 = vmatpush2.msra.mxu0 0.0
        %630 = vmatprep.subr.mxu0 0.0
        %631 = vmatpush2.msra.mxu0 0.0
        %632 = vmatprep.subr.mxu0 0.0
        %633 = vmatpush2.msra.mxu0 0.0
        %634 = vmatprep.subr.mxu0 0.0
        %635 = vmatpush2.msra.mxu0 0.0
        %636 = vmatprep.subr.mxu0 0.0
        %637 = vmatpush2.msra.mxu0 0.0
        %638 = vmatprep.subr.mxu0 0.0
        %639 = vmatpush2.msra.mxu0 0.0
        %640 = vmatprep.subr.mxu0 0.0
        %641 = vmatpush2.msra.mxu0 0.0
        %642 = vmatprep.subr.mxu0 0.0
        %643 = vmatpush2.msra.mxu0 0.0
        %644 = vmatprep.mubr.f32.mxu0 0.0
        %645 = vmatmul.mubr.f32.gmra.mxu0 %v575
        %v646 = vpop.f32.mrf.mxu0
        %v647 = vadd.f32 %v572, %v646
        %v648 = vpop.f32.mrf.mxu0
        %649 = vmatprep.mubr.f32.mxu0 0.0
        %650 = vmatmul.mubr.f32.gmra.mxu0 %v578
        %v651 = vpop.f32.mrf.mxu0
        %v652 = vadd.f32 %v572, %v651
        %v653 = vpop.f32.mrf.mxu0
        %654 = vdwg.mxu0
        %657 = vrot.lane.b32.xlu0 %v647, 120
        %v658 = vpop.permute.xlu0 %657
        %659 = vrot.lane.b32.xlu0 %v652, 120
        %v660 = vpop.permute.xlu0 %659
        %661 = vrot.lane.b32.xlu0 %v647, 112
        %v662 = vpop.permute.xlu0 %661
        %663 = vrot.lane.b32.xlu0 %v652, 112
        %v664 = vpop.permute.xlu0 %663
        %665 = vrot.lane.b32.xlu0 %v647, 104
        %v666 = vpop.permute.xlu0 %665
        %667 = vrot.lane.b32.xlu0 %v652, 104
        %v668 = vpop.permute.xlu0 %667
        %669 = vrot.lane.b32.xlu0 %v647, 96
        %v670 = vpop.permute.xlu0 %669
        %vm671 = vcmask 64512
        %v672 = vsel %vm671, %v647, 0
        %v674 = vsel %vm671, %v670, 0
        %676 = vmatprep.subr.mxu0 0.0
        %677 = vmatpush1.xpose.msra.mxu0 0.0
        %678 = vmatprep.subr.mxu0 0.0
        %679 = vmatpush1.xpose.msra.mxu0 0.0
        %680 = vmatprep.subr.mxu0 0.0
        %681 = vmatpush1.xpose.msra.mxu0 0.0
        %682 = vmatprep.subr.mxu0 0.0
        %683 = vmatpush1.xpose.msra.mxu0 0.0
        %684 = vmatprep.subr.mxu0 0.0
        %685 = vmatpush1.xpose.msra.mxu0 0.0
        %686 = vmatprep.subr.mxu0 0.0
        %687 = vmatpush1.xpose.msra.mxu0 0.0
        %688 = vmatprep.subr.mxu0 0.0
        %689 = vmatpush1.xpose.msra.mxu0 0.0
        %690 = vmatprep.subr.mxu0 0.0
        %691 = vmatpush1.xpose.msra.mxu0 0.0
        %692 = vmatprep.subr.mxu0 0.0
        %693 = vmatpush1.xpose.msra.mxu0 0.0
        %694 = vmatprep.subr.mxu0 0.0
        %695 = vmatpush1.xpose.msra.mxu0 0.0
        %696 = vmatprep.subr.mxu0 0.0
        %697 = vmatpush1.xpose.msra.mxu0 0.0
        %698 = vmatprep.subr.mxu0 0.0
        %699 = vmatpush1.xpose.msra.mxu0 0.0
        %700 = vmatprep.subr.mxu0 0.0
        %701 = vmatpush1.xpose.msra.mxu0 0.0
        %702 = vmatprep.subr.mxu0 0.0
        %703 = vmatpush1.xpose.msra.mxu0 0.0
        %704 = vmatprep.subr.mxu0 0.0
        %705 = vmatpush1.xpose.msra.mxu0 0.0
        %706 = vmatprep.subr.mxu0 0.0
        %707 = vmatpush1.xpose.msra.mxu0 %v674
        %708 = vmatprep.subr.mxu0 0.0
        %709 = vmatpush2.xpose.msra.mxu0 0.0
        %710 = vmatprep.subr.mxu0 0.0
        %711 = vmatpush2.xpose.msra.mxu0 0.0
        %712 = vmatprep.subr.mxu0 0.0
        %713 = vmatpush2.xpose.msra.mxu0 0.0
        %714 = vmatprep.subr.mxu0 0.0
        %715 = vmatpush2.xpose.msra.mxu0 0.0
        %716 = vmatprep.subr.mxu0 0.0
        %717 = vmatpush2.xpose.msra.mxu0 0.0
        %718 = vmatprep.subr.mxu0 0.0
        %719 = vmatpush2.xpose.msra.mxu0 0.0
        %720 = vmatprep.subr.mxu0 0.0
        %721 = vmatpush2.xpose.msra.mxu0 0.0
        %722 = vmatprep.subr.mxu0 0.0
        %723 = vmatpush2.xpose.msra.mxu0 0.0
        %724 = vmatprep.subr.mxu0 0.0
        %725 = vmatpush2.xpose.msra.mxu0 0.0
        %726 = vmatprep.subr.mxu0 0.0
        %727 = vmatpush2.xpose.msra.mxu0 0.0
        %728 = vmatprep.subr.mxu0 0.0
        %729 = vmatpush2.xpose.msra.mxu0 0.0
        %730 = vmatprep.subr.mxu0 0.0
        %731 = vmatpush2.xpose.msra.mxu0 0.0
        %732 = vmatprep.subr.mxu0 0.0
        %733 = vmatpush2.xpose.msra.mxu0 0.0
        %734 = vmatprep.subr.mxu0 0.0
        %735 = vmatpush2.xpose.msra.mxu0 0.0
        %736 = vmatprep.subr.mxu0 0.0
        %737 = vmatpush2.xpose.msra.mxu0 0.0
        %738 = vmatprep.subr.mxu0 0.0
        %739 = vmatpush2.xpose.msra.mxu0 0.0
        %740 = vmatprep.mubr.f32.mxu0 0.0
        %741 = vmatmul.mubr.f32.gmra.mxu0 %v672
        %v742 = vpop.f32.mrf.mxu0
        %v743 = vadd.f32 0.0, %v742
        %v744 = vpop.f32.mrf.mxu0
        %745 = vdwg.mxu0
        %746 = vrot.lane.b32.xlu0 %v658, 96
        %v747 = vpop.permute.xlu0 %746
        %v748 = vsel %vm671, %v658, 0
        %v750 = vsel %vm671, %v747, 0
        %752 = vmatprep.subr.mxu0 0.0
        %753 = vmatpush1.xpose.msra.mxu0 0.0
        %754 = vmatprep.subr.mxu0 0.0
        %755 = vmatpush1.xpose.msra.mxu0 0.0
        %756 = vmatprep.subr.mxu0 0.0
        %757 = vmatpush1.xpose.msra.mxu0 0.0
        %758 = vmatprep.subr.mxu0 0.0
        %759 = vmatpush1.xpose.msra.mxu0 0.0
        %760 = vmatprep.subr.mxu0 0.0
        %761 = vmatpush1.xpose.msra.mxu0 0.0
        %762 = vmatprep.subr.mxu0 0.0
        %763 = vmatpush1.xpose.msra.mxu0 0.0
        %764 = vmatprep.subr.mxu0 0.0
        %765 = vmatpush1.xpose.msra.mxu0 0.0
        %766 = vmatprep.subr.mxu0 0.0
        %767 = vmatpush1.xpose.msra.mxu0 0.0
        %768 = vmatprep.subr.mxu0 0.0
        %769 = vmatpush1.xpose.msra.mxu0 0.0
        %770 = vmatprep.subr.mxu0 0.0
        %771 = vmatpush1.xpose.msra.mxu0 0.0
        %772 = vmatprep.subr.mxu0 0.0
        %773 = vmatpush1.xpose.msra.mxu0 0.0
        %774 = vmatprep.subr.mxu0 0.0
        %775 = vmatpush1.xpose.msra.mxu0 0.0
        %776 = vmatprep.subr.mxu0 0.0
        %777 = vmatpush1.xpose.msra.mxu0 0.0
        %778 = vmatprep.subr.mxu0 0.0
        %779 = vmatpush1.xpose.msra.mxu0 0.0
        %780 = vmatprep.subr.mxu0 0.0
        %781 = vmatpush1.xpose.msra.mxu0 0.0
        %782 = vmatprep.subr.mxu0 0.0
        %783 = vmatpush1.xpose.msra.mxu0 %v750
        %784 = vmatprep.subr.mxu0 0.0
        %785 = vmatpush2.xpose.msra.mxu0 0.0
        %786 = vmatprep.subr.mxu0 0.0
        %787 = vmatpush2.xpose.msra.mxu0 0.0
        %788 = vmatprep.subr.mxu0 0.0
        %789 = vmatpush2.xpose.msra.mxu0 0.0
        %790 = vmatprep.subr.mxu0 0.0
        %791 = vmatpush2.xpose.msra.mxu0 0.0
        %792 = vmatprep.subr.mxu0 0.0
        %793 = vmatpush2.xpose.msra.mxu0 0.0
        %794 = vmatprep.subr.mxu0 0.0
        %795 = vmatpush2.xpose.msra.mxu0 0.0
        %796 = vmatprep.subr.mxu0 0.0
        %797 = vmatpush2.xpose.msra.mxu0 0.0
        %798 = vmatprep.subr.mxu0 0.0
        %799 = vmatpush2.xpose.msra.mxu0 0.0
        %800 = vmatprep.subr.mxu0 0.0
        %801 = vmatpush2.xpose.msra.mxu0 0.0
        %802 = vmatprep.subr.mxu0 0.0
        %803 = vmatpush2.xpose.msra.mxu0 0.0
        %804 = vmatprep.subr.mxu0 0.0
        %805 = vmatpush2.xpose.msra.mxu0 0.0
        %806 = vmatprep.subr.mxu0 0.0
        %807 = vmatpush2.xpose.msra.mxu0 0.0
        %808 = vmatprep.subr.mxu0 0.0
        %809 = vmatpush2.xpose.msra.mxu0 0.0
        %810 = vmatprep.subr.mxu0 0.0
        %811 = vmatpush2.xpose.msra.mxu0 0.0
        %812 = vmatprep.subr.mxu0 0.0
        %813 = vmatpush2.xpose.msra.mxu0 0.0
        %814 = vmatprep.subr.mxu0 0.0
        %815 = vmatpush2.xpose.msra.mxu0 0.0
        %816 = vmatprep.mubr.f32.mxu0 0.0
        %817 = vmatmul.mubr.f32.gmra.mxu0 %v748
        %v818 = vpop.f32.mrf.mxu0
        %v819 = vadd.f32 0.0, %v818
        %v820 = vpop.f32.mrf.mxu0
        %821 = vdwg.mxu0
        %822 = vrot.lane.b32.xlu0 %v662, 96
        %v823 = vpop.permute.xlu0 %822
        %v824 = vsel %vm671, %v662, 0
        %v826 = vsel %vm671, %v823, 0
        %828 = vmatprep.subr.mxu0 0.0
        %829 = vmatpush1.xpose.msra.mxu0 0.0
        %830 = vmatprep.subr.mxu0 0.0
        %831 = vmatpush1.xpose.msra.mxu0 0.0
        %832 = vmatprep.subr.mxu0 0.0
        %833 = vmatpush1.xpose.msra.mxu0 0.0
        %834 = vmatprep.subr.mxu0 0.0
        %835 = vmatpush1.xpose.msra.mxu0 0.0
        %836 = vmatprep.subr.mxu0 0.0
        %837 = vmatpush1.xpose.msra.mxu0 0.0
        %838 = vmatprep.subr.mxu0 0.0
        %839 = vmatpush1.xpose.msra.mxu0 0.0
        %840 = vmatprep.subr.mxu0 0.0
        %841 = vmatpush1.xpose.msra.mxu0 0.0
        %842 = vmatprep.subr.mxu0 0.0
        %843 = vmatpush1.xpose.msra.mxu0 0.0
        %844 = vmatprep.subr.mxu0 0.0
        %845 = vmatpush1.xpose.msra.mxu0 0.0
        %846 = vmatprep.subr.mxu0 0.0
        %847 = vmatpush1.xpose.msra.mxu0 0.0
        %848 = vmatprep.subr.mxu0 0.0
        %849 = vmatpush1.xpose.msra.mxu0 0.0
        %850 = vmatprep.subr.mxu0 0.0
        %851 = vmatpush1.xpose.msra.mxu0 0.0
        %852 = vmatprep.subr.mxu0 0.0
        %853 = vmatpush1.xpose.msra.mxu0 0.0
        %854 = vmatprep.subr.mxu0 0.0
        %855 = vmatpush1.xpose.msra.mxu0 0.0
        %856 = vmatprep.subr.mxu0 0.0
        %857 = vmatpush1.xpose.msra.mxu0 0.0
        %858 = vmatprep.subr.mxu0 0.0
        %859 = vmatpush1.xpose.msra.mxu0 %v826
        %860 = vmatprep.subr.mxu0 0.0
        %861 = vmatpush2.xpose.msra.mxu0 0.0
        %862 = vmatprep.subr.mxu0 0.0
        %863 = vmatpush2.xpose.msra.mxu0 0.0
        %864 = vmatprep.subr.mxu0 0.0
        %865 = vmatpush2.xpose.msra.mxu0 0.0
        %866 = vmatprep.subr.mxu0 0.0
        %867 = vmatpush2.xpose.msra.mxu0 0.0
        %868 = vmatprep.subr.mxu0 0.0
        %869 = vmatpush2.xpose.msra.mxu0 0.0
        %870 = vmatprep.subr.mxu0 0.0
        %871 = vmatpush2.xpose.msra.mxu0 0.0
        %872 = vmatprep.subr.mxu0 0.0
        %873 = vmatpush2.xpose.msra.mxu0 0.0
        %874 = vmatprep.subr.mxu0 0.0
        %875 = vmatpush2.xpose.msra.mxu0 0.0
        %876 = vmatprep.subr.mxu0 0.0
        %877 = vmatpush2.xpose.msra.mxu0 0.0
        %878 = vmatprep.subr.mxu0 0.0
        %879 = vmatpush2.xpose.msra.mxu0 0.0
        %880 = vmatprep.subr.mxu0 0.0
        %881 = vmatpush2.xpose.msra.mxu0 0.0
        %882 = vmatprep.subr.mxu0 0.0
        %883 = vmatpush2.xpose.msra.mxu0 0.0
        %884 = vmatprep.subr.mxu0 0.0
        %885 = vmatpush2.xpose.msra.mxu0 0.0
        %886 = vmatprep.subr.mxu0 0.0
        %887 = vmatpush2.xpose.msra.mxu0 0.0
        %888 = vmatprep.subr.mxu0 0.0
        %889 = vmatpush2.xpose.msra.mxu0 0.0
        %890 = vmatprep.subr.mxu0 0.0
        %891 = vmatpush2.xpose.msra.mxu0 0.0
        %892 = vmatprep.mubr.f32.mxu0 0.0
        %893 = vmatmul.mubr.f32.gmra.mxu0 %v824
        %v894 = vpop.f32.mrf.mxu0
        %v895 = vadd.f32 0.0, %v894
        %v896 = vpop.f32.mrf.mxu0
        %897 = vdwg.mxu0
        %898 = vrot.lane.b32.xlu0 %v666, 96
        %v899 = vpop.permute.xlu0 %898
        %v900 = vsel %vm671, %v666, 0
        %v902 = vsel %vm671, %v899, 0
        %904 = vmatprep.subr.mxu0 0.0
        %905 = vmatpush1.xpose.msra.mxu0 0.0
        %906 = vmatprep.subr.mxu0 0.0
        %907 = vmatpush1.xpose.msra.mxu0 0.0
        %908 = vmatprep.subr.mxu0 0.0
        %909 = vmatpush1.xpose.msra.mxu0 0.0
        %910 = vmatprep.subr.mxu0 0.0
        %911 = vmatpush1.xpose.msra.mxu0 0.0
        %912 = vmatprep.subr.mxu0 0.0
        %913 = vmatpush1.xpose.msra.mxu0 0.0
        %914 = vmatprep.subr.mxu0 0.0
        %915 = vmatpush1.xpose.msra.mxu0 0.0
        %916 = vmatprep.subr.mxu0 0.0
        %917 = vmatpush1.xpose.msra.mxu0 0.0
        %918 = vmatprep.subr.mxu0 0.0
        %919 = vmatpush1.xpose.msra.mxu0 0.0
        %920 = vmatprep.subr.mxu0 0.0
        %921 = vmatpush1.xpose.msra.mxu0 0.0
        %922 = vmatprep.subr.mxu0 0.0
        %923 = vmatpush1.xpose.msra.mxu0 0.0
        %924 = vmatprep.subr.mxu0 0.0
        %925 = vmatpush1.xpose.msra.mxu0 0.0
        %926 = vmatprep.subr.mxu0 0.0
        %927 = vmatpush1.xpose.msra.mxu0 0.0
        %928 = vmatprep.subr.mxu0 0.0
        %929 = vmatpush1.xpose.msra.mxu0 0.0
        %930 = vmatprep.subr.mxu0 0.0
        %931 = vmatpush1.xpose.msra.mxu0 0.0
        %932 = vmatprep.subr.mxu0 0.0
        %933 = vmatpush1.xpose.msra.mxu0 0.0
        %934 = vmatprep.subr.mxu0 0.0
        %935 = vmatpush1.xpose.msra.mxu0 %v902
        %936 = vmatprep.subr.mxu0 0.0
        %937 = vmatpush2.xpose.msra.mxu0 0.0
        %938 = vmatprep.subr.mxu0 0.0
        %939 = vmatpush2.xpose.msra.mxu0 0.0
        %940 = vmatprep.subr.mxu0 0.0
        %941 = vmatpush2.xpose.msra.mxu0 0.0
        %942 = vmatprep.subr.mxu0 0.0
        %943 = vmatpush2.xpose.msra.mxu0 0.0
        %944 = vmatprep.subr.mxu0 0.0
        %945 = vmatpush2.xpose.msra.mxu0 0.0
        %946 = vmatprep.subr.mxu0 0.0
        %947 = vmatpush2.xpose.msra.mxu0 0.0
        %948 = vmatprep.subr.mxu0 0.0
        %949 = vmatpush2.xpose.msra.mxu0 0.0
        %950 = vmatprep.subr.mxu0 0.0
        %951 = vmatpush2.xpose.msra.mxu0 0.0
        %952 = vmatprep.subr.mxu0 0.0
        %953 = vmatpush2.xpose.msra.mxu0 0.0
        %954 = vmatprep.subr.mxu0 0.0
        %955 = vmatpush2.xpose.msra.mxu0 0.0
        %956 = vmatprep.subr.mxu0 0.0
        %957 = vmatpush2.xpose.msra.mxu0 0.0
        %958 = vmatprep.subr.mxu0 0.0
        %959 = vmatpush2.xpose.msra.mxu0 0.0
        %960 = vmatprep.subr.mxu0 0.0
        %961 = vmatpush2.xpose.msra.mxu0 0.0
        %962 = vmatprep.subr.mxu0 0.0
        %963 = vmatpush2.xpose.msra.mxu0 0.0
        %964 = vmatprep.subr.mxu0 0.0
        %965 = vmatpush2.xpose.msra.mxu0 0.0
        %966 = vmatprep.subr.mxu0 0.0
        %967 = vmatpush2.xpose.msra.mxu0 0.0
        %968 = vmatprep.mubr.f32.mxu0 0.0
        %969 = vmatmul.mubr.f32.gmra.mxu0 %v900
        %v970 = vpop.f32.mrf.mxu0
        %v971 = vadd.f32 0.0, %v970
        %v972 = vpop.f32.mrf.mxu0
        %973 = vdwg.mxu0
        %974 = vrot.lane.b32.xlu0 %v652, 96
        %v975 = vpop.permute.xlu0 %974
        %v976 = vsel %vm671, %v652, 0
        %v978 = vsel %vm671, %v975, 0
        %980 = vmatprep.subr.mxu0 0.0
        %981 = vmatpush1.xpose.msra.mxu0 0.0
        %982 = vmatprep.subr.mxu0 0.0
        %983 = vmatpush1.xpose.msra.mxu0 0.0
        %984 = vmatprep.subr.mxu0 0.0
        %985 = vmatpush1.xpose.msra.mxu0 0.0
        %986 = vmatprep.subr.mxu0 0.0
        %987 = vmatpush1.xpose.msra.mxu0 0.0
        %988 = vmatprep.subr.mxu0 0.0
        %989 = vmatpush1.xpose.msra.mxu0 0.0
        %990 = vmatprep.subr.mxu0 0.0
        %991 = vmatpush1.xpose.msra.mxu0 0.0
        %992 = vmatprep.subr.mxu0 0.0
        %993 = vmatpush1.xpose.msra.mxu0 0.0
        %994 = vmatprep.subr.mxu0 0.0
        %995 = vmatpush1.xpose.msra.mxu0 0.0
        %996 = vmatprep.subr.mxu0 0.0
        %997 = vmatpush1.xpose.msra.mxu0 0.0
        %998 = vmatprep.subr.mxu0 0.0
        %999 = vmatpush1.xpose.msra.mxu0 0.0
        %1000 = vmatprep.subr.mxu0 0.0
        %1001 = vmatpush1.xpose.msra.mxu0 0.0
        %1002 = vmatprep.subr.mxu0 0.0
        %1003 = vmatpush1.xpose.msra.mxu0 0.0
        %1004 = vmatprep.subr.mxu0 0.0
        %1005 = vmatpush1.xpose.msra.mxu0 0.0
        %1006 = vmatprep.subr.mxu0 0.0
        %1007 = vmatpush1.xpose.msra.mxu0 0.0
        %1008 = vmatprep.subr.mxu0 0.0
        %1009 = vmatpush1.xpose.msra.mxu0 0.0
        %1010 = vmatprep.subr.mxu0 0.0
        %1011 = vmatpush1.xpose.msra.mxu0 %v978
        %1012 = vmatprep.subr.mxu0 0.0
        %1013 = vmatpush2.xpose.msra.mxu0 0.0
        %1014 = vmatprep.subr.mxu0 0.0
        %1015 = vmatpush2.xpose.msra.mxu0 0.0
        %1016 = vmatprep.subr.mxu0 0.0
        %1017 = vmatpush2.xpose.msra.mxu0 0.0
        %1018 = vmatprep.subr.mxu0 0.0
        %1019 = vmatpush2.xpose.msra.mxu0 0.0
        %1020 = vmatprep.subr.mxu0 0.0
        %1021 = vmatpush2.xpose.msra.mxu0 0.0
        %1022 = vmatprep.subr.mxu0 0.0
        %1023 = vmatpush2.xpose.msra.mxu0 0.0
        %1024 = vmatprep.subr.mxu0 0.0
        %1025 = vmatpush2.xpose.msra.mxu0 0.0
        %1026 = vmatprep.subr.mxu0 0.0
        %1027 = vmatpush2.xpose.msra.mxu0 0.0
        %1028 = vmatprep.subr.mxu0 0.0
        %1029 = vmatpush2.xpose.msra.mxu0 0.0
        %1030 = vmatprep.subr.mxu0 0.0
        %1031 = vmatpush2.xpose.msra.mxu0 0.0
        %1032 = vmatprep.subr.mxu0 0.0
        %1033 = vmatpush2.xpose.msra.mxu0 0.0
        %1034 = vmatprep.subr.mxu0 0.0
        %1035 = vmatpush2.xpose.msra.mxu0 0.0
        %1036 = vmatprep.subr.mxu0 0.0
        %1037 = vmatpush2.xpose.msra.mxu0 0.0
        %1038 = vmatprep.subr.mxu0 0.0
        %1039 = vmatpush2.xpose.msra.mxu0 0.0
        %1040 = vmatprep.subr.mxu0 0.0
        %1041 = vmatpush2.xpose.msra.mxu0 0.0
        %1042 = vmatprep.subr.mxu0 0.0
        %1043 = vmatpush2.xpose.msra.mxu0 0.0
        %1044 = vmatprep.mubr.f32.mxu0 0.0
        %1045 = vmatmul.mubr.f32.gmra.mxu0 %v976
        %v1046 = vpop.f32.mrf.mxu0
        %v1047 = vadd.f32 0.0, %v1046
        %v1048 = vpop.f32.mrf.mxu0
        %1049 = vdwg.mxu0
        %1050 = vrot.lane.b32.xlu0 %v660, 96
        %v1051 = vpop.permute.xlu0 %1050
        %v1052 = vsel %vm671, %v660, 0
        %v1054 = vsel %vm671, %v1051, 0
        %1056 = vmatprep.subr.mxu0 0.0
        %1057 = vmatpush1.xpose.msra.mxu0 0.0
        %1058 = vmatprep.subr.mxu0 0.0
        %1059 = vmatpush1.xpose.msra.mxu0 0.0
        %1060 = vmatprep.subr.mxu0 0.0
        %1061 = vmatpush1.xpose.msra.mxu0 0.0
        %1062 = vmatprep.subr.mxu0 0.0
        %1063 = vmatpush1.xpose.msra.mxu0 0.0
        %1064 = vmatprep.subr.mxu0 0.0
        %1065 = vmatpush1.xpose.msra.mxu0 0.0
        %1066 = vmatprep.subr.mxu0 0.0
        %1067 = vmatpush1.xpose.msra.mxu0 0.0
        %1068 = vmatprep.subr.mxu0 0.0
        %1069 = vmatpush1.xpose.msra.mxu0 0.0
        %1070 = vmatprep.subr.mxu0 0.0
        %1071 = vmatpush1.xpose.msra.mxu0 0.0
        %1072 = vmatprep.subr.mxu0 0.0
        %1073 = vmatpush1.xpose.msra.mxu0 0.0
        %1074 = vmatprep.subr.mxu0 0.0
        %1075 = vmatpush1.xpose.msra.mxu0 0.0
        %1076 = vmatprep.subr.mxu0 0.0
        %1077 = vmatpush1.xpose.msra.mxu0 0.0
        %1078 = vmatprep.subr.mxu0 0.0
        %1079 = vmatpush1.xpose.msra.mxu0 0.0
        %1080 = vmatprep.subr.mxu0 0.0
        %1081 = vmatpush1.xpose.msra.mxu0 0.0
        %1082 = vmatprep.subr.mxu0 0.0
        %1083 = vmatpush1.xpose.msra.mxu0 0.0
        %1084 = vmatprep.subr.mxu0 0.0
        %1085 = vmatpush1.xpose.msra.mxu0 0.0
        %1086 = vmatprep.subr.mxu0 0.0
        %1087 = vmatpush1.xpose.msra.mxu0 %v1054
        %1088 = vmatprep.subr.mxu0 0.0
        %1089 = vmatpush2.xpose.msra.mxu0 0.0
        %1090 = vmatprep.subr.mxu0 0.0
        %1091 = vmatpush2.xpose.msra.mxu0 0.0
        %1092 = vmatprep.subr.mxu0 0.0
        %1093 = vmatpush2.xpose.msra.mxu0 0.0
        %1094 = vmatprep.subr.mxu0 0.0
        %1095 = vmatpush2.xpose.msra.mxu0 0.0
        %1096 = vmatprep.subr.mxu0 0.0
        %1097 = vmatpush2.xpose.msra.mxu0 0.0
        %1098 = vmatprep.subr.mxu0 0.0
        %1099 = vmatpush2.xpose.msra.mxu0 0.0
        %1100 = vmatprep.subr.mxu0 0.0
        %1101 = vmatpush2.xpose.msra.mxu0 0.0
        %1102 = vmatprep.subr.mxu0 0.0
        %1103 = vmatpush2.xpose.msra.mxu0 0.0
        %1104 = vmatprep.subr.mxu0 0.0
        %1105 = vmatpush2.xpose.msra.mxu0 0.0
        %1106 = vmatprep.subr.mxu0 0.0
        %1107 = vmatpush2.xpose.msra.mxu0 0.0
        %1108 = vmatprep.subr.mxu0 0.0
        %1109 = vmatpush2.xpose.msra.mxu0 0.0
        %1110 = vmatprep.subr.mxu0 0.0
        %1111 = vmatpush2.xpose.msra.mxu0 0.0
        %1112 = vmatprep.subr.mxu0 0.0
        %1113 = vmatpush2.xpose.msra.mxu0 0.0
        %1114 = vmatprep.subr.mxu0 0.0
        %1115 = vmatpush2.xpose.msra.mxu0 0.0
        %1116 = vmatprep.subr.mxu0 0.0
        %1117 = vmatpush2.xpose.msra.mxu0 0.0
        %1118 = vmatprep.subr.mxu0 0.0
        %1119 = vmatpush2.xpose.msra.mxu0 0.0
        %1120 = vmatprep.mubr.f32.mxu0 0.0
        %1121 = vmatmul.mubr.f32.gmra.mxu0 %v1052
        %v1122 = vpop.f32.mrf.mxu0
        %v1123 = vadd.f32 0.0, %v1122
        %v1124 = vpop.f32.mrf.mxu0
        %1125 = vdwg.mxu0
        %1126 = vrot.lane.b32.xlu0 %v664, 96
        %v1127 = vpop.permute.xlu0 %1126
        %v1128 = vsel %vm671, %v664, 0
        %v1130 = vsel %vm671, %v1127, 0
        %1132 = vmatprep.subr.mxu0 0.0
        %1133 = vmatpush1.xpose.msra.mxu0 0.0
        %1134 = vmatprep.subr.mxu0 0.0
        %1135 = vmatpush1.xpose.msra.mxu0 0.0
        %1136 = vmatprep.subr.mxu0 0.0
        %1137 = vmatpush1.xpose.msra.mxu0 0.0
        %1138 = vmatprep.subr.mxu0 0.0
        %1139 = vmatpush1.xpose.msra.mxu0 0.0
        %1140 = vmatprep.subr.mxu0 0.0
        %1141 = vmatpush1.xpose.msra.mxu0 0.0
        %1142 = vmatprep.subr.mxu0 0.0
        %1143 = vmatpush1.xpose.msra.mxu0 0.0
        %1144 = vmatprep.subr.mxu0 0.0
        %1145 = vmatpush1.xpose.msra.mxu0 0.0
        %1146 = vmatprep.subr.mxu0 0.0
        %1147 = vmatpush1.xpose.msra.mxu0 0.0
        %1148 = vmatprep.subr.mxu0 0.0
        %1149 = vmatpush1.xpose.msra.mxu0 0.0
        %1150 = vmatprep.subr.mxu0 0.0
        %1151 = vmatpush1.xpose.msra.mxu0 0.0
        %1152 = vmatprep.subr.mxu0 0.0
        %1153 = vmatpush1.xpose.msra.mxu0 0.0
        %1154 = vmatprep.subr.mxu0 0.0
        %1155 = vmatpush1.xpose.msra.mxu0 0.0
        %1156 = vmatprep.subr.mxu0 0.0
        %1157 = vmatpush1.xpose.msra.mxu0 0.0
        %1158 = vmatprep.subr.mxu0 0.0
        %1159 = vmatpush1.xpose.msra.mxu0 0.0
        %1160 = vmatprep.subr.mxu0 0.0
        %1161 = vmatpush1.xpose.msra.mxu0 0.0
        %1162 = vmatprep.subr.mxu0 0.0
        %1163 = vmatpush1.xpose.msra.mxu0 %v1130
        %1164 = vmatprep.subr.mxu0 0.0
        %1165 = vmatpush2.xpose.msra.mxu0 0.0
        %1166 = vmatprep.subr.mxu0 0.0
        %1167 = vmatpush2.xpose.msra.mxu0 0.0
        %1168 = vmatprep.subr.mxu0 0.0
        %1169 = vmatpush2.xpose.msra.mxu0 0.0
        %1170 = vmatprep.subr.mxu0 0.0
        %1171 = vmatpush2.xpose.msra.mxu0 0.0
        %1172 = vmatprep.subr.mxu0 0.0
        %1173 = vmatpush2.xpose.msra.mxu0 0.0
        %1174 = vmatprep.subr.mxu0 0.0
        %1175 = vmatpush2.xpose.msra.mxu0 0.0
        %1176 = vmatprep.subr.mxu0 0.0
        %1177 = vmatpush2.xpose.msra.mxu0 0.0
        %1178 = vmatprep.subr.mxu0 0.0
        %1179 = vmatpush2.xpose.msra.mxu0 0.0
        %1180 = vmatprep.subr.mxu0 0.0
        %1181 = vmatpush2.xpose.msra.mxu0 0.0
        %1182 = vmatprep.subr.mxu0 0.0
        %1183 = vmatpush2.xpose.msra.mxu0 0.0
        %1184 = vmatprep.subr.mxu0 0.0
        %1185 = vmatpush2.xpose.msra.mxu0 0.0
        %1186 = vmatprep.subr.mxu0 0.0
        %1187 = vmatpush2.xpose.msra.mxu0 0.0
        %1188 = vmatprep.subr.mxu0 0.0
        %1189 = vmatpush2.xpose.msra.mxu0 0.0
        %1190 = vmatprep.subr.mxu0 0.0
        %1191 = vmatpush2.xpose.msra.mxu0 0.0
        %1192 = vmatprep.subr.mxu0 0.0
        %1193 = vmatpush2.xpose.msra.mxu0 0.0
        %1194 = vmatprep.subr.mxu0 0.0
        %1195 = vmatpush2.xpose.msra.mxu0 0.0
        %1196 = vmatprep.mubr.f32.mxu0 0.0
        %1197 = vmatmul.mubr.f32.gmra.mxu0 %v1128
        %v1198 = vpop.f32.mrf.mxu0
        %v1199 = vadd.f32 0.0, %v1198
        %v1200 = vpop.f32.mrf.mxu0
        %1201 = vdwg.mxu0
        %1202 = vrot.lane.b32.xlu0 %v668, 96
        %v1203 = vpop.permute.xlu0 %1202
        %v1204 = vsel %vm671, %v668, 0
        %v1206 = vsel %vm671, %v1203, 0
        %1208 = vmatprep.subr.mxu0 0.0
        %1209 = vmatpush1.xpose.msra.mxu0 0.0
        %1210 = vmatprep.subr.mxu0 0.0
        %1211 = vmatpush1.xpose.msra.mxu0 0.0
        %1212 = vmatprep.subr.mxu0 0.0
        %1213 = vmatpush1.xpose.msra.mxu0 0.0
        %1214 = vmatprep.subr.mxu0 0.0
        %1215 = vmatpush1.xpose.msra.mxu0 0.0
        %1216 = vmatprep.subr.mxu0 0.0
        %1217 = vmatpush1.xpose.msra.mxu0 0.0
        %1218 = vmatprep.subr.mxu0 0.0
        %1219 = vmatpush1.xpose.msra.mxu0 0.0
        %1220 = vmatprep.subr.mxu0 0.0
        %1221 = vmatpush1.xpose.msra.mxu0 0.0
        %1222 = vmatprep.subr.mxu0 0.0
        %1223 = vmatpush1.xpose.msra.mxu0 0.0
        %1224 = vmatprep.subr.mxu0 0.0
        %1225 = vmatpush1.xpose.msra.mxu0 0.0
        %1226 = vmatprep.subr.mxu0 0.0
        %1227 = vmatpush1.xpose.msra.mxu0 0.0
        %1228 = vmatprep.subr.mxu0 0.0
        %1229 = vmatpush1.xpose.msra.mxu0 0.0
        %1230 = vmatprep.subr.mxu0 0.0
        %1231 = vmatpush1.xpose.msra.mxu0 0.0
        %1232 = vmatprep.subr.mxu0 0.0
        %1233 = vmatpush1.xpose.msra.mxu0 0.0
        %1234 = vmatprep.subr.mxu0 0.0
        %1235 = vmatpush1.xpose.msra.mxu0 0.0
        %1236 = vmatprep.subr.mxu0 0.0
        %1237 = vmatpush1.xpose.msra.mxu0 0.0
        %1238 = vmatprep.subr.mxu0 0.0
        %1239 = vmatpush1.xpose.msra.mxu0 %v1206
        %1240 = vmatprep.subr.mxu0 0.0
        %1241 = vmatpush2.xpose.msra.mxu0 0.0
        %1242 = vmatprep.subr.mxu0 0.0
        %1243 = vmatpush2.xpose.msra.mxu0 0.0
        %1244 = vmatprep.subr.mxu0 0.0
        %1245 = vmatpush2.xpose.msra.mxu0 0.0
        %1246 = vmatprep.subr.mxu0 0.0
        %1247 = vmatpush2.xpose.msra.mxu0 0.0
        %1248 = vmatprep.subr.mxu0 0.0
        %1249 = vmatpush2.xpose.msra.mxu0 0.0
        %1250 = vmatprep.subr.mxu0 0.0
        %1251 = vmatpush2.xpose.msra.mxu0 0.0
        %1252 = vmatprep.subr.mxu0 0.0
        %1253 = vmatpush2.xpose.msra.mxu0 0.0
        %1254 = vmatprep.subr.mxu0 0.0
        %1255 = vmatpush2.xpose.msra.mxu0 0.0
        %1256 = vmatprep.subr.mxu0 0.0
        %1257 = vmatpush2.xpose.msra.mxu0 0.0
        %1258 = vmatprep.subr.mxu0 0.0
        %1259 = vmatpush2.xpose.msra.mxu0 0.0
        %1260 = vmatprep.subr.mxu0 0.0
        %1261 = vmatpush2.xpose.msra.mxu0 0.0
        %1262 = vmatprep.subr.mxu0 0.0
        %1263 = vmatpush2.xpose.msra.mxu0 0.0
        %1264 = vmatprep.subr.mxu0 0.0
        %1265 = vmatpush2.xpose.msra.mxu0 0.0
        %1266 = vmatprep.subr.mxu0 0.0
        %1267 = vmatpush2.xpose.msra.mxu0 0.0
        %1268 = vmatprep.subr.mxu0 0.0
        %1269 = vmatpush2.xpose.msra.mxu0 0.0
        %1270 = vmatprep.subr.mxu0 0.0
        %1271 = vmatpush2.xpose.msra.mxu0 0.0
        %1272 = vmatprep.mubr.f32.mxu0 0.0
        %1273 = vmatmul.mubr.f32.gmra.mxu0 %v1204
        %v1274 = vpop.f32.mrf.mxu0
        %v1275 = vadd.f32 0.0, %v1274
        %v1276 = vpop.f32.mrf.mxu0
        %1277 = vdwg.mxu0
        %v1278 = vsel %vm499, 1, 0
        %v1279 = vsel %vm500, 1, 0
        %vm1280 = vcmp.eq.s32.totalorder %v1278, 1
        %vm1281 = vcmp.eq.s32.totalorder %v1279, 1
        %v1282 = vsel %vm1280, -1e+10, %v743
        %v1283 = vsel %vm1280, -1e+10, %v819
        %v1284 = vsel %vm1280, -1e+10, %v895
        %v1285 = vsel %vm1280, -1e+10, %v971
        %v1286 = vsel %vm1281, -1e+10, %v1047
        %v1287 = vsel %vm1281, -1e+10, %v1123
        %v1288 = vsel %vm1281, -1e+10, %v1199
        %v1289 = vsel %vm1281, -1e+10, %v1275
        %v1290 = vsel %vm671, %v1282, -inf
        %1291 = vmax.xlane.f32.xlu0 %v1290
        %v1292 = vpop.xlane.xlu0 %1291
        %v1293 = vsel %vm671, %v1283, -inf
        %1294 = vmax.xlane.f32.xlu0 %v1293
        %v1295 = vpop.xlane.xlu0 %1294
        %v1296 = vsel %vm671, %v1284, -inf
        %1297 = vmax.xlane.f32.xlu0 %v1296
        %v1298 = vpop.xlane.xlu0 %1297
        %v1299 = vsel %vm671, %v1285, -inf
        %1300 = vmax.xlane.f32.xlu0 %v1299
        %v1301 = vpop.xlane.xlu0 %1300
        %v1302 = vsel %vm671, %v1286, -inf
        %1303 = vmax.xlane.f32.xlu0 %v1302
        %v1304 = vpop.xlane.xlu0 %1303
        %v1305 = vsel %vm671, %v1287, -inf
        %1306 = vmax.xlane.f32.xlu0 %v1305
        %v1307 = vpop.xlane.xlu0 %1306
        %v1308 = vsel %vm671, %v1288, -inf
        %1309 = vmax.xlane.f32.xlu0 %v1308
        %v1310 = vpop.xlane.xlu0 %1309
        %v1311 = vsel %vm671, %v1289, -inf
        %1312 = vmax.xlane.f32.xlu0 %v1311
        %v1313 = vpop.xlane.xlu0 %1312
        %v1314 = vsub.f32 %v1282, %v1292
        %v1315 = vsub.f32 %v1283, %v1295
        %v1316 = vsub.f32 %v1284, %v1298
        %v1317 = vsub.f32 %v1285, %v1301
        %v1318 = vsub.f32 %v1286, %v1304
        %v1319 = vsub.f32 %v1287, %v1307
        %v1320 = vsub.f32 %v1288, %v1310
        %v1321 = vsub.f32 %v1289, %v1313
        %v1322 = vmul.f32 %v1314, 1.442695
        %v1323 = vpow.pop %v1322
        %v1324 = vmul.f32 %v1315, 1.442695
        %v1325 = vpow.pop %v1324
        %v1326 = vmul.f32 %v1316, 1.442695
        %v1327 = vpow.pop %v1326
        %v1328 = vmul.f32 %v1317, 1.442695
        %v1329 = vpow.pop %v1328
        %v1330 = vmul.f32 %v1318, 1.442695
        %v1331 = vpow.pop %v1330
        %v1332 = vmul.f32 %v1319, 1.442695
        %v1333 = vpow.pop %v1332
        %v1334 = vmul.f32 %v1320, 1.442695
        %v1335 = vpow.pop %v1334
        %v1336 = vmul.f32 %v1321, 1.442695
        %v1337 = vpow.pop %v1336
        %v1338 = vsel %vm671, %v1323, 0.0
        %1339 = vadd.xlane.f32.xlu0 %v1338
        %v1340 = vpop.xlane.xlu0 %1339
        %v1341 = vsel %vm671, %v1325, 0.0
        %1342 = vadd.xlane.f32.xlu0 %v1341
        %v1343 = vpop.xlane.xlu0 %1342
        %v1344 = vsel %vm671, %v1327, 0.0
        %1345 = vadd.xlane.f32.xlu0 %v1344
        %v1346 = vpop.xlane.xlu0 %1345
        %v1347 = vsel %vm671, %v1329, 0.0
        %1348 = vadd.xlane.f32.xlu0 %v1347
        %v1349 = vpop.xlane.xlu0 %1348
        %v1350 = vsel %vm671, %v1331, 0.0
        %1351 = vadd.xlane.f32.xlu0 %v1350
        %v1352 = vpop.xlane.xlu0 %1351
        %v1353 = vsel %vm671, %v1333, 0.0
        %1354 = vadd.xlane.f32.xlu0 %v1353
        %v1355 = vpop.xlane.xlu0 %1354
        %v1356 = vsel %vm671, %v1335, 0.0
        %1357 = vadd.xlane.f32.xlu0 %v1356
        %v1358 = vpop.xlane.xlu0 %1357
        %v1359 = vsel %vm671, %v1337, 0.0
        %1360 = vadd.xlane.f32.xlu0 %v1359
        %v1361 = vpop.xlane.xlu0 %1360
        %v1362 = vrcp.pop %v1340
        %v1363 = vrcp.pop %v1343
        %v1364 = vrcp.pop %v1346
        %v1365 = vrcp.pop %v1349
        %v1366 = vrcp.pop %v1352
        %v1367 = vrcp.pop %v1355
        %v1368 = vrcp.pop %v1358
        %v1369 = vrcp.pop %v1361
        %v1370 = vmul.f32 %v1323, %v1362
        %v1371 = vmul.f32 %v1325, %v1363
        %v1372 = vmul.f32 %v1327, %v1364
        %v1373 = vmul.f32 %v1329, %v1365
        %v1374 = vmul.f32 %v1331, %v1366
        %v1375 = vmul.f32 %v1333, %v1367
        %v1376 = vmul.f32 %v1335, %v1368
        %v1377 = vmul.f32 %v1337, %v1369
        %1378 = vrot.lane.b32.xlu0 %v647, 64
        %v1379 = vpop.permute.xlu0 %1378
        %v1382 = vsel %vm671, %v1370, 0
        %1384 = vmatprep.subr.mxu0 0.0
        %1385 = vmatpush1.msra.mxu0 0.0
        %1386 = vmatprep.subr.mxu0 0.0
        %1387 = vmatpush1.msra.mxu0 0.0
        %1388 = vmatprep.subr.mxu0 0.0
        %1389 = vmatpush1.msra.mxu0 0.0
        %1390 = vmatprep.subr.mxu0 0.0
        %1391 = vmatpush1.msra.mxu0 0.0
        %1392 = vmatprep.subr.mxu0 0.0
        %1393 = vmatpush1.msra.mxu0 0.0
        %1394 = vmatprep.subr.mxu0 0.0
        %1395 = vmatpush1.msra.mxu0 0.0
        %1396 = vmatprep.subr.mxu0 0.0
        %1397 = vmatpush1.msra.mxu0 0.0
        %1398 = vmatprep.subr.mxu0 0.0
        %1399 = vmatpush1.msra.mxu0 0.0
        %1400 = vmatprep.subr.mxu0 0.0
        %1401 = vmatpush1.msra.mxu0 0.0
        %1402 = vmatprep.subr.mxu0 0.0
        %1403 = vmatpush1.msra.mxu0 0.0
        %1404 = vmatprep.subr.mxu0 0.0
        %1405 = vmatpush1.msra.mxu0 0.0
        %1406 = vmatprep.subr.mxu0 0.0
        %1407 = vmatpush1.msra.mxu0 0.0
        %1408 = vmatprep.subr.mxu0 0.0
        %1409 = vmatpush1.msra.mxu0 0.0
        %1410 = vmatprep.subr.mxu0 0.0
        %1411 = vmatpush1.msra.mxu0 0.0
        %1412 = vmatprep.subr.mxu0 0.0
        %1413 = vmatpush1.msra.mxu0 0.0
        %1414 = vmatprep.subr.mxu0 0.0
        %1415 = vmatpush1.msra.mxu0 %v1379
        %1416 = vmatprep.subr.mxu0 0.0
        %1417 = vmatpush2.msra.mxu0 0.0
        %1418 = vmatprep.subr.mxu0 0.0
        %1419 = vmatpush2.msra.mxu0 0.0
        %1420 = vmatprep.subr.mxu0 0.0
        %1421 = vmatpush2.msra.mxu0 0.0
        %1422 = vmatprep.subr.mxu0 0.0
        %1423 = vmatpush2.msra.mxu0 0.0
        %1424 = vmatprep.subr.mxu0 0.0
        %1425 = vmatpush2.msra.mxu0 0.0
        %1426 = vmatprep.subr.mxu0 0.0
        %1427 = vmatpush2.msra.mxu0 0.0
        %1428 = vmatprep.subr.mxu0 0.0
        %1429 = vmatpush2.msra.mxu0 0.0
        %1430 = vmatprep.subr.mxu0 0.0
        %1431 = vmatpush2.msra.mxu0 0.0
        %1432 = vmatprep.subr.mxu0 0.0
        %1433 = vmatpush2.msra.mxu0 0.0
        %1434 = vmatprep.subr.mxu0 0.0
        %1435 = vmatpush2.msra.mxu0 0.0
        %1436 = vmatprep.subr.mxu0 0.0
        %1437 = vmatpush2.msra.mxu0 0.0
        %1438 = vmatprep.subr.mxu0 0.0
        %1439 = vmatpush2.msra.mxu0 0.0
        %1440 = vmatprep.subr.mxu0 0.0
        %1441 = vmatpush2.msra.mxu0 0.0
        %1442 = vmatprep.subr.mxu0 0.0
        %1443 = vmatpush2.msra.mxu0 0.0
        %1444 = vmatprep.subr.mxu0 0.0
        %1445 = vmatpush2.msra.mxu0 0.0
        %1446 = vmatprep.subr.mxu0 0.0
        %1447 = vmatpush2.msra.mxu0 0.0
        %1448 = vmatprep.mubr.f32.mxu0 0.0
        %1449 = vmatmul.mubr.f32.gmra.mxu0 %v1382
        %v1450 = vpop.f32.mrf.mxu0
        %v1451 = vadd.f32 0.0, %v1450
        %v1452 = vpop.f32.mrf.mxu0
        %1453 = vdwg.mxu0
        %1454 = vrot.lane.b32.xlu0 %v658, 64
        %v1455 = vpop.permute.xlu0 %1454
        %v1458 = vsel %vm671, %v1371, 0
        %1460 = vmatprep.subr.mxu0 0.0
        %1461 = vmatpush1.msra.mxu0 0.0
        %1462 = vmatprep.subr.mxu0 0.0
        %1463 = vmatpush1.msra.mxu0 0.0
        %1464 = vmatprep.subr.mxu0 0.0
        %1465 = vmatpush1.msra.mxu0 0.0
        %1466 = vmatprep.subr.mxu0 0.0
        %1467 = vmatpush1.msra.mxu0 0.0
        %1468 = vmatprep.subr.mxu0 0.0
        %1469 = vmatpush1.msra.mxu0 0.0
        %1470 = vmatprep.subr.mxu0 0.0
        %1471 = vmatpush1.msra.mxu0 0.0
        %1472 = vmatprep.subr.mxu0 0.0
        %1473 = vmatpush1.msra.mxu0 0.0
        %1474 = vmatprep.subr.mxu0 0.0
        %1475 = vmatpush1.msra.mxu0 0.0
        %1476 = vmatprep.subr.mxu0 0.0
        %1477 = vmatpush1.msra.mxu0 0.0
        %1478 = vmatprep.subr.mxu0 0.0
        %1479 = vmatpush1.msra.mxu0 0.0
        %1480 = vmatprep.subr.mxu0 0.0
        %1481 = vmatpush1.msra.mxu0 0.0
        %1482 = vmatprep.subr.mxu0 0.0
        %1483 = vmatpush1.msra.mxu0 0.0
        %1484 = vmatprep.subr.mxu0 0.0
        %1485 = vmatpush1.msra.mxu0 0.0
        %1486 = vmatprep.subr.mxu0 0.0
        %1487 = vmatpush1.msra.mxu0 0.0
        %1488 = vmatprep.subr.mxu0 0.0
        %1489 = vmatpush1.msra.mxu0 0.0
        %1490 = vmatprep.subr.mxu0 0.0
        %1491 = vmatpush1.msra.mxu0 %v1455
        %1492 = vmatprep.subr.mxu0 0.0
        %1493 = vmatpush2.msra.mxu0 0.0
        %1494 = vmatprep.subr.mxu0 0.0
        %1495 = vmatpush2.msra.mxu0 0.0
        %1496 = vmatprep.subr.mxu0 0.0
        %1497 = vmatpush2.msra.mxu0 0.0
        %1498 = vmatprep.subr.mxu0 0.0
        %1499 = vmatpush2.msra.mxu0 0.0
        %1500 = vmatprep.subr.mxu0 0.0
        %1501 = vmatpush2.msra.mxu0 0.0
        %1502 = vmatprep.subr.mxu0 0.0
        %1503 = vmatpush2.msra.mxu0 0.0
        %1504 = vmatprep.subr.mxu0 0.0
        %1505 = vmatpush2.msra.mxu0 0.0
        %1506 = vmatprep.subr.mxu0 0.0
        %1507 = vmatpush2.msra.mxu0 0.0
        %1508 = vmatprep.subr.mxu0 0.0
        %1509 = vmatpush2.msra.mxu0 0.0
        %1510 = vmatprep.subr.mxu0 0.0
        %1511 = vmatpush2.msra.mxu0 0.0
        %1512 = vmatprep.subr.mxu0 0.0
        %1513 = vmatpush2.msra.mxu0 0.0
        %1514 = vmatprep.subr.mxu0 0.0
        %1515 = vmatpush2.msra.mxu0 0.0
        %1516 = vmatprep.subr.mxu0 0.0
        %1517 = vmatpush2.msra.mxu0 0.0
        %1518 = vmatprep.subr.mxu0 0.0
        %1519 = vmatpush2.msra.mxu0 0.0
        %1520 = vmatprep.subr.mxu0 0.0
        %1521 = vmatpush2.msra.mxu0 0.0
        %1522 = vmatprep.subr.mxu0 0.0
        %1523 = vmatpush2.msra.mxu0 0.0
        %1524 = vmatprep.mubr.f32.mxu0 0.0
        %1525 = vmatmul.mubr.f32.gmra.mxu0 %v1458
        %v1526 = vpop.f32.mrf.mxu0
        %v1527 = vadd.f32 0.0, %v1526
        %v1528 = vpop.f32.mrf.mxu0
        %1529 = vdwg.mxu0
        %1530 = vrot.lane.b32.xlu0 %v662, 64
        %v1531 = vpop.permute.xlu0 %1530
        %v1534 = vsel %vm671, %v1372, 0
        %1536 = vmatprep.subr.mxu0 0.0
        %1537 = vmatpush1.msra.mxu0 0.0
        %1538 = vmatprep.subr.mxu0 0.0
        %1539 = vmatpush1.msra.mxu0 0.0
        %1540 = vmatprep.subr.mxu0 0.0
        %1541 = vmatpush1.msra.mxu0 0.0
        %1542 = vmatprep.subr.mxu0 0.0
        %1543 = vmatpush1.msra.mxu0 0.0
        %1544 = vmatprep.subr.mxu0 0.0
        %1545 = vmatpush1.msra.mxu0 0.0
        %1546 = vmatprep.subr.mxu0 0.0
        %1547 = vmatpush1.msra.mxu0 0.0
        %1548 = vmatprep.subr.mxu0 0.0
        %1549 = vmatpush1.msra.mxu0 0.0
        %1550 = vmatprep.subr.mxu0 0.0
        %1551 = vmatpush1.msra.mxu0 0.0
        %1552 = vmatprep.subr.mxu0 0.0
        %1553 = vmatpush1.msra.mxu0 0.0
        %1554 = vmatprep.subr.mxu0 0.0
        %1555 = vmatpush1.msra.mxu0 0.0
        %1556 = vmatprep.subr.mxu0 0.0
        %1557 = vmatpush1.msra.mxu0 0.0
        %1558 = vmatprep.subr.mxu0 0.0
        %1559 = vmatpush1.msra.mxu0 0.0
        %1560 = vmatprep.subr.mxu0 0.0
        %1561 = vmatpush1.msra.mxu0 0.0
        %1562 = vmatprep.subr.mxu0 0.0
        %1563 = vmatpush1.msra.mxu0 0.0
        %1564 = vmatprep.subr.mxu0 0.0
        %1565 = vmatpush1.msra.mxu0 0.0
        %1566 = vmatprep.subr.mxu0 0.0
        %1567 = vmatpush1.msra.mxu0 %v1531
        %1568 = vmatprep.subr.mxu0 0.0
        %1569 = vmatpush2.msra.mxu0 0.0
        %1570 = vmatprep.subr.mxu0 0.0
        %1571 = vmatpush2.msra.mxu0 0.0
        %1572 = vmatprep.subr.mxu0 0.0
        %1573 = vmatpush2.msra.mxu0 0.0
        %1574 = vmatprep.subr.mxu0 0.0
        %1575 = vmatpush2.msra.mxu0 0.0
        %1576 = vmatprep.subr.mxu0 0.0
        %1577 = vmatpush2.msra.mxu0 0.0
        %1578 = vmatprep.subr.mxu0 0.0
        %1579 = vmatpush2.msra.mxu0 0.0
        %1580 = vmatprep.subr.mxu0 0.0
        %1581 = vmatpush2.msra.mxu0 0.0
        %1582 = vmatprep.subr.mxu0 0.0
        %1583 = vmatpush2.msra.mxu0 0.0
        %1584 = vmatprep.subr.mxu0 0.0
        %1585 = vmatpush2.msra.mxu0 0.0
        %1586 = vmatprep.subr.mxu0 0.0
        %1587 = vmatpush2.msra.mxu0 0.0
        %1588 = vmatprep.subr.mxu0 0.0
        %1589 = vmatpush2.msra.mxu0 0.0
        %1590 = vmatprep.subr.mxu0 0.0
        %1591 = vmatpush2.msra.mxu0 0.0
        %1592 = vmatprep.subr.mxu0 0.0
        %1593 = vmatpush2.msra.mxu0 0.0
        %1594 = vmatprep.subr.mxu0 0.0
        %1595 = vmatpush2.msra.mxu0 0.0
        %1596 = vmatprep.subr.mxu0 0.0
        %1597 = vmatpush2.msra.mxu0 0.0
        %1598 = vmatprep.subr.mxu0 0.0
        %1599 = vmatpush2.msra.mxu0 0.0
        %1600 = vmatprep.mubr.f32.mxu0 0.0
        %1601 = vmatmul.mubr.f32.gmra.mxu0 %v1534
        %v1602 = vpop.f32.mrf.mxu0
        %v1603 = vadd.f32 0.0, %v1602
        %v1604 = vpop.f32.mrf.mxu0
        %1605 = vdwg.mxu0
        %1606 = vrot.lane.b32.xlu0 %v666, 64
        %v1607 = vpop.permute.xlu0 %1606
        %v1610 = vsel %vm671, %v1373, 0
        %1612 = vmatprep.subr.mxu0 0.0
        %1613 = vmatpush1.msra.mxu0 0.0
        %1614 = vmatprep.subr.mxu0 0.0
        %1615 = vmatpush1.msra.mxu0 0.0
        %1616 = vmatprep.subr.mxu0 0.0
        %1617 = vmatpush1.msra.mxu0 0.0
        %1618 = vmatprep.subr.mxu0 0.0
        %1619 = vmatpush1.msra.mxu0 0.0
        %1620 = vmatprep.subr.mxu0 0.0
        %1621 = vmatpush1.msra.mxu0 0.0
        %1622 = vmatprep.subr.mxu0 0.0
        %1623 = vmatpush1.msra.mxu0 0.0
        %1624 = vmatprep.subr.mxu0 0.0
        %1625 = vmatpush1.msra.mxu0 0.0
        %1626 = vmatprep.subr.mxu0 0.0
        %1627 = vmatpush1.msra.mxu0 0.0
        %1628 = vmatprep.subr.mxu0 0.0
        %1629 = vmatpush1.msra.mxu0 0.0
        %1630 = vmatprep.subr.mxu0 0.0
        %1631 = vmatpush1.msra.mxu0 0.0
        %1632 = vmatprep.subr.mxu0 0.0
        %1633 = vmatpush1.msra.mxu0 0.0
        %1634 = vmatprep.subr.mxu0 0.0
        %1635 = vmatpush1.msra.mxu0 0.0
        %1636 = vmatprep.subr.mxu0 0.0
        %1637 = vmatpush1.msra.mxu0 0.0
        %1638 = vmatprep.subr.mxu0 0.0
        %1639 = vmatpush1.msra.mxu0 0.0
        %1640 = vmatprep.subr.mxu0 0.0
        %1641 = vmatpush1.msra.mxu0 0.0
        %1642 = vmatprep.subr.mxu0 0.0
        %1643 = vmatpush1.msra.mxu0 %v1607
        %1644 = vmatprep.subr.mxu0 0.0
        %1645 = vmatpush2.msra.mxu0 0.0
        %1646 = vmatprep.subr.mxu0 0.0
        %1647 = vmatpush2.msra.mxu0 0.0
        %1648 = vmatprep.subr.mxu0 0.0
        %1649 = vmatpush2.msra.mxu0 0.0
        %1650 = vmatprep.subr.mxu0 0.0
        %1651 = vmatpush2.msra.mxu0 0.0
        %1652 = vmatprep.subr.mxu0 0.0
        %1653 = vmatpush2.msra.mxu0 0.0
        %1654 = vmatprep.subr.mxu0 0.0
        %1655 = vmatpush2.msra.mxu0 0.0
        %1656 = vmatprep.subr.mxu0 0.0
        %1657 = vmatpush2.msra.mxu0 0.0
        %1658 = vmatprep.subr.mxu0 0.0
        %1659 = vmatpush2.msra.mxu0 0.0
        %1660 = vmatprep.subr.mxu0 0.0
        %1661 = vmatpush2.msra.mxu0 0.0
        %1662 = vmatprep.subr.mxu0 0.0
        %1663 = vmatpush2.msra.mxu0 0.0
        %1664 = vmatprep.subr.mxu0 0.0
        %1665 = vmatpush2.msra.mxu0 0.0
        %1666 = vmatprep.subr.mxu0 0.0
        %1667 = vmatpush2.msra.mxu0 0.0
        %1668 = vmatprep.subr.mxu0 0.0
        %1669 = vmatpush2.msra.mxu0 0.0
        %1670 = vmatprep.subr.mxu0 0.0
        %1671 = vmatpush2.msra.mxu0 0.0
        %1672 = vmatprep.subr.mxu0 0.0
        %1673 = vmatpush2.msra.mxu0 0.0
        %1674 = vmatprep.subr.mxu0 0.0
        %1675 = vmatpush2.msra.mxu0 0.0
        %1676 = vmatprep.mubr.f32.mxu0 0.0
        %1677 = vmatmul.mubr.f32.gmra.mxu0 %v1610
        %v1678 = vpop.f32.mrf.mxu0
        %v1679 = vadd.f32 0.0, %v1678
        %v1680 = vpop.f32.mrf.mxu0
        %1681 = vdwg.mxu0
        %1682 = vrot.lane.b32.xlu0 %v652, 64
        %v1683 = vpop.permute.xlu0 %1682
        %v1686 = vsel %vm671, %v1374, 0
        %1688 = vmatprep.subr.mxu0 0.0
        %1689 = vmatpush1.msra.mxu0 0.0
        %1690 = vmatprep.subr.mxu0 0.0
        %1691 = vmatpush1.msra.mxu0 0.0
        %1692 = vmatprep.subr.mxu0 0.0
        %1693 = vmatpush1.msra.mxu0 0.0
        %1694 = vmatprep.subr.mxu0 0.0
        %1695 = vmatpush1.msra.mxu0 0.0
        %1696 = vmatprep.subr.mxu0 0.0
        %1697 = vmatpush1.msra.mxu0 0.0
        %1698 = vmatprep.subr.mxu0 0.0
        %1699 = vmatpush1.msra.mxu0 0.0
        %1700 = vmatprep.subr.mxu0 0.0
        %1701 = vmatpush1.msra.mxu0 0.0
        %1702 = vmatprep.subr.mxu0 0.0
        %1703 = vmatpush1.msra.mxu0 0.0
        %1704 = vmatprep.subr.mxu0 0.0
        %1705 = vmatpush1.msra.mxu0 0.0
        %1706 = vmatprep.subr.mxu0 0.0
        %1707 = vmatpush1.msra.mxu0 0.0
        %1708 = vmatprep.subr.mxu0 0.0
        %1709 = vmatpush1.msra.mxu0 0.0
        %1710 = vmatprep.subr.mxu0 0.0
        %1711 = vmatpush1.msra.mxu0 0.0
        %1712 = vmatprep.subr.mxu0 0.0
        %1713 = vmatpush1.msra.mxu0 0.0
        %1714 = vmatprep.subr.mxu0 0.0
        %1715 = vmatpush1.msra.mxu0 0.0
        %1716 = vmatprep.subr.mxu0 0.0
        %1717 = vmatpush1.msra.mxu0 0.0
        %1718 = vmatprep.subr.mxu0 0.0
        %1719 = vmatpush1.msra.mxu0 %v1683
        %1720 = vmatprep.subr.mxu0 0.0
        %1721 = vmatpush2.msra.mxu0 0.0
        %1722 = vmatprep.subr.mxu0 0.0
        %1723 = vmatpush2.msra.mxu0 0.0
        %1724 = vmatprep.subr.mxu0 0.0
        %1725 = vmatpush2.msra.mxu0 0.0
        %1726 = vmatprep.subr.mxu0 0.0
        %1727 = vmatpush2.msra.mxu0 0.0
        %1728 = vmatprep.subr.mxu0 0.0
        %1729 = vmatpush2.msra.mxu0 0.0
        %1730 = vmatprep.subr.mxu0 0.0
        %1731 = vmatpush2.msra.mxu0 0.0
        %1732 = vmatprep.subr.mxu0 0.0
        %1733 = vmatpush2.msra.mxu0 0.0
        %1734 = vmatprep.subr.mxu0 0.0
        %1735 = vmatpush2.msra.mxu0 0.0
        %1736 = vmatprep.subr.mxu0 0.0
        %1737 = vmatpush2.msra.mxu0 0.0
        %1738 = vmatprep.subr.mxu0 0.0
        %1739 = vmatpush2.msra.mxu0 0.0
        %1740 = vmatprep.subr.mxu0 0.0
        %1741 = vmatpush2.msra.mxu0 0.0
        %1742 = vmatprep.subr.mxu0 0.0
        %1743 = vmatpush2.msra.mxu0 0.0
        %1744 = vmatprep.subr.mxu0 0.0
        %1745 = vmatpush2.msra.mxu0 0.0
        %1746 = vmatprep.subr.mxu0 0.0
        %1747 = vmatpush2.msra.mxu0 0.0
        %1748 = vmatprep.subr.mxu0 0.0
        %1749 = vmatpush2.msra.mxu0 0.0
        %1750 = vmatprep.subr.mxu0 0.0
        %1751 = vmatpush2.msra.mxu0 0.0
        %1752 = vmatprep.mubr.f32.mxu0 0.0
        %1753 = vmatmul.mubr.f32.gmra.mxu0 %v1686
        %v1754 = vpop.f32.mrf.mxu0
        %v1755 = vadd.f32 0.0, %v1754
        %v1756 = vpop.f32.mrf.mxu0
        %1757 = vdwg.mxu0
        %1758 = vrot.lane.b32.xlu0 %v660, 64
        %v1759 = vpop.permute.xlu0 %1758
        %v1762 = vsel %vm671, %v1375, 0
        %1764 = vmatprep.subr.mxu0 0.0
        %1765 = vmatpush1.msra.mxu0 0.0
        %1766 = vmatprep.subr.mxu0 0.0
        %1767 = vmatpush1.msra.mxu0 0.0
        %1768 = vmatprep.subr.mxu0 0.0
        %1769 = vmatpush1.msra.mxu0 0.0
        %1770 = vmatprep.subr.mxu0 0.0
        %1771 = vmatpush1.msra.mxu0 0.0
        %1772 = vmatprep.subr.mxu0 0.0
        %1773 = vmatpush1.msra.mxu0 0.0
        %1774 = vmatprep.subr.mxu0 0.0
        %1775 = vmatpush1.msra.mxu0 0.0
        %1776 = vmatprep.subr.mxu0 0.0
        %1777 = vmatpush1.msra.mxu0 0.0
        %1778 = vmatprep.subr.mxu0 0.0
        %1779 = vmatpush1.msra.mxu0 0.0
        %1780 = vmatprep.subr.mxu0 0.0
        %1781 = vmatpush1.msra.mxu0 0.0
        %1782 = vmatprep.subr.mxu0 0.0
        %1783 = vmatpush1.msra.mxu0 0.0
        %1784 = vmatprep.subr.mxu0 0.0
        %1785 = vmatpush1.msra.mxu0 0.0
        %1786 = vmatprep.subr.mxu0 0.0
        %1787 = vmatpush1.msra.mxu0 0.0
        %1788 = vmatprep.subr.mxu0 0.0
        %1789 = vmatpush1.msra.mxu0 0.0
        %1790 = vmatprep.subr.mxu0 0.0
        %1791 = vmatpush1.msra.mxu0 0.0
        %1792 = vmatprep.subr.mxu0 0.0
        %1793 = vmatpush1.msra.mxu0 0.0
        %1794 = vmatprep.subr.mxu0 0.0
        %1795 = vmatpush1.msra.mxu0 %v1759
        %1796 = vmatprep.subr.mxu0 0.0
        %1797 = vmatpush2.msra.mxu0 0.0
        %1798 = vmatprep.subr.mxu0 0.0
        %1799 = vmatpush2.msra.mxu0 0.0
        %1800 = vmatprep.subr.mxu0 0.0
        %1801 = vmatpush2.msra.mxu0 0.0
        %1802 = vmatprep.subr.mxu0 0.0
        %1803 = vmatpush2.msra.mxu0 0.0
        %1804 = vmatprep.subr.mxu0 0.0
        %1805 = vmatpush2.msra.mxu0 0.0
        %1806 = vmatprep.subr.mxu0 0.0
        %1807 = vmatpush2.msra.mxu0 0.0
        %1808 = vmatprep.subr.mxu0 0.0
        %1809 = vmatpush2.msra.mxu0 0.0
        %1810 = vmatprep.subr.mxu0 0.0
        %1811 = vmatpush2.msra.mxu0 0.0
        %1812 = vmatprep.subr.mxu0 0.0
        %1813 = vmatpush2.msra.mxu0 0.0
        %1814 = vmatprep.subr.mxu0 0.0
        %1815 = vmatpush2.msra.mxu0 0.0
        %1816 = vmatprep.subr.mxu0 0.0
        %1817 = vmatpush2.msra.mxu0 0.0
        %1818 = vmatprep.subr.mxu0 0.0
        %1819 = vmatpush2.msra.mxu0 0.0
        %1820 = vmatprep.subr.mxu0 0.0
        %1821 = vmatpush2.msra.mxu0 0.0
        %1822 = vmatprep.subr.mxu0 0.0
        %1823 = vmatpush2.msra.mxu0 0.0
        %1824 = vmatprep.subr.mxu0 0.0
        %1825 = vmatpush2.msra.mxu0 0.0
        %1826 = vmatprep.subr.mxu0 0.0
        %1827 = vmatpush2.msra.mxu0 0.0
        %1828 = vmatprep.mubr.f32.mxu0 0.0
        %1829 = vmatmul.mubr.f32.gmra.mxu0 %v1762
        %v1830 = vpop.f32.mrf.mxu0
        %v1831 = vadd.f32 0.0, %v1830
        %v1832 = vpop.f32.mrf.mxu0
        %1833 = vdwg.mxu0
        %1834 = vrot.lane.b32.xlu0 %v664, 64
        %v1835 = vpop.permute.xlu0 %1834
        %v1838 = vsel %vm671, %v1376, 0
        %1840 = vmatprep.subr.mxu0 0.0
        %1841 = vmatpush1.msra.mxu0 0.0
        %1842 = vmatprep.subr.mxu0 0.0
        %1843 = vmatpush1.msra.mxu0 0.0
        %1844 = vmatprep.subr.mxu0 0.0
        %1845 = vmatpush1.msra.mxu0 0.0
        %1846 = vmatprep.subr.mxu0 0.0
        %1847 = vmatpush1.msra.mxu0 0.0
        %1848 = vmatprep.subr.mxu0 0.0
        %1849 = vmatpush1.msra.mxu0 0.0
        %1850 = vmatprep.subr.mxu0 0.0
        %1851 = vmatpush1.msra.mxu0 0.0
        %1852 = vmatprep.subr.mxu0 0.0
        %1853 = vmatpush1.msra.mxu0 0.0
        %1854 = vmatprep.subr.mxu0 0.0
        %1855 = vmatpush1.msra.mxu0 0.0
        %1856 = vmatprep.subr.mxu0 0.0
        %1857 = vmatpush1.msra.mxu0 0.0
        %1858 = vmatprep.subr.mxu0 0.0
        %1859 = vmatpush1.msra.mxu0 0.0
        %1860 = vmatprep.subr.mxu0 0.0
        %1861 = vmatpush1.msra.mxu0 0.0
        %1862 = vmatprep.subr.mxu0 0.0
        %1863 = vmatpush1.msra.mxu0 0.0
        %1864 = vmatprep.subr.mxu0 0.0
        %1865 = vmatpush1.msra.mxu0 0.0
        %1866 = vmatprep.subr.mxu0 0.0
        %1867 = vmatpush1.msra.mxu0 0.0
        %1868 = vmatprep.subr.mxu0 0.0
        %1869 = vmatpush1.msra.mxu0 0.0
        %1870 = vmatprep.subr.mxu0 0.0
        %1871 = vmatpush1.msra.mxu0 %v1835
        %1872 = vmatprep.subr.mxu0 0.0
        %1873 = vmatpush2.msra.mxu0 0.0
        %1874 = vmatprep.subr.mxu0 0.0
        %1875 = vmatpush2.msra.mxu0 0.0
        %1876 = vmatprep.subr.mxu0 0.0
        %1877 = vmatpush2.msra.mxu0 0.0
        %1878 = vmatprep.subr.mxu0 0.0
        %1879 = vmatpush2.msra.mxu0 0.0
        %1880 = vmatprep.subr.mxu0 0.0
        %1881 = vmatpush2.msra.mxu0 0.0
        %1882 = vmatprep.subr.mxu0 0.0
        %1883 = vmatpush2.msra.mxu0 0.0
        %1884 = vmatprep.subr.mxu0 0.0
        %1885 = vmatpush2.msra.mxu0 0.0
        %1886 = vmatprep.subr.mxu0 0.0
        %1887 = vmatpush2.msra.mxu0 0.0
        %1888 = vmatprep.subr.mxu0 0.0
        %1889 = vmatpush2.msra.mxu0 0.0
        %1890 = vmatprep.subr.mxu0 0.0
        %1891 = vmatpush2.msra.mxu0 0.0
        %1892 = vmatprep.subr.mxu0 0.0
        %1893 = vmatpush2.msra.mxu0 0.0
        %1894 = vmatprep.subr.mxu0 0.0
        %1895 = vmatpush2.msra.mxu0 0.0
        %1896 = vmatprep.subr.mxu0 0.0
        %1897 = vmatpush2.msra.mxu0 0.0
        %1898 = vmatprep.subr.mxu0 0.0
        %1899 = vmatpush2.msra.mxu0 0.0
        %1900 = vmatprep.subr.mxu0 0.0
        %1901 = vmatpush2.msra.mxu0 0.0
        %1902 = vmatprep.subr.mxu0 0.0
        %1903 = vmatpush2.msra.mxu0 0.0
        %1904 = vmatprep.mubr.f32.mxu0 0.0
        %1905 = vmatmul.mubr.f32.gmra.mxu0 %v1838
        %v1906 = vpop.f32.mrf.mxu0
        %v1907 = vadd.f32 0.0, %v1906
        %v1908 = vpop.f32.mrf.mxu0
        %1909 = vdwg.mxu0
        %1910 = vrot.lane.b32.xlu0 %v668, 64
        %v1911 = vpop.permute.xlu0 %1910
        %v1914 = vsel %vm671, %v1377, 0
        %1916 = vmatprep.subr.mxu0 0.0
        %1917 = vmatpush1.msra.mxu0 0.0
        %1918 = vmatprep.subr.mxu0 0.0
        %1919 = vmatpush1.msra.mxu0 0.0
        %1920 = vmatprep.subr.mxu0 0.0
        %1921 = vmatpush1.msra.mxu0 0.0
        %1922 = vmatprep.subr.mxu0 0.0
        %1923 = vmatpush1.msra.mxu0 0.0
        %1924 = vmatprep.subr.mxu0 0.0
        %1925 = vmatpush1.msra.mxu0 0.0
        %1926 = vmatprep.subr.mxu0 0.0
        %1927 = vmatpush1.msra.mxu0 0.0
        %1928 = vmatprep.subr.mxu0 0.0
        %1929 = vmatpush1.msra.mxu0 0.0
        %1930 = vmatprep.subr.mxu0 0.0
        %1931 = vmatpush1.msra.mxu0 0.0
        %1932 = vmatprep.subr.mxu0 0.0
        %1933 = vmatpush1.msra.mxu0 0.0
        %1934 = vmatprep.subr.mxu0 0.0
        %1935 = vmatpush1.msra.mxu0 0.0
        %1936 = vmatprep.subr.mxu0 0.0
        %1937 = vmatpush1.msra.mxu0 0.0
        %1938 = vmatprep.subr.mxu0 0.0
        %1939 = vmatpush1.msra.mxu0 0.0
        %1940 = vmatprep.subr.mxu0 0.0
        %1941 = vmatpush1.msra.mxu0 0.0
        %1942 = vmatprep.subr.mxu0 0.0
        %1943 = vmatpush1.msra.mxu0 0.0
        %1944 = vmatprep.subr.mxu0 0.0
        %1945 = vmatpush1.msra.mxu0 0.0
        %1946 = vmatprep.subr.mxu0 0.0
        %1947 = vmatpush1.msra.mxu0 %v1911
        %1948 = vmatprep.subr.mxu0 0.0
        %1949 = vmatpush2.msra.mxu0 0.0
        %1950 = vmatprep.subr.mxu0 0.0
        %1951 = vmatpush2.msra.mxu0 0.0
        %1952 = vmatprep.subr.mxu0 0.0
        %1953 = vmatpush2.msra.mxu0 0.0
        %1954 = vmatprep.subr.mxu0 0.0
        %1955 = vmatpush2.msra.mxu0 0.0
        %1956 = vmatprep.subr.mxu0 0.0
        %1957 = vmatpush2.msra.mxu0 0.0
        %1958 = vmatprep.subr.mxu0 0.0
        %1959 = vmatpush2.msra.mxu0 0.0
        %1960 = vmatprep.subr.mxu0 0.0
        %1961 = vmatpush2.msra.mxu0 0.0
        %1962 = vmatprep.subr.mxu0 0.0
        %1963 = vmatpush2.msra.mxu0 0.0
        %1964 = vmatprep.subr.mxu0 0.0
        %1965 = vmatpush2.msra.mxu0 0.0
        %1966 = vmatprep.subr.mxu0 0.0
        %1967 = vmatpush2.msra.mxu0 0.0
        %1968 = vmatprep.subr.mxu0 0.0
        %1969 = vmatpush2.msra.mxu0 0.0
        %1970 = vmatprep.subr.mxu0 0.0
        %1971 = vmatpush2.msra.mxu0 0.0
        %1972 = vmatprep.subr.mxu0 0.0
        %1973 = vmatpush2.msra.mxu0 0.0
        %1974 = vmatprep.subr.mxu0 0.0
        %1975 = vmatpush2.msra.mxu0 0.0
        %1976 = vmatprep.subr.mxu0 0.0
        %1977 = vmatpush2.msra.mxu0 0.0
        %1978 = vmatprep.subr.mxu0 0.0
        %1979 = vmatpush2.msra.mxu0 0.0
        %1980 = vmatprep.mubr.f32.mxu0 0.0
        %1981 = vmatmul.mubr.f32.gmra.mxu0 %v1914
        %v1982 = vpop.f32.mrf.mxu0
        %v1983 = vadd.f32 0.0, %v1982
        %v1984 = vpop.f32.mrf.mxu0
        %1985 = vdwg.mxu0
        %1988 = vrot.lane.b32.xlu0 %v1527, 8
        %v1989 = vpop.permute.xlu0 %1988
        %1990 = vrot.lane.b32.xlu0 %v1831, 8
        %v1991 = vpop.permute.xlu0 %1990
        %1996 = vrot.lane.b32.xlu0 %v1603, 16
        %v1997 = vpop.permute.xlu0 %1996
        %1998 = vrot.lane.b32.xlu0 %v1907, 16
        %v1999 = vpop.permute.xlu0 %1998
        %2004 = vrot.lane.b32.xlu0 %v1679, 24
        %v2005 = vpop.permute.xlu0 %2004
        %2006 = vrot.lane.b32.xlu0 %v1983, 24
        %v2007 = vpop.permute.xlu0 %2006
        %v2010 = vsel %vm671, %v1451, %v1989
        %v2011 = vsel %vm671, %v1755, %v1991
        %vm2012 = vcmask 130048
        %v2013 = vsel %vm2012, %v2010, %v1997
        %v2014 = vsel %vm2012, %v2011, %v1999
        %vm2015 = vcmask 195584
        %v2016 = vsel %vm2015, %v2013, %v2005
        %v2017 = vsel %vm2015, %v2014, %v2007
        %v2018 = vld [vmem:[%s6] sm:$0xff]
        %v2019 = vld [vmem:[%s6 + $0x8] sm:$0xff]
        %v2020 = vld [vmem:[%s6 + $0x10] sm:$0xff]
        %v2021 = vld [vmem:[%s6 + $0x18] sm:$0xff]
        %v2022 = vld [vmem:[%s7] sm:$0x1]
        %v2024 = vlaneseq
        %v2025 = vshrl.u32 %v2024, 7
        %v2026 = vsub.s32 0, %v2025
        %v2027 = vrot.slane %v2022, %v2026
        %v2030 = vsel %vm501, %v2016, 0
        %v2033 = vsel %vm501, %v2017, 0
        %2035 = vmatprep.subr.mxu0 0.0
        %2036 = vmatpush1.msra.mxu0 0.0
        %2037 = vmatprep.subr.mxu0 0.0
        %2038 = vmatpush1.msra.mxu0 0.0
        %2039 = vmatprep.subr.mxu0 0.0
        %2040 = vmatpush1.msra.mxu0 0.0
        %2041 = vmatprep.subr.mxu0 0.0
        %2042 = vmatpush1.msra.mxu0 0.0
        %2043 = vmatprep.subr.mxu0 0.0
        %2044 = vmatpush1.msra.mxu0 0.0
        %2045 = vmatprep.subr.mxu0 0.0
        %2046 = vmatpush1.msra.mxu0 0.0
        %2047 = vmatprep.subr.mxu0 0.0
        %2048 = vmatpush1.msra.mxu0 0.0
        %2049 = vmatprep.subr.mxu0 0.0
        %2050 = vmatpush1.msra.mxu0 0.0
        %2051 = vmatprep.subr.mxu0 0.0
        %2052 = vmatpush1.msra.mxu0 0.0
        %2053 = vmatprep.subr.mxu0 0.0
        %2054 = vmatpush1.msra.mxu0 0.0
        %2055 = vmatprep.subr.mxu0 0.0
        %2056 = vmatpush1.msra.mxu0 0.0
        %2057 = vmatprep.subr.mxu0 0.0
        %2058 = vmatpush1.msra.mxu0 0.0
        %2059 = vmatprep.subr.mxu0 0.0
        %2060 = vmatpush1.msra.mxu0 %v2021
        %2061 = vmatprep.subr.mxu0 0.0
        %2062 = vmatpush1.msra.mxu0 %v2020
        %2063 = vmatprep.subr.mxu0 0.0
        %2064 = vmatpush1.msra.mxu0 %v2019
        %2065 = vmatprep.subr.mxu0 0.0
        %2066 = vmatpush1.msra.mxu0 %v2018
        %2067 = vmatprep.subr.mxu0 0.0
        %2068 = vmatpush2.msra.mxu0 0.0
        %2069 = vmatprep.subr.mxu0 0.0
        %2070 = vmatpush2.msra.mxu0 0.0
        %2071 = vmatprep.subr.mxu0 0.0
        %2072 = vmatpush2.msra.mxu0 0.0
        %2073 = vmatprep.subr.mxu0 0.0
        %2074 = vmatpush2.msra.mxu0 0.0
        %2075 = vmatprep.subr.mxu0 0.0
        %2076 = vmatpush2.msra.mxu0 0.0
        %2077 = vmatprep.subr.mxu0 0.0
        %2078 = vmatpush2.msra.mxu0 0.0
        %2079 = vmatprep.subr.mxu0 0.0
        %2080 = vmatpush2.msra.mxu0 0.0
        %2081 = vmatprep.subr.mxu0 0.0
        %2082 = vmatpush2.msra.mxu0 0.0
        %2083 = vmatprep.subr.mxu0 0.0
        %2084 = vmatpush2.msra.mxu0 0.0
        %2085 = vmatprep.subr.mxu0 0.0
        %2086 = vmatpush2.msra.mxu0 0.0
        %2087 = vmatprep.subr.mxu0 0.0
        %2088 = vmatpush2.msra.mxu0 0.0
        %2089 = vmatprep.subr.mxu0 0.0
        %2090 = vmatpush2.msra.mxu0 0.0
        %2091 = vmatprep.subr.mxu0 0.0
        %2092 = vmatpush2.msra.mxu0 0.0
        %2093 = vmatprep.subr.mxu0 0.0
        %2094 = vmatpush2.msra.mxu0 0.0
        %2095 = vmatprep.subr.mxu0 0.0
        %2096 = vmatpush2.msra.mxu0 0.0
        %2097 = vmatprep.subr.mxu0 0.0
        %2098 = vmatpush2.msra.mxu0 0.0
        %2099 = vmatprep.mubr.f32.mxu0 0.0
        %2100 = vmatmul.mubr.f32.gmra.mxu0 %v2030
        %v2101 = vpop.f32.mrf.mxu0
        %v2102 = vadd.f32 %v2027, %v2101
        %v2103 = vpop.f32.mrf.mxu0
        %2104 = vmatprep.mubr.f32.mxu0 0.0
        %2105 = vmatmul.mubr.f32.gmra.mxu0 %v2033
        %v2106 = vpop.f32.mrf.mxu0
        %v2107 = vadd.f32 %v2027, %v2106
        %v2108 = vpop.f32.mrf.mxu0
        %2109 = vdwg.mxu0
        %v2110 = vadd.f32 %v491, %v2102
        %v2111 = vadd.f32 %v492, %v2107
        %v2112 = vsel %vm501, %v2110, 0.0
        %2113 = vadd.xlane.f32.xlu0 %v2112
        %v2114 = vpop.xlane.xlu0 %2113
        %v2115 = vsel %vm501, %v2111, 0.0
        %2116 = vadd.xlane.f32.xlu0 %v2115
        %v2117 = vpop.xlane.xlu0 %2116
        %v2118 = vmul.f32 %v2114, %v508
        %v2119 = vmul.f32 %v2117, %v508
        %v2120 = vsub.f32 %v2110, %v2118
        %v2121 = vsub.f32 %v2111, %v2119
        %v2122 = vmul.f32 %v2120, %v2120
        %v2123 = vmul.f32 %v2121, %v2121
        %v2124 = vsel %vm501, %v2122, 0.0
        %2125 = vadd.xlane.f32.xlu0 %v2124
        %v2126 = vpop.xlane.xlu0 %2125
        %v2127 = vsel %vm501, %v2123, 0.0
        %2128 = vadd.xlane.f32.xlu0 %v2127
        %v2129 = vpop.xlane.xlu0 %2128
        %v2130 = vmul.f32 %v2126, 0.032258064
        %v2131 = vmul.f32 %v2129, 0.032258064
        %v2132 = vrsqrt.pop %v2130
        %v2133 = vmul.f32 %v2130, %v2132
        %vm2134 = vcmp.eq.f32.partialorder %v2130, inf
        %v2135 = vsel %vm2134, %v2130, %v2133
        %vm2136 = vcmp.eq.f32.partialorder %v2130, 0.0
        %v2137 = vand.u32 %v2130, 2147483648
        %v2138 = vsel %vm2136, %v2137, %v2135
        %v2139 = vrsqrt.pop %v2131
        %v2140 = vmul.f32 %v2131, %v2139
        %vm2141 = vcmp.eq.f32.partialorder %v2131, inf
        %v2142 = vsel %vm2141, %v2131, %v2140
        %vm2143 = vcmp.eq.f32.partialorder %v2131, 0.0
        %v2144 = vand.u32 %v2131, 2147483648
        %v2145 = vsel %vm2143, %v2144, %v2142
        %v2146 = vadd.f32 %v2138, 1e-06
        %v2147 = vadd.f32 %v2145, 1e-06
        %v2148 = vrcp.pop %v2146
        %v2149 = vmul.f32 1.0, %v2148
        %v2150 = vrcp.pop %v2147
        %v2151 = vmul.f32 1.0, %v2150
        %v2152 = vld [vmem:[%s8] sm:$0x1]
        %v2153 = vmul.f32 %v2120, %v2149
        %v2154 = vmul.f32 %v2121, %v2151
        %v2156 = vlaneseq
        %v2157 = vshrl.u32 %v2156, 7
        %v2158 = vsub.s32 0, %v2157
        %v2159 = vrot.slane %v2152, %v2158
        %v2161 = vmul.f32 %v2159, %v2153
        %v2162 = vmul.f32 %v2159, %v2154
        %v2163 = vld [vmem:[%s9] sm:$0x1]
        %v2165 = vlaneseq
        %v2166 = vshrl.u32 %v2165, 7
        %v2167 = vsub.s32 0, %v2166
        %v2168 = vrot.slane %v2163, %v2167
        %v2170 = vadd.f32 %v2161, %v2168
        %v2171 = vadd.f32 %v2162, %v2168
        %v2172 = vld [vmem:[%s10] sm:$0xff]
        %v2173 = vld [vmem:[%s10 + $0x8] sm:$0xff]
        %v2174 = vld [vmem:[%s10 + $0x10] sm:$0xff]
        %v2175 = vld [vmem:[%s10 + $0x18] sm:$0xff]
        %v2176 = vld [vmem:[%s10 + $0x20] sm:$0xff]
        %v2177 = vld [vmem:[%s10 + $0x28] sm:$0xff]
        %v2178 = vld [vmem:[%s10 + $0x30] sm:$0xff]
        %v2179 = vld [vmem:[%s10 + $0x38] sm:$0xff]
        %v2180 = vld [vmem:[%s10 + $0x40] sm:$0xff]
        %v2181 = vld [vmem:[%s10 + $0x48] sm:$0xff]
        %v2182 = vld [vmem:[%s10 + $0x50] sm:$0xff]
        %v2183 = vld [vmem:[%s10 + $0x58] sm:$0xff]
        %v2184 = vld [vmem:[%s10 + $0x60] sm:$0xff]
        %v2185 = vld [vmem:[%s10 + $0x68] sm:$0xff]
        %v2186 = vld [vmem:[%s10 + $0x70] sm:$0xff]
        %v2187 = vld [vmem:[%s10 + $0x78] sm:$0xff]
        %v2188 = vld [vmem:[%s10 + $0x80] sm:$0xff]
        %v2189 = vld [vmem:[%s10 + $0x88] sm:$0xff]
        %v2190 = vld [vmem:[%s10 + $0x90] sm:$0xff]
        %v2191 = vld [vmem:[%s10 + $0x98] sm:$0xff]
        %v2192 = vld [vmem:[%s10 + $0xa0] sm:$0xff]
        %v2193 = vld [vmem:[%s10 + $0xa8] sm:$0xff]
        %v2194 = vld [vmem:[%s10 + $0xb0] sm:$0xff]
        %v2195 = vld [vmem:[%s10 + $0xb8] sm:$0xff]
        %v2196 = vld [vmem:[%s10 + $0xc0] sm:$0xff]
        %v2197 = vld [vmem:[%s10 + $0xc8] sm:$0xff]
        %v2198 = vld [vmem:[%s10 + $0xd0] sm:$0xff]
        %v2199 = vld [vmem:[%s10 + $0xd8] sm:$0xff]
        %v2200 = vld [vmem:[%s10 + $0xe0] sm:$0xff]
        %v2201 = vld [vmem:[%s10 + $0xe8] sm:$0xff]
        %v2202 = vld [vmem:[%s10 + $0xf0] sm:$0xff]
        %v2203 = vld [vmem:[%s10 + $0xf8] sm:$0xff]
        %v2204 = vld [vmem:[%s10 + $0x100] sm:$0xff]
        %v2205 = vld [vmem:[%s10 + $0x108] sm:$0xff]
        %v2206 = vld [vmem:[%s10 + $0x110] sm:$0xff]
        %v2207 = vld [vmem:[%s10 + $0x118] sm:$0xff]
        %v2208 = vld [vmem:[%s10 + $0x120] sm:$0xff]
        %v2209 = vld [vmem:[%s10 + $0x128] sm:$0xff]
        %v2210 = vld [vmem:[%s10 + $0x130] sm:$0xff]
        %v2211 = vld [vmem:[%s10 + $0x138] sm:$0xff]
        %v2212 = vld [vmem:[%s10 + $0x140] sm:$0xff]
        %v2213 = vld [vmem:[%s10 + $0x148] sm:$0xff]
        %v2214 = vld [vmem:[%s10 + $0x150] sm:$0xff]
        %v2215 = vld [vmem:[%s10 + $0x158] sm:$0xff]
        %v2216 = vld [vmem:[%s10 + $0x160] sm:$0xff]
        %v2217 = vld [vmem:[%s10 + $0x168] sm:$0xff]
        %v2218 = vld [vmem:[%s10 + $0x170] sm:$0xff]
        %v2219 = vld [vmem:[%s10 + $0x178] sm:$0xff]
        %v2220 = vld [vmem:[%s10 + $0x180] sm:$0xff]
        %v2221 = vld [vmem:[%s10 + $0x188] sm:$0xff]
        %v2222 = vld [vmem:[%s10 + $0x190] sm:$0xff]
        %v2223 = vld [vmem:[%s10 + $0x198] sm:$0xff]
        %v2224 = vld [vmem:[%s10 + $0x1a0] sm:$0xff]
        %v2225 = vld [vmem:[%s10 + $0x1a8] sm:$0xff]
        %v2226 = vld [vmem:[%s10 + $0x1b0] sm:$0xff]
        %v2227 = vld [vmem:[%s10 + $0x1b8] sm:$0xff]
        %v2228 = vld [vmem:[%s10 + $0x1c0] sm:$0xff]
        %v2229 = vld [vmem:[%s10 + $0x1c8] sm:$0xff]
        %v2230 = vld [vmem:[%s10 + $0x1d0] sm:$0xff]
        %v2231 = vld [vmem:[%s10 + $0x1d8] sm:$0xff]
        %v2232 = vld [vmem:[%s10 + $0x1e0] sm:$0xff]
        %v2233 = vld [vmem:[%s10 + $0x1e8] sm:$0xff]
        %v2234 = vld [vmem:[%s10 + $0x1f0] sm:$0xff]
        %v2235 = vld [vmem:[%s10 + $0x1f8] sm:$0xff]
        %v2236 = vld [vmem:[%s11] sm:$0xff]
        %v2237 = vld [vmem:[%s11 + $0x8] sm:$0xff]
        %v2240 = vlaneseq
        %v2241 = vshrl.u32 %v2240, 7
        %v2242 = vsub.s32 0, %v2241
        %v2243 = vrot.slane %v2236, %v2242
        %v2244 = vlaneseq
        %v2245 = vshrl.u32 %v2244, 7
        %v2246 = vsub.s32 1, %v2245
        %v2247 = vrot.slane %v2236, %v2246
        %v2248 = vlaneseq
        %v2249 = vshrl.u32 %v2248, 7
        %v2250 = vsub.s32 2, %v2249
        %v2251 = vrot.slane %v2236, %v2250
        %v2252 = vlaneseq
        %v2253 = vshrl.u32 %v2252, 7
        %v2254 = vsub.s32 3, %v2253
        %v2255 = vrot.slane %v2236, %v2254
        %v2256 = vlaneseq
        %v2257 = vshrl.u32 %v2256, 7
        %v2258 = vsub.s32 4, %v2257
        %v2259 = vrot.slane %v2236, %v2258
        %v2260 = vlaneseq
        %v2261 = vshrl.u32 %v2260, 7
        %v2262 = vsub.s32 5, %v2261
        %v2263 = vrot.slane %v2236, %v2262
        %v2264 = vlaneseq
        %v2265 = vshrl.u32 %v2264, 7
        %v2266 = vsub.s32 6, %v2265
        %v2267 = vrot.slane %v2236, %v2266
        %v2268 = vlaneseq
        %v2269 = vshrl.u32 %v2268, 7
        %v2270 = vsub.s32 7, %v2269
        %v2271 = vrot.slane %v2236, %v2270
        %v2272 = vlaneseq
        %v2273 = vshrl.u32 %v2272, 7
        %v2274 = vsub.s32 0, %v2273
        %v2275 = vrot.slane %v2237, %v2274
        %v2276 = vlaneseq
        %v2277 = vshrl.u32 %v2276, 7
        %v2278 = vsub.s32 1, %v2277
        %v2279 = vrot.slane %v2237, %v2278
        %v2280 = vlaneseq
        %v2281 = vshrl.u32 %v2280, 7
        %v2282 = vsub.s32 2, %v2281
        %v2283 = vrot.slane %v2237, %v2282
        %v2284 = vlaneseq
        %v2285 = vshrl.u32 %v2284, 7
        %v2286 = vsub.s32 3, %v2285
        %v2287 = vrot.slane %v2237, %v2286
        %v2288 = vlaneseq
        %v2289 = vshrl.u32 %v2288, 7
        %v2290 = vsub.s32 4, %v2289
        %v2291 = vrot.slane %v2237, %v2290
        %v2292 = vlaneseq
        %v2293 = vshrl.u32 %v2292, 7
        %v2294 = vsub.s32 5, %v2293
        %v2295 = vrot.slane %v2237, %v2294
        %v2296 = vlaneseq
        %v2297 = vshrl.u32 %v2296, 7
        %v2298 = vsub.s32 6, %v2297
        %v2299 = vrot.slane %v2237, %v2298
        %v2300 = vlaneseq
        %v2301 = vshrl.u32 %v2300, 7
        %v2302 = vsub.s32 7, %v2301
        %v2303 = vrot.slane %v2237, %v2302
        %v2321 = vsel %vm501, %v2170, 0
        %v2324 = vsel %vm501, %v2171, 0
        %2326 = vmatprep.subr.mxu0 0.0
        %2327 = vmatpush1.msra.mxu0 0.0
        %2328 = vmatprep.subr.mxu0 0.0
        %2329 = vmatpush1.msra.mxu0 0.0
        %2330 = vmatprep.subr.mxu0 0.0
        %2331 = vmatpush1.msra.mxu0 0.0
        %2332 = vmatprep.subr.mxu0 0.0
        %2333 = vmatpush1.msra.mxu0 0.0
        %2334 = vmatprep.subr.mxu0 0.0
        %2335 = vmatpush1.msra.mxu0 0.0
        %2336 = vmatprep.subr.mxu0 0.0
        %2337 = vmatpush1.msra.mxu0 0.0
        %2338 = vmatprep.subr.mxu0 0.0
        %2339 = vmatpush1.msra.mxu0 0.0
        %2340 = vmatprep.subr.mxu0 0.0
        %2341 = vmatpush1.msra.mxu0 0.0
        %2342 = vmatprep.subr.mxu0 0.0
        %2343 = vmatpush1.msra.mxu0 0.0
        %2344 = vmatprep.subr.mxu0 0.0
        %2345 = vmatpush1.msra.mxu0 0.0
        %2346 = vmatprep.subr.mxu0 0.0
        %2347 = vmatpush1.msra.mxu0 0.0
        %2348 = vmatprep.subr.mxu0 0.0
        %2349 = vmatpush1.msra.mxu0 0.0
        %2350 = vmatprep.subr.mxu0 %v2221
        %2351 = vmatpush1.msra.mxu0 %v2220
        %2352 = vmatprep.subr.mxu0 %v2205
        %2353 = vmatpush1.msra.mxu0 %v2204
        %2354 = vmatprep.subr.mxu0 %v2189
        %2355 = vmatpush1.msra.mxu0 %v2188
        %2356 = vmatprep.subr.mxu0 %v2173
        %2357 = vmatpush1.msra.mxu0 %v2172
        %2358 = vmatprep.subr.mxu0 0.0
        %2359 = vmatpush2.msra.mxu0 0.0
        %2360 = vmatprep.subr.mxu0 0.0
        %2361 = vmatpush2.msra.mxu0 0.0
        %2362 = vmatprep.subr.mxu0 0.0
        %2363 = vmatpush2.msra.mxu0 0.0
        %2364 = vmatprep.subr.mxu0 0.0
        %2365 = vmatpush2.msra.mxu0 0.0
        %2366 = vmatprep.subr.mxu0 0.0
        %2367 = vmatpush2.msra.mxu0 0.0
        %2368 = vmatprep.subr.mxu0 0.0
        %2369 = vmatpush2.msra.mxu0 0.0
        %2370 = vmatprep.subr.mxu0 0.0
        %2371 = vmatpush2.msra.mxu0 0.0
        %2372 = vmatprep.subr.mxu0 0.0
        %2373 = vmatpush2.msra.mxu0 0.0
        %2374 = vmatprep.subr.mxu0 0.0
        %2375 = vmatpush2.msra.mxu0 0.0
        %2376 = vmatprep.subr.mxu0 0.0
        %2377 = vmatpush2.msra.mxu0 0.0
        %2378 = vmatprep.subr.mxu0 0.0
        %2379 = vmatpush2.msra.mxu0 0.0
        %2380 = vmatprep.subr.mxu0 0.0
        %2381 = vmatpush2.msra.mxu0 0.0
        %2382 = vmatprep.subr.mxu0 0.0
        %2383 = vmatpush2.msra.mxu0 0.0
        %2384 = vmatprep.subr.mxu0 0.0
        %2385 = vmatpush2.msra.mxu0 0.0
        %2386 = vmatprep.subr.mxu0 0.0
        %2387 = vmatpush2.msra.mxu0 0.0
        %2388 = vmatprep.subr.mxu0 0.0
        %2389 = vmatpush2.msra.mxu0 0.0
        %2390 = vmatprep.mubr.f32.mxu0 0.0
        %2391 = vmatmul.mubr.f32.gmra.mxu0 %v2321
        %v2392 = vpop.f32.mrf.mxu0
        %v2393 = vadd.f32 %v2243, %v2392
        %v2394 = vpop.f32.mrf.mxu0
        %v2395 = vadd.f32 %v2247, %v2394
        %2396 = vmatprep.mubr.f32.mxu0 0.0
        %2397 = vmatmul.mubr.f32.gmra.mxu0 %v2324
        %v2398 = vpop.f32.mrf.mxu0
        %v2399 = vadd.f32 %v2243, %v2398
        %v2400 = vpop.f32.mrf.mxu0
        %v2401 = vadd.f32 %v2247, %v2400
        %2402 = vdwg.mxu0
        %2403 = vmatprep.subr.mxu0 0.0
        %2404 = vmatpush1.msra.mxu0 0.0
        %2405 = vmatprep.subr.mxu0 0.0
        %2406 = vmatpush1.msra.mxu0 0.0
        %2407 = vmatprep.subr.mxu0 0.0
        %2408 = vmatpush1.msra.mxu0 0.0
        %2409 = vmatprep.subr.mxu0 0.0
        %2410 = vmatpush1.msra.mxu0 0.0
        %2411 = vmatprep.subr.mxu0 0.0
        %2412 = vmatpush1.msra.mxu0 0.0
        %2413 = vmatprep.subr.mxu0 0.0
        %2414 = vmatpush1.msra.mxu0 0.0
        %2415 = vmatprep.subr.mxu0 0.0
        %2416 = vmatpush1.msra.mxu0 0.0
        %2417 = vmatprep.subr.mxu0 0.0
        %2418 = vmatpush1.msra.mxu0 0.0
        %2419 = vmatprep.subr.mxu0 0.0
        %2420 = vmatpush1.msra.mxu0 0.0
        %2421 = vmatprep.subr.mxu0 0.0
        %2422 = vmatpush1.msra.mxu0 0.0
        %2423 = vmatprep.subr.mxu0 0.0
        %2424 = vmatpush1.msra.mxu0 0.0
        %2425 = vmatprep.subr.mxu0 0.0
        %2426 = vmatpush1.msra.mxu0 0.0
        %2427 = vmatprep.subr.mxu0 %v2223
        %2428 = vmatpush1.msra.mxu0 %v2222
        %2429 = vmatprep.subr.mxu0 %v2207
        %2430 = vmatpush1.msra.mxu0 %v2206
        %2431 = vmatprep.subr.mxu0 %v2191
        %2432 = vmatpush1.msra.mxu0 %v2190
        %2433 = vmatprep.subr.mxu0 %v2175
        %2434 = vmatpush1.msra.mxu0 %v2174
        %2435 = vmatprep.subr.mxu0 0.0
        %2436 = vmatpush2.msra.mxu0 0.0
        %2437 = vmatprep.subr.mxu0 0.0
        %2438 = vmatpush2.msra.mxu0 0.0
        %2439 = vmatprep.subr.mxu0 0.0
        %2440 = vmatpush2.msra.mxu0 0.0
        %2441 = vmatprep.subr.mxu0 0.0
        %2442 = vmatpush2.msra.mxu0 0.0
        %2443 = vmatprep.subr.mxu0 0.0
        %2444 = vmatpush2.msra.mxu0 0.0
        %2445 = vmatprep.subr.mxu0 0.0
        %2446 = vmatpush2.msra.mxu0 0.0
        %2447 = vmatprep.subr.mxu0 0.0
        %2448 = vmatpush2.msra.mxu0 0.0
        %2449 = vmatprep.subr.mxu0 0.0
        %2450 = vmatpush2.msra.mxu0 0.0
        %2451 = vmatprep.subr.mxu0 0.0
        %2452 = vmatpush2.msra.mxu0 0.0
        %2453 = vmatprep.subr.mxu0 0.0
        %2454 = vmatpush2.msra.mxu0 0.0
        %2455 = vmatprep.subr.mxu0 0.0
        %2456 = vmatpush2.msra.mxu0 0.0
        %2457 = vmatprep.subr.mxu0 0.0
        %2458 = vmatpush2.msra.mxu0 0.0
        %2459 = vmatprep.subr.mxu0 0.0
        %2460 = vmatpush2.msra.mxu0 0.0
        %2461 = vmatprep.subr.mxu0 0.0
        %2462 = vmatpush2.msra.mxu0 0.0
        %2463 = vmatprep.subr.mxu0 0.0
        %2464 = vmatpush2.msra.mxu0 0.0
        %2465 = vmatprep.subr.mxu0 0.0
        %2466 = vmatpush2.msra.mxu0 0.0
        %2467 = vmatprep.mubr.f32.mxu0 0.0
        %2468 = vmatmul.mubr.f32.gmra.mxu0 %v2321
        %v2469 = vpop.f32.mrf.mxu0
        %v2470 = vadd.f32 %v2251, %v2469
        %v2471 = vpop.f32.mrf.mxu0
        %v2472 = vadd.f32 %v2255, %v2471
        %2473 = vmatprep.mubr.f32.mxu0 0.0
        %2474 = vmatmul.mubr.f32.gmra.mxu0 %v2324
        %v2475 = vpop.f32.mrf.mxu0
        %v2476 = vadd.f32 %v2251, %v2475
        %v2477 = vpop.f32.mrf.mxu0
        %v2478 = vadd.f32 %v2255, %v2477
        %2479 = vdwg.mxu0
        %2480 = vmatprep.subr.mxu0 0.0
        %2481 = vmatpush1.msra.mxu0 0.0
        %2482 = vmatprep.subr.mxu0 0.0
        %2483 = vmatpush1.msra.mxu0 0.0
        %2484 = vmatprep.subr.mxu0 0.0
        %2485 = vmatpush1.msra.mxu0 0.0
        %2486 = vmatprep.subr.mxu0 0.0
        %2487 = vmatpush1.msra.mxu0 0.0
        %2488 = vmatprep.subr.mxu0 0.0
        %2489 = vmatpush1.msra.mxu0 0.0
        %2490 = vmatprep.subr.mxu0 0.0
        %2491 = vmatpush1.msra.mxu0 0.0
        %2492 = vmatprep.subr.mxu0 0.0
        %2493 = vmatpush1.msra.mxu0 0.0
        %2494 = vmatprep.subr.mxu0 0.0
        %2495 = vmatpush1.msra.mxu0 0.0
        %2496 = vmatprep.subr.mxu0 0.0
        %2497 = vmatpush1.msra.mxu0 0.0
        %2498 = vmatprep.subr.mxu0 0.0
        %2499 = vmatpush1.msra.mxu0 0.0
        %2500 = vmatprep.subr.mxu0 0.0
        %2501 = vmatpush1.msra.mxu0 0.0
        %2502 = vmatprep.subr.mxu0 0.0
        %2503 = vmatpush1.msra.mxu0 0.0
        %2504 = vmatprep.subr.mxu0 %v2225
        %2505 = vmatpush1.msra.mxu0 %v2224
        %2506 = vmatprep.subr.mxu0 %v2209
        %2507 = vmatpush1.msra.mxu0 %v2208
        %2508 = vmatprep.subr.mxu0 %v2193
        %2509 = vmatpush1.msra.mxu0 %v2192
        %2510 = vmatprep.subr.mxu0 %v2177
        %2511 = vmatpush1.msra.mxu0 %v2176
        %2512 = vmatprep.subr.mxu0 0.0
        %2513 = vmatpush2.msra.mxu0 0.0
        %2514 = vmatprep.subr.mxu0 0.0
        %2515 = vmatpush2.msra.mxu0 0.0
        %2516 = vmatprep.subr.mxu0 0.0
        %2517 = vmatpush2.msra.mxu0 0.0
        %2518 = vmatprep.subr.mxu0 0.0
        %2519 = vmatpush2.msra.mxu0 0.0
        %2520 = vmatprep.subr.mxu0 0.0
        %2521 = vmatpush2.msra.mxu0 0.0
        %2522 = vmatprep.subr.mxu0 0.0
        %2523 = vmatpush2.msra.mxu0 0.0
        %2524 = vmatprep.subr.mxu0 0.0
        %2525 = vmatpush2.msra.mxu0 0.0
        %2526 = vmatprep.subr.mxu0 0.0
        %2527 = vmatpush2.msra.mxu0 0.0
        %2528 = vmatprep.subr.mxu0 0.0
        %2529 = vmatpush2.msra.mxu0 0.0
        %2530 = vmatprep.subr.mxu0 0.0
        %2531 = vmatpush2.msra.mxu0 0.0
        %2532 = vmatprep.subr.mxu0 0.0
        %2533 = vmatpush2.msra.mxu0 0.0
        %2534 = vmatprep.subr.mxu0 0.0
        %2535 = vmatpush2.msra.mxu0 0.0
        %2536 = vmatprep.subr.mxu0 0.0
        %2537 = vmatpush2.msra.mxu0 0.0
        %2538 = vmatprep.subr.mxu0 0.0
        %2539 = vmatpush2.msra.mxu0 0.0
        %2540 = vmatprep.subr.mxu0 0.0
        %2541 = vmatpush2.msra.mxu0 0.0
        %2542 = vmatprep.subr.mxu0 0.0
        %2543 = vmatpush2.msra.mxu0 0.0
        %2544 = vmatprep.mubr.f32.mxu0 0.0
        %2545 = vmatmul.mubr.f32.gmra.mxu0 %v2321
        %v2546 = vpop.f32.mrf.mxu0
        %v2547 = vadd.f32 %v2259, %v2546
        %v2548 = vpop.f32.mrf.mxu0
        %v2549 = vadd.f32 %v2263, %v2548
        %2550 = vmatprep.mubr.f32.mxu0 0.0
        %2551 = vmatmul.mubr.f32.gmra.mxu0 %v2324
        %v2552 = vpop.f32.mrf.mxu0
        %v2553 = vadd.f32 %v2259, %v2552
        %v2554 = vpop.f32.mrf.mxu0
        %v2555 = vadd.f32 %v2263, %v2554
        %2556 = vdwg.mxu0
        %2557 = vmatprep.subr.mxu0 0.0
        %2558 = vmatpush1.msra.mxu0 0.0
        %2559 = vmatprep.subr.mxu0 0.0
        %2560 = vmatpush1.msra.mxu0 0.0
        %2561 = vmatprep.subr.mxu0 0.0
        %2562 = vmatpush1.msra.mxu0 0.0
        %2563 = vmatprep.subr.mxu0 0.0
        %2564 = vmatpush1.msra.mxu0 0.0
        %2565 = vmatprep.subr.mxu0 0.0
        %2566 = vmatpush1.msra.mxu0 0.0
        %2567 = vmatprep.subr.mxu0 0.0
        %2568 = vmatpush1.msra.mxu0 0.0
        %2569 = vmatprep.subr.mxu0 0.0
        %2570 = vmatpush1.msra.mxu0 0.0
        %2571 = vmatprep.subr.mxu0 0.0
        %2572 = vmatpush1.msra.mxu0 0.0
        %2573 = vmatprep.subr.mxu0 0.0
        %2574 = vmatpush1.msra.mxu0 0.0
        %2575 = vmatprep.subr.mxu0 0.0
        %2576 = vmatpush1.msra.mxu0 0.0
        %2577 = vmatprep.subr.mxu0 0.0
        %2578 = vmatpush1.msra.mxu0 0.0
        %2579 = vmatprep.subr.mxu0 0.0
        %2580 = vmatpush1.msra.mxu0 0.0
        %2581 = vmatprep.subr.mxu0 %v2227
        %2582 = vmatpush1.msra.mxu0 %v2226
        %2583 = vmatprep.subr.mxu0 %v2211
        %2584 = vmatpush1.msra.mxu0 %v2210
        %2585 = vmatprep.subr.mxu0 %v2195
        %2586 = vmatpush1.msra.mxu0 %v2194
        %2587 = vmatprep.subr.mxu0 %v2179
        %2588 = vmatpush1.msra.mxu0 %v2178
        %2589 = vmatprep.subr.mxu0 0.0
        %2590 = vmatpush2.msra.mxu0 0.0
        %2591 = vmatprep.subr.mxu0 0.0
        %2592 = vmatpush2.msra.mxu0 0.0
        %2593 = vmatprep.subr.mxu0 0.0
        %2594 = vmatpush2.msra.mxu0 0.0
        %2595 = vmatprep.subr.mxu0 0.0
        %2596 = vmatpush2.msra.mxu0 0.0
        %2597 = vmatprep.subr.mxu0 0.0
        %2598 = vmatpush2.msra.mxu0 0.0
        %2599 = vmatprep.subr.mxu0 0.0
        %2600 = vmatpush2.msra.mxu0 0.0
        %2601 = vmatprep.subr.mxu0 0.0
        %2602 = vmatpush2.msra.mxu0 0.0
        %2603 = vmatprep.subr.mxu0 0.0
        %2604 = vmatpush2.msra.mxu0 0.0
        %2605 = vmatprep.subr.mxu0 0.0
        %2606 = vmatpush2.msra.mxu0 0.0
        %2607 = vmatprep.subr.mxu0 0.0
        %2608 = vmatpush2.msra.mxu0 0.0
        %2609 = vmatprep.subr.mxu0 0.0
        %2610 = vmatpush2.msra.mxu0 0.0
        %2611 = vmatprep.subr.mxu0 0.0
        %2612 = vmatpush2.msra.mxu0 0.0
        %2613 = vmatprep.subr.mxu0 0.0
        %2614 = vmatpush2.msra.mxu0 0.0
        %2615 = vmatprep.subr.mxu0 0.0
        %2616 = vmatpush2.msra.mxu0 0.0
        %2617 = vmatprep.subr.mxu0 0.0
        %2618 = vmatpush2.msra.mxu0 0.0
        %2619 = vmatprep.subr.mxu0 0.0
        %2620 = vmatpush2.msra.mxu0 0.0
        %2621 = vmatprep.mubr.f32.mxu0 0.0
        %2622 = vmatmul.mubr.f32.gmra.mxu0 %v2321
        %v2623 = vpop.f32.mrf.mxu0
        %v2624 = vadd.f32 %v2267, %v2623
        %v2625 = vpop.f32.mrf.mxu0
        %v2626 = vadd.f32 %v2271, %v2625
        %2627 = vmatprep.mubr.f32.mxu0 0.0
        %2628 = vmatmul.mubr.f32.gmra.mxu0 %v2324
        %v2629 = vpop.f32.mrf.mxu0
        %v2630 = vadd.f32 %v2267, %v2629
        %v2631 = vpop.f32.mrf.mxu0
        %v2632 = vadd.f32 %v2271, %v2631
        %2633 = vdwg.mxu0
        %2634 = vmatprep.subr.mxu0 0.0
        %2635 = vmatpush1.msra.mxu0 0.0
        %2636 = vmatprep.subr.mxu0 0.0
        %2637 = vmatpush1.msra.mxu0 0.0
        %2638 = vmatprep.subr.mxu0 0.0
        %2639 = vmatpush1.msra.mxu0 0.0
        %2640 = vmatprep.subr.mxu0 0.0
        %2641 = vmatpush1.msra.mxu0 0.0
        %2642 = vmatprep.subr.mxu0 0.0
        %2643 = vmatpush1.msra.mxu0 0.0
        %2644 = vmatprep.subr.mxu0 0.0
        %2645 = vmatpush1.msra.mxu0 0.0
        %2646 = vmatprep.subr.mxu0 0.0
        %2647 = vmatpush1.msra.mxu0 0.0
        %2648 = vmatprep.subr.mxu0 0.0
        %2649 = vmatpush1.msra.mxu0 0.0
        %2650 = vmatprep.subr.mxu0 0.0
        %2651 = vmatpush1.msra.mxu0 0.0
        %2652 = vmatprep.subr.mxu0 0.0
        %2653 = vmatpush1.msra.mxu0 0.0
        %2654 = vmatprep.subr.mxu0 0.0
        %2655 = vmatpush1.msra.mxu0 0.0
        %2656 = vmatprep.subr.mxu0 0.0
        %2657 = vmatpush1.msra.mxu0 0.0
        %2658 = vmatprep.subr.mxu0 %v2229
        %2659 = vmatpush1.msra.mxu0 %v2228
        %2660 = vmatprep.subr.mxu0 %v2213
        %2661 = vmatpush1.msra.mxu0 %v2212
        %2662 = vmatprep.subr.mxu0 %v2197
        %2663 = vmatpush1.msra.mxu0 %v2196
        %2664 = vmatprep.subr.mxu0 %v2181
        %2665 = vmatpush1.msra.mxu0 %v2180
        %2666 = vmatprep.subr.mxu0 0.0
        %2667 = vmatpush2.msra.mxu0 0.0
        %2668 = vmatprep.subr.mxu0 0.0
        %2669 = vmatpush2.msra.mxu0 0.0
        %2670 = vmatprep.subr.mxu0 0.0
        %2671 = vmatpush2.msra.mxu0 0.0
        %2672 = vmatprep.subr.mxu0 0.0
        %2673 = vmatpush2.msra.mxu0 0.0
        %2674 = vmatprep.subr.mxu0 0.0
        %2675 = vmatpush2.msra.mxu0 0.0
        %2676 = vmatprep.subr.mxu0 0.0
        %2677 = vmatpush2.msra.mxu0 0.0
        %2678 = vmatprep.subr.mxu0 0.0
        %2679 = vmatpush2.msra.mxu0 0.0
        %2680 = vmatprep.subr.mxu0 0.0
        %2681 = vmatpush2.msra.mxu0 0.0
        %2682 = vmatprep.subr.mxu0 0.0
        %2683 = vmatpush2.msra.mxu0 0.0
        %2684 = vmatprep.subr.mxu0 0.0
        %2685 = vmatpush2.msra.mxu0 0.0
        %2686 = vmatprep.subr.mxu0 0.0
        %2687 = vmatpush2.msra.mxu0 0.0
        %2688 = vmatprep.subr.mxu0 0.0
        %2689 = vmatpush2.msra.mxu0 0.0
        %2690 = vmatprep.subr.mxu0 0.0
        %2691 = vmatpush2.msra.mxu0 0.0
        %2692 = vmatprep.subr.mxu0 0.0
        %2693 = vmatpush2.msra.mxu0 0.0
        %2694 = vmatprep.subr.mxu0 0.0
        %2695 = vmatpush2.msra.mxu0 0.0
        %2696 = vmatprep.subr.mxu0 0.0
        %2697 = vmatpush2.msra.mxu0 0.0
        %2698 = vmatprep.mubr.f32.mxu0 0.0
        %2699 = vmatmul.mubr.f32.gmra.mxu0 %v2321
        %v2700 = vpop.f32.mrf.mxu0
        %v2701 = vadd.f32 %v2275, %v2700
        %v2702 = vpop.f32.mrf.mxu0
        %v2703 = vadd.f32 %v2279, %v2702
        %2704 = vmatprep.mubr.f32.mxu0 0.0
        %2705 = vmatmul.mubr.f32.gmra.mxu0 %v2324
        %v2706 = vpop.f32.mrf.mxu0
        %v2707 = vadd.f32 %v2275, %v2706
        %v2708 = vpop.f32.mrf.mxu0
        %v2709 = vadd.f32 %v2279, %v2708
        %2710 = vdwg.mxu0
        %2711 = vmatprep.subr.mxu0 0.0
        %2712 = vmatpush1.msra.mxu0 0.0
        %2713 = vmatprep.subr.mxu0 0.0
        %2714 = vmatpush1.msra.mxu0 0.0
        %2715 = vmatprep.subr.mxu0 0.0
        %2716 = vmatpush1.msra.mxu0 0.0
        %2717 = vmatprep.subr.mxu0 0.0
        %2718 = vmatpush1.msra.mxu0 0.0
        %2719 = vmatprep.subr.mxu0 0.0
        %2720 = vmatpush1.msra.mxu0 0.0
        %2721 = vmatprep.subr.mxu0 0.0
        %2722 = vmatpush1.msra.mxu0 0.0
        %2723 = vmatprep.subr.mxu0 0.0
        %2724 = vmatpush1.msra.mxu0 0.0
        %2725 = vmatprep.subr.mxu0 0.0
        %2726 = vmatpush1.msra.mxu0 0.0
        %2727 = vmatprep.subr.mxu0 0.0
        %2728 = vmatpush1.msra.mxu0 0.0
        %2729 = vmatprep.subr.mxu0 0.0
        %2730 = vmatpush1.msra.mxu0 0.0
        %2731 = vmatprep.subr.mxu0 0.0
        %2732 = vmatpush1.msra.mxu0 0.0
        %2733 = vmatprep.subr.mxu0 0.0
        %2734 = vmatpush1.msra.mxu0 0.0
        %2735 = vmatprep.subr.mxu0 %v2231
        %2736 = vmatpush1.msra.mxu0 %v2230
        %2737 = vmatprep.subr.mxu0 %v2215
        %2738 = vmatpush1.msra.mxu0 %v2214
        %2739 = vmatprep.subr.mxu0 %v2199
        %2740 = vmatpush1.msra.mxu0 %v2198
        %2741 = vmatprep.subr.mxu0 %v2183
        %2742 = vmatpush1.msra.mxu0 %v2182
        %2743 = vmatprep.subr.mxu0 0.0
        %2744 = vmatpush2.msra.mxu0 0.0
        %2745 = vmatprep.subr.mxu0 0.0
        %2746 = vmatpush2.msra.mxu0 0.0
        %2747 = vmatprep.subr.mxu0 0.0
        %2748 = vmatpush2.msra.mxu0 0.0
        %2749 = vmatprep.subr.mxu0 0.0
        %2750 = vmatpush2.msra.mxu0 0.0
        %2751 = vmatprep.subr.mxu0 0.0
        %2752 = vmatpush2.msra.mxu0 0.0
        %2753 = vmatprep.subr.mxu0 0.0
        %2754 = vmatpush2.msra.mxu0 0.0
        %2755 = vmatprep.subr.mxu0 0.0
        %2756 = vmatpush2.msra.mxu0 0.0
        %2757 = vmatprep.subr.mxu0 0.0
        %2758 = vmatpush2.msra.mxu0 0.0
        %2759 = vmatprep.subr.mxu0 0.0
        %2760 = vmatpush2.msra.mxu0 0.0
        %2761 = vmatprep.subr.mxu0 0.0
        %2762 = vmatpush2.msra.mxu0 0.0
        %2763 = vmatprep.subr.mxu0 0.0
        %2764 = vmatpush2.msra.mxu0 0.0
        %2765 = vmatprep.subr.mxu0 0.0
        %2766 = vmatpush2.msra.mxu0 0.0
        %2767 = vmatprep.subr.mxu0 0.0
        %2768 = vmatpush2.msra.mxu0 0.0
        %2769 = vmatprep.subr.mxu0 0.0
        %2770 = vmatpush2.msra.mxu0 0.0
        %2771 = vmatprep.subr.mxu0 0.0
        %2772 = vmatpush2.msra.mxu0 0.0
        %2773 = vmatprep.subr.mxu0 0.0
        %2774 = vmatpush2.msra.mxu0 0.0
        %2775 = vmatprep.mubr.f32.mxu0 0.0
        %2776 = vmatmul.mubr.f32.gmra.mxu0 %v2321
        %v2777 = vpop.f32.mrf.mxu0
        %v2778 = vadd.f32 %v2283, %v2777
        %v2779 = vpop.f32.mrf.mxu0
        %v2780 = vadd.f32 %v2287, %v2779
        %2781 = vmatprep.mubr.f32.mxu0 0.0
        %2782 = vmatmul.mubr.f32.gmra.mxu0 %v2324
        %v2783 = vpop.f32.mrf.mxu0
        %v2784 = vadd.f32 %v2283, %v2783
        %v2785 = vpop.f32.mrf.mxu0
        %v2786 = vadd.f32 %v2287, %v2785
        %2787 = vdwg.mxu0
        %2788 = vmatprep.subr.mxu0 0.0
        %2789 = vmatpush1.msra.mxu0 0.0
        %2790 = vmatprep.subr.mxu0 0.0
        %2791 = vmatpush1.msra.mxu0 0.0
        %2792 = vmatprep.subr.mxu0 0.0
        %2793 = vmatpush1.msra.mxu0 0.0
        %2794 = vmatprep.subr.mxu0 0.0
        %2795 = vmatpush1.msra.mxu0 0.0
        %2796 = vmatprep.subr.mxu0 0.0
        %2797 = vmatpush1.msra.mxu0 0.0
        %2798 = vmatprep.subr.mxu0 0.0
        %2799 = vmatpush1.msra.mxu0 0.0
        %2800 = vmatprep.subr.mxu0 0.0
        %2801 = vmatpush1.msra.mxu0 0.0
        %2802 = vmatprep.subr.mxu0 0.0
        %2803 = vmatpush1.msra.mxu0 0.0
        %2804 = vmatprep.subr.mxu0 0.0
        %2805 = vmatpush1.msra.mxu0 0.0
        %2806 = vmatprep.subr.mxu0 0.0
        %2807 = vmatpush1.msra.mxu0 0.0
        %2808 = vmatprep.subr.mxu0 0.0
        %2809 = vmatpush1.msra.mxu0 0.0
        %2810 = vmatprep.subr.mxu0 0.0
        %2811 = vmatpush1.msra.mxu0 0.0
        %2812 = vmatprep.subr.mxu0 %v2233
        %2813 = vmatpush1.msra.mxu0 %v2232
        %2814 = vmatprep.subr.mxu0 %v2217
        %2815 = vmatpush1.msra.mxu0 %v2216
        %2816 = vmatprep.subr.mxu0 %v2201
        %2817 = vmatpush1.msra.mxu0 %v2200
        %2818 = vmatprep.subr.mxu0 %v2185
        %2819 = vmatpush1.msra.mxu0 %v2184
        %2820 = vmatprep.subr.mxu0 0.0
        %2821 = vmatpush2.msra.mxu0 0.0
        %2822 = vmatprep.subr.mxu0 0.0
        %2823 = vmatpush2.msra.mxu0 0.0
        %2824 = vmatprep.subr.mxu0 0.0
        %2825 = vmatpush2.msra.mxu0 0.0
        %2826 = vmatprep.subr.mxu0 0.0
        %2827 = vmatpush2.msra.mxu0 0.0
        %2828 = vmatprep.subr.mxu0 0.0
        %2829 = vmatpush2.msra.mxu0 0.0
        %2830 = vmatprep.subr.mxu0 0.0
        %2831 = vmatpush2.msra.mxu0 0.0
        %2832 = vmatprep.subr.mxu0 0.0
        %2833 = vmatpush2.msra.mxu0 0.0
        %2834 = vmatprep.subr.mxu0 0.0
        %2835 = vmatpush2.msra.mxu0 0.0
        %2836 = vmatprep.subr.mxu0 0.0
        %2837 = vmatpush2.msra.mxu0 0.0
        %2838 = vmatprep.subr.mxu0 0.0
        %2839 = vmatpush2.msra.mxu0 0.0
        %2840 = vmatprep.subr.mxu0 0.0
        %2841 = vmatpush2.msra.mxu0 0.0
        %2842 = vmatprep.subr.mxu0 0.0
        %2843 = vmatpush2.msra.mxu0 0.0
        %2844 = vmatprep.subr.mxu0 0.0
        %2845 = vmatpush2.msra.mxu0 0.0
        %2846 = vmatprep.subr.mxu0 0.0
        %2847 = vmatpush2.msra.mxu0 0.0
        %2848 = vmatprep.subr.mxu0 0.0
        %2849 = vmatpush2.msra.mxu0 0.0
        %2850 = vmatprep.subr.mxu0 0.0
        %2851 = vmatpush2.msra.mxu0 0.0
        %2852 = vmatprep.mubr.f32.mxu0 0.0
        %2853 = vmatmul.mubr.f32.gmra.mxu0 %v2321
        %v2854 = vpop.f32.mrf.mxu0
        %v2855 = vadd.f32 %v2291, %v2854
        %v2856 = vpop.f32.mrf.mxu0
        %v2857 = vadd.f32 %v2295, %v2856
        %2858 = vmatprep.mubr.f32.mxu0 0.0
        %2859 = vmatmul.mubr.f32.gmra.mxu0 %v2324
        %v2860 = vpop.f32.mrf.mxu0
        %v2861 = vadd.f32 %v2291, %v2860
        %v2862 = vpop.f32.mrf.mxu0
        %v2863 = vadd.f32 %v2295, %v2862
        %2864 = vdwg.mxu0
        %2865 = vmatprep.subr.mxu0 0.0
        %2866 = vmatpush1.msra.mxu0 0.0
        %2867 = vmatprep.subr.mxu0 0.0
        %2868 = vmatpush1.msra.mxu0 0.0
        %2869 = vmatprep.subr.mxu0 0.0
        %2870 = vmatpush1.msra.mxu0 0.0
        %2871 = vmatprep.subr.mxu0 0.0
        %2872 = vmatpush1.msra.mxu0 0.0
        %2873 = vmatprep.subr.mxu0 0.0
        %2874 = vmatpush1.msra.mxu0 0.0
        %2875 = vmatprep.subr.mxu0 0.0
        %2876 = vmatpush1.msra.mxu0 0.0
        %2877 = vmatprep.subr.mxu0 0.0
        %2878 = vmatpush1.msra.mxu0 0.0
        %2879 = vmatprep.subr.mxu0 0.0
        %2880 = vmatpush1.msra.mxu0 0.0
        %2881 = vmatprep.subr.mxu0 0.0
        %2882 = vmatpush1.msra.mxu0 0.0
        %2883 = vmatprep.subr.mxu0 0.0
        %2884 = vmatpush1.msra.mxu0 0.0
        %2885 = vmatprep.subr.mxu0 0.0
        %2886 = vmatpush1.msra.mxu0 0.0
        %2887 = vmatprep.subr.mxu0 0.0
        %2888 = vmatpush1.msra.mxu0 0.0
        %2889 = vmatprep.subr.mxu0 %v2235
        %2890 = vmatpush1.msra.mxu0 %v2234
        %2891 = vmatprep.subr.mxu0 %v2219
        %2892 = vmatpush1.msra.mxu0 %v2218
        %2893 = vmatprep.subr.mxu0 %v2203
        %2894 = vmatpush1.msra.mxu0 %v2202
        %2895 = vmatprep.subr.mxu0 %v2187
        %2896 = vmatpush1.msra.mxu0 %v2186
        %2897 = vmatprep.subr.mxu0 0.0
        %2898 = vmatpush2.msra.mxu0 0.0
        %2899 = vmatprep.subr.mxu0 0.0
        %2900 = vmatpush2.msra.mxu0 0.0
        %2901 = vmatprep.subr.mxu0 0.0
        %2902 = vmatpush2.msra.mxu0 0.0
        %2903 = vmatprep.subr.mxu0 0.0
        %2904 = vmatpush2.msra.mxu0 0.0
        %2905 = vmatprep.subr.mxu0 0.0
        %2906 = vmatpush2.msra.mxu0 0.0
        %2907 = vmatprep.subr.mxu0 0.0
        %2908 = vmatpush2.msra.mxu0 0.0
        %2909 = vmatprep.subr.mxu0 0.0
        %2910 = vmatpush2.msra.mxu0 0.0
        %2911 = vmatprep.subr.mxu0 0.0
        %2912 = vmatpush2.msra.mxu0 0.0
        %2913 = vmatprep.subr.mxu0 0.0
        %2914 = vmatpush2.msra.mxu0 0.0
        %2915 = vmatprep.subr.mxu0 0.0
        %2916 = vmatpush2.msra.mxu0 0.0
        %2917 = vmatprep.subr.mxu0 0.0
        %2918 = vmatpush2.msra.mxu0 0.0
        %2919 = vmatprep.subr.mxu0 0.0
        %2920 = vmatpush2.msra.mxu0 0.0
        %2921 = vmatprep.subr.mxu0 0.0
        %2922 = vmatpush2.msra.mxu0 0.0
        %2923 = vmatprep.subr.mxu0 0.0
        %2924 = vmatpush2.msra.mxu0 0.0
        %2925 = vmatprep.subr.mxu0 0.0
        %2926 = vmatpush2.msra.mxu0 0.0
        %2927 = vmatprep.subr.mxu0 0.0
        %2928 = vmatpush2.msra.mxu0 0.0
        %2929 = vmatprep.mubr.f32.mxu0 0.0
        %2930 = vmatmul.mubr.f32.gmra.mxu0 %v2321
        %v2931 = vpop.f32.mrf.mxu0
        %v2932 = vadd.f32 %v2299, %v2931
        %v2933 = vpop.f32.mrf.mxu0
        %v2934 = vadd.f32 %v2303, %v2933
        %2935 = vmatprep.mubr.f32.mxu0 0.0
        %2936 = vmatmul.mubr.f32.gmra.mxu0 %v2324
        %v2937 = vpop.f32.mrf.mxu0
        %v2938 = vadd.f32 %v2299, %v2937
        %v2939 = vpop.f32.mrf.mxu0
        %v2940 = vadd.f32 %v2303, %v2939
        %2941 = vdwg.mxu0
        %v2942 = vmax.f32 %v2393, 0.0
        %v2943 = vmax.f32 %v2395, 0.0
        %v2944 = vmax.f32 %v2470, 0.0
        %v2945 = vmax.f32 %v2472, 0.0
        %v2946 = vmax.f32 %v2547, 0.0
        %v2947 = vmax.f32 %v2549, 0.0
        %v2948 = vmax.f32 %v2624, 0.0
        %v2949 = vmax.f32 %v2626, 0.0
        %v2950 = vmax.f32 %v2701, 0.0
        %v2951 = vmax.f32 %v2703, 0.0
        %v2952 = vmax.f32 %v2778, 0.0
        %v2953 = vmax.f32 %v2780, 0.0
        %v2954 = vmax.f32 %v2855, 0.0
        %v2955 = vmax.f32 %v2857, 0.0
        %v2956 = vmax.f32 %v2932, 0.0
        %v2957 = vmax.f32 %v2934, 0.0
        %v2958 = vmax.f32 %v2399, 0.0
        %v2959 = vmax.f32 %v2401, 0.0
        %v2960 = vmax.f32 %v2476, 0.0
        %v2961 = vmax.f32 %v2478, 0.0
        %v2962 = vmax.f32 %v2553, 0.0
        %v2963 = vmax.f32 %v2555, 0.0
        %v2964 = vmax.f32 %v2630, 0.0
        %v2965 = vmax.f32 %v2632, 0.0
        %v2966 = vmax.f32 %v2707, 0.0
        %v2967 = vmax.f32 %v2709, 0.0
        %v2968 = vmax.f32 %v2784, 0.0
        %v2969 = vmax.f32 %v2786, 0.0
        %v2970 = vmax.f32 %v2861, 0.0
        %v2971 = vmax.f32 %v2863, 0.0
        %v2972 = vmax.f32 %v2938, 0.0
        %v2973 = vmax.f32 %v2940, 0.0
        %v2974 = vld [vmem:[%s12] sm:$0xff]
        %v2975 = vld [vmem:[%s12 + $0x8] sm:$0xff]
        %v2976 = vld [vmem:[%s12 + $0x10] sm:$0xff]
        %v2977 = vld [vmem:[%s12 + $0x18] sm:$0xff]
        %v2978 = vld [vmem:[%s12 + $0x20] sm:$0xff]
        %v2979 = vld [vmem:[%s12 + $0x28] sm:$0xff]
        %v2980 = vld [vmem:[%s12 + $0x30] sm:$0xff]
        %v2981 = vld [vmem:[%s12 + $0x38] sm:$0xff]
        %v2982 = vld [vmem:[%s12 + $0x40] sm:$0xff]
        %v2983 = vld [vmem:[%s12 + $0x48] sm:$0xff]
        %v2984 = vld [vmem:[%s12 + $0x50] sm:$0xff]
        %v2985 = vld [vmem:[%s12 + $0x58] sm:$0xff]
        %v2986 = vld [vmem:[%s12 + $0x60] sm:$0xff]
        %v2987 = vld [vmem:[%s12 + $0x68] sm:$0xff]
        %v2988 = vld [vmem:[%s12 + $0x70] sm:$0xff]
        %v2989 = vld [vmem:[%s12 + $0x78] sm:$0xff]
        %v2990 = vld [vmem:[%s12 + $0x80] sm:$0xff]
        %v2991 = vld [vmem:[%s12 + $0x88] sm:$0xff]
        %v2992 = vld [vmem:[%s12 + $0x90] sm:$0xff]
        %v2993 = vld [vmem:[%s12 + $0x98] sm:$0xff]
        %v2994 = vld [vmem:[%s12 + $0xa0] sm:$0xff]
        %v2995 = vld [vmem:[%s12 + $0xa8] sm:$0xff]
        %v2996 = vld [vmem:[%s12 + $0xb0] sm:$0xff]
        %v2997 = vld [vmem:[%s12 + $0xb8] sm:$0xff]
        %v2998 = vld [vmem:[%s12 + $0xc0] sm:$0xff]
        %v2999 = vld [vmem:[%s12 + $0xc8] sm:$0xff]
        %v3000 = vld [vmem:[%s12 + $0xd0] sm:$0xff]
        %v3001 = vld [vmem:[%s12 + $0xd8] sm:$0xff]
        %v3002 = vld [vmem:[%s12 + $0xe0] sm:$0xff]
        %v3003 = vld [vmem:[%s12 + $0xe8] sm:$0xff]
        %v3004 = vld [vmem:[%s12 + $0xf0] sm:$0xff]
        %v3005 = vld [vmem:[%s12 + $0xf8] sm:$0xff]
        %v3006 = vld [vmem:[%s12 + $0x100] sm:$0xff]
        %v3007 = vld [vmem:[%s12 + $0x108] sm:$0xff]
        %v3008 = vld [vmem:[%s12 + $0x110] sm:$0xff]
        %v3009 = vld [vmem:[%s12 + $0x118] sm:$0xff]
        %v3010 = vld [vmem:[%s12 + $0x120] sm:$0xff]
        %v3011 = vld [vmem:[%s12 + $0x128] sm:$0xff]
        %v3012 = vld [vmem:[%s12 + $0x130] sm:$0xff]
        %v3013 = vld [vmem:[%s12 + $0x138] sm:$0xff]
        %v3014 = vld [vmem:[%s12 + $0x140] sm:$0xff]
        %v3015 = vld [vmem:[%s12 + $0x148] sm:$0xff]
        %v3016 = vld [vmem:[%s12 + $0x150] sm:$0xff]
        %v3017 = vld [vmem:[%s12 + $0x158] sm:$0xff]
        %v3018 = vld [vmem:[%s12 + $0x160] sm:$0xff]
        %v3019 = vld [vmem:[%s12 + $0x168] sm:$0xff]
        %v3020 = vld [vmem:[%s12 + $0x170] sm:$0xff]
        %v3021 = vld [vmem:[%s12 + $0x178] sm:$0xff]
        %v3022 = vld [vmem:[%s12 + $0x180] sm:$0xff]
        %v3023 = vld [vmem:[%s12 + $0x188] sm:$0xff]
        %v3024 = vld [vmem:[%s12 + $0x190] sm:$0xff]
        %v3025 = vld [vmem:[%s12 + $0x198] sm:$0xff]
        %v3026 = vld [vmem:[%s12 + $0x1a0] sm:$0xff]
        %v3027 = vld [vmem:[%s12 + $0x1a8] sm:$0xff]
        %v3028 = vld [vmem:[%s12 + $0x1b0] sm:$0xff]
        %v3029 = vld [vmem:[%s12 + $0x1b8] sm:$0xff]
        %v3030 = vld [vmem:[%s12 + $0x1c0] sm:$0xff]
        %v3031 = vld [vmem:[%s12 + $0x1c8] sm:$0xff]
        %v3032 = vld [vmem:[%s12 + $0x1d0] sm:$0xff]
        %v3033 = vld [vmem:[%s12 + $0x1d8] sm:$0xff]
        %v3034 = vld [vmem:[%s12 + $0x1e0] sm:$0xff]
        %v3035 = vld [vmem:[%s12 + $0x1e8] sm:$0xff]
        %v3036 = vld [vmem:[%s12 + $0x1f0] sm:$0xff]
        %v3037 = vld [vmem:[%s12 + $0x1f8] sm:$0xff]
        %v3038 = vld [vmem:[%s12 + $0x200] sm:$0xff]
        %v3039 = vld [vmem:[%s12 + $0x208] sm:$0xff]
        %v3040 = vld [vmem:[%s12 + $0x210] sm:$0xff]
        %v3041 = vld [vmem:[%s12 + $0x218] sm:$0xff]
        %v3042 = vld [vmem:[%s12 + $0x220] sm:$0xff]
        %v3043 = vld [vmem:[%s12 + $0x228] sm:$0xff]
        %v3044 = vld [vmem:[%s12 + $0x230] sm:$0xff]
        %v3045 = vld [vmem:[%s12 + $0x238] sm:$0xff]
        %v3046 = vld [vmem:[%s12 + $0x240] sm:$0xff]
        %v3047 = vld [vmem:[%s12 + $0x248] sm:$0xff]
        %v3048 = vld [vmem:[%s12 + $0x250] sm:$0xff]
        %v3049 = vld [vmem:[%s12 + $0x258] sm:$0xff]
        %v3050 = vld [vmem:[%s12 + $0x260] sm:$0xff]
        %v3051 = vld [vmem:[%s12 + $0x268] sm:$0xff]
        %v3052 = vld [vmem:[%s12 + $0x270] sm:$0xff]
        %v3053 = vld [vmem:[%s12 + $0x278] sm:$0xff]
        %v3054 = vld [vmem:[%s12 + $0x280] sm:$0xff]
        %v3055 = vld [vmem:[%s12 + $0x288] sm:$0xff]
        %v3056 = vld [vmem:[%s12 + $0x290] sm:$0xff]
        %v3057 = vld [vmem:[%s12 + $0x298] sm:$0xff]
        %v3058 = vld [vmem:[%s12 + $0x2a0] sm:$0xff]
        %v3059 = vld [vmem:[%s12 + $0x2a8] sm:$0xff]
        %v3060 = vld [vmem:[%s12 + $0x2b0] sm:$0xff]
        %v3061 = vld [vmem:[%s12 + $0x2b8] sm:$0xff]
        %v3062 = vld [vmem:[%s12 + $0x2c0] sm:$0xff]
        %v3063 = vld [vmem:[%s12 + $0x2c8] sm:$0xff]
        %v3064 = vld [vmem:[%s12 + $0x2d0] sm:$0xff]
        %v3065 = vld [vmem:[%s12 + $0x2d8] sm:$0xff]
        %v3066 = vld [vmem:[%s12 + $0x2e0] sm:$0xff]
        %v3067 = vld [vmem:[%s12 + $0x2e8] sm:$0xff]
        %v3068 = vld [vmem:[%s12 + $0x2f0] sm:$0xff]
        %v3069 = vld [vmem:[%s12 + $0x2f8] sm:$0xff]
        %v3070 = vld [vmem:[%s12 + $0x300] sm:$0xff]
        %v3071 = vld [vmem:[%s12 + $0x308] sm:$0xff]
        %v3072 = vld [vmem:[%s12 + $0x310] sm:$0xff]
        %v3073 = vld [vmem:[%s12 + $0x318] sm:$0xff]
        %v3074 = vld [vmem:[%s12 + $0x320] sm:$0xff]
        %v3075 = vld [vmem:[%s12 + $0x328] sm:$0xff]
        %v3076 = vld [vmem:[%s12 + $0x330] sm:$0xff]
        %v3077 = vld [vmem:[%s12 + $0x338] sm:$0xff]
        %v3078 = vld [vmem:[%s12 + $0x340] sm:$0xff]
        %v3079 = vld [vmem:[%s12 + $0x348] sm:$0xff]
        %v3080 = vld [vmem:[%s12 + $0x350] sm:$0xff]
        %v3081 = vld [vmem:[%s12 + $0x358] sm:$0xff]
        %v3082 = vld [vmem:[%s12 + $0x360] sm:$0xff]
        %v3083 = vld [vmem:[%s12 + $0x368] sm:$0xff]
        %v3084 = vld [vmem:[%s12 + $0x370] sm:$0xff]
        %v3085 = vld [vmem:[%s12 + $0x378] sm:$0xff]
        %v3086 = vld [vmem:[%s12 + $0x380] sm:$0xff]
        %v3087 = vld [vmem:[%s12 + $0x388] sm:$0xff]
        %v3088 = vld [vmem:[%s12 + $0x390] sm:$0xff]
        %v3089 = vld [vmem:[%s12 + $0x398] sm:$0xff]
        %v3090 = vld [vmem:[%s12 + $0x3a0] sm:$0xff]
        %v3091 = vld [vmem:[%s12 + $0x3a8] sm:$0xff]
        %v3092 = vld [vmem:[%s12 + $0x3b0] sm:$0xff]
        %v3093 = vld [vmem:[%s12 + $0x3b8] sm:$0xff]
        %v3094 = vld [vmem:[%s12 + $0x3c0] sm:$0xff]
        %v3095 = vld [vmem:[%s12 + $0x3c8] sm:$0xff]
        %v3096 = vld [vmem:[%s12 + $0x3d0] sm:$0xff]
        %v3097 = vld [vmem:[%s12 + $0x3d8] sm:$0xff]
        %v3098 = vld [vmem:[%s12 + $0x3e0] sm:$0xff]
        %v3099 = vld [vmem:[%s12 + $0x3e8] sm:$0xff]
        %v3100 = vld [vmem:[%s12 + $0x3f0] sm:$0xff]
        %v3101 = vld [vmem:[%s12 + $0x3f8] sm:$0xff]
        %v3102 = vld [vmem:[%s12 + $0x400] sm:$0xff]
        %v3103 = vld [vmem:[%s12 + $0x408] sm:$0xff]
        %v3104 = vld [vmem:[%s12 + $0x410] sm:$0xff]
        %v3105 = vld [vmem:[%s12 + $0x418] sm:$0xff]
        %v3106 = vld [vmem:[%s12 + $0x420] sm:$0xff]
        %v3107 = vld [vmem:[%s12 + $0x428] sm:$0xff]
        %v3108 = vld [vmem:[%s12 + $0x430] sm:$0xff]
        %v3109 = vld [vmem:[%s12 + $0x438] sm:$0xff]
        %v3110 = vld [vmem:[%s12 + $0x440] sm:$0xff]
        %v3111 = vld [vmem:[%s12 + $0x448] sm:$0xff]
        %v3112 = vld [vmem:[%s12 + $0x450] sm:$0xff]
        %v3113 = vld [vmem:[%s12 + $0x458] sm:$0xff]
        %v3114 = vld [vmem:[%s12 + $0x460] sm:$0xff]
        %v3115 = vld [vmem:[%s12 + $0x468] sm:$0xff]
        %v3116 = vld [vmem:[%s12 + $0x470] sm:$0xff]
        %v3117 = vld [vmem:[%s12 + $0x478] sm:$0xff]
        %v3118 = vld [vmem:[%s12 + $0x480] sm:$0xff]
        %v3119 = vld [vmem:[%s12 + $0x488] sm:$0xff]
        %v3120 = vld [vmem:[%s12 + $0x490] sm:$0xff]
        %v3121 = vld [vmem:[%s12 + $0x498] sm:$0xff]
        %v3122 = vld [vmem:[%s12 + $0x4a0] sm:$0xff]
        %v3123 = vld [vmem:[%s12 + $0x4a8] sm:$0xff]
        %v3124 = vld [vmem:[%s12 + $0x4b0] sm:$0xff]
        %v3125 = vld [vmem:[%s12 + $0x4b8] sm:$0xff]
        %v3126 = vld [vmem:[%s12 + $0x4c0] sm:$0xff]
        %v3127 = vld [vmem:[%s12 + $0x4c8] sm:$0xff]
        %v3128 = vld [vmem:[%s12 + $0x4d0] sm:$0xff]
        %v3129 = vld [vmem:[%s12 + $0x4d8] sm:$0xff]
        %v3130 = vld [vmem:[%s12 + $0x4e0] sm:$0xff]
        %v3131 = vld [vmem:[%s12 + $0x4e8] sm:$0xff]
        %v3132 = vld [vmem:[%s12 + $0x4f0] sm:$0xff]
        %v3133 = vld [vmem:[%s12 + $0x4f8] sm:$0xff]
        %v3134 = vld [vmem:[%s12 + $0x500] sm:$0xff]
        %v3135 = vld [vmem:[%s12 + $0x508] sm:$0xff]
        %v3136 = vld [vmem:[%s12 + $0x510] sm:$0xff]
        %v3137 = vld [vmem:[%s12 + $0x518] sm:$0xff]
        %v3138 = vld [vmem:[%s12 + $0x520] sm:$0xff]
        %v3139 = vld [vmem:[%s12 + $0x528] sm:$0xff]
        %v3140 = vld [vmem:[%s12 + $0x530] sm:$0xff]
        %v3141 = vld [vmem:[%s12 + $0x538] sm:$0xff]
        %v3142 = vld [vmem:[%s12 + $0x540] sm:$0xff]
        %v3143 = vld [vmem:[%s12 + $0x548] sm:$0xff]
        %v3144 = vld [vmem:[%s12 + $0x550] sm:$0xff]
        %v3145 = vld [vmem:[%s12 + $0x558] sm:$0xff]
        %v3146 = vld [vmem:[%s12 + $0x560] sm:$0xff]
        %v3147 = vld [vmem:[%s12 + $0x568] sm:$0xff]
        %v3148 = vld [vmem:[%s12 + $0x570] sm:$0xff]
        %v3149 = vld [vmem:[%s12 + $0x578] sm:$0xff]
        %v3150 = vld [vmem:[%s12 + $0x580] sm:$0xff]
        %v3151 = vld [vmem:[%s12 + $0x588] sm:$0xff]
        %v3152 = vld [vmem:[%s12 + $0x590] sm:$0xff]
        %v3153 = vld [vmem:[%s12 + $0x598] sm:$0xff]
        %v3154 = vld [vmem:[%s12 + $0x5a0] sm:$0xff]
        %v3155 = vld [vmem:[%s12 + $0x5a8] sm:$0xff]
        %v3156 = vld [vmem:[%s12 + $0x5b0] sm:$0xff]
        %v3157 = vld [vmem:[%s12 + $0x5b8] sm:$0xff]
        %v3158 = vld [vmem:[%s12 + $0x5c0] sm:$0xff]
        %v3159 = vld [vmem:[%s12 + $0x5c8] sm:$0xff]
        %v3160 = vld [vmem:[%s12 + $0x5d0] sm:$0xff]
        %v3161 = vld [vmem:[%s12 + $0x5d8] sm:$0xff]
        %v3162 = vld [vmem:[%s12 + $0x5e0] sm:$0xff]
        %v3163 = vld [vmem:[%s12 + $0x5e8] sm:$0xff]
        %v3164 = vld [vmem:[%s12 + $0x5f0] sm:$0xff]
        %v3165 = vld [vmem:[%s12 + $0x5f8] sm:$0xff]
        %v3166 = vld [vmem:[%s12 + $0x600] sm:$0xff]
        %v3167 = vld [vmem:[%s12 + $0x608] sm:$0xff]
        %v3168 = vld [vmem:[%s12 + $0x610] sm:$0xff]
        %v3169 = vld [vmem:[%s12 + $0x618] sm:$0xff]
        %v3170 = vld [vmem:[%s12 + $0x620] sm:$0xff]
        %v3171 = vld [vmem:[%s12 + $0x628] sm:$0xff]
        %v3172 = vld [vmem:[%s12 + $0x630] sm:$0xff]
        %v3173 = vld [vmem:[%s12 + $0x638] sm:$0xff]
        %v3174 = vld [vmem:[%s12 + $0x640] sm:$0xff]
        %v3175 = vld [vmem:[%s12 + $0x648] sm:$0xff]
        %v3176 = vld [vmem:[%s12 + $0x650] sm:$0xff]
        %v3177 = vld [vmem:[%s12 + $0x658] sm:$0xff]
        %v3178 = vld [vmem:[%s12 + $0x660] sm:$0xff]
        %v3179 = vld [vmem:[%s12 + $0x668] sm:$0xff]
        %v3180 = vld [vmem:[%s12 + $0x670] sm:$0xff]
        %v3181 = vld [vmem:[%s12 + $0x678] sm:$0xff]
        %v3182 = vld [vmem:[%s12 + $0x680] sm:$0xff]
        %v3183 = vld [vmem:[%s12 + $0x688] sm:$0xff]
        %v3184 = vld [vmem:[%s12 + $0x690] sm:$0xff]
        %v3185 = vld [vmem:[%s12 + $0x698] sm:$0xff]
        %v3186 = vld [vmem:[%s12 + $0x6a0] sm:$0xff]
        %v3187 = vld [vmem:[%s12 + $0x6a8] sm:$0xff]
        %v3188 = vld [vmem:[%s12 + $0x6b0] sm:$0xff]
        %v3189 = vld [vmem:[%s12 + $0x6b8] sm:$0xff]
        %v3190 = vld [vmem:[%s12 + $0x6c0] sm:$0xff]
        %v3191 = vld [vmem:[%s12 + $0x6c8] sm:$0xff]
        %v3192 = vld [vmem:[%s12 + $0x6d0] sm:$0xff]
        %v3193 = vld [vmem:[%s12 + $0x6d8] sm:$0xff]
        %v3194 = vld [vmem:[%s12 + $0x6e0] sm:$0xff]
        %v3195 = vld [vmem:[%s12 + $0x6e8] sm:$0xff]
        %v3196 = vld [vmem:[%s12 + $0x6f0] sm:$0xff]
        %v3197 = vld [vmem:[%s12 + $0x6f8] sm:$0xff]
        %v3198 = vld [vmem:[%s12 + $0x700] sm:$0xff]
        %v3199 = vld [vmem:[%s12 + $0x708] sm:$0xff]
        %v3200 = vld [vmem:[%s12 + $0x710] sm:$0xff]
        %v3201 = vld [vmem:[%s12 + $0x718] sm:$0xff]
        %v3202 = vld [vmem:[%s12 + $0x720] sm:$0xff]
        %v3203 = vld [vmem:[%s12 + $0x728] sm:$0xff]
        %v3204 = vld [vmem:[%s12 + $0x730] sm:$0xff]
        %v3205 = vld [vmem:[%s12 + $0x738] sm:$0xff]
        %v3206 = vld [vmem:[%s12 + $0x740] sm:$0xff]
        %v3207 = vld [vmem:[%s12 + $0x748] sm:$0xff]
        %v3208 = vld [vmem:[%s12 + $0x750] sm:$0xff]
        %v3209 = vld [vmem:[%s12 + $0x758] sm:$0xff]
        %v3210 = vld [vmem:[%s12 + $0x760] sm:$0xff]
        %v3211 = vld [vmem:[%s12 + $0x768] sm:$0xff]
        %v3212 = vld [vmem:[%s12 + $0x770] sm:$0xff]
        %v3213 = vld [vmem:[%s12 + $0x778] sm:$0xff]
        %v3214 = vld [vmem:[%s12 + $0x780] sm:$0xff]
        %v3215 = vld [vmem:[%s12 + $0x788] sm:$0xff]
        %v3216 = vld [vmem:[%s12 + $0x790] sm:$0xff]
        %v3217 = vld [vmem:[%s12 + $0x798] sm:$0xff]
        %v3218 = vld [vmem:[%s12 + $0x7a0] sm:$0xff]
        %v3219 = vld [vmem:[%s12 + $0x7a8] sm:$0xff]
        %v3220 = vld [vmem:[%s12 + $0x7b0] sm:$0xff]
        %v3221 = vld [vmem:[%s12 + $0x7b8] sm:$0xff]
        %v3222 = vld [vmem:[%s12 + $0x7c0] sm:$0xff]
        %v3223 = vld [vmem:[%s12 + $0x7c8] sm:$0xff]
        %v3224 = vld [vmem:[%s12 + $0x7d0] sm:$0xff]
        %v3225 = vld [vmem:[%s12 + $0x7d8] sm:$0xff]
        %v3226 = vld [vmem:[%s12 + $0x7e0] sm:$0xff]
        %v3227 = vld [vmem:[%s12 + $0x7e8] sm:$0xff]
        %v3228 = vld [vmem:[%s12 + $0x7f0] sm:$0xff]
        %v3229 = vld [vmem:[%s12 + $0x7f8] sm:$0xff]
        %v3230 = vld [vmem:[%s13] sm:$0x1]
        %v3232 = vlaneseq
        %v3233 = vshrl.u32 %v3232, 7
        %v3234 = vsub.s32 0, %v3233
        %v3235 = vrot.slane %v3230, %v3234
        %3237 = vmatprep.subr.mxu0 0.0
        %3238 = vmatpush1.msra.mxu0 %v2989
        %3239 = vmatprep.subr.mxu0 0.0
        %3240 = vmatpush1.msra.mxu0 %v2988
        %3241 = vmatprep.subr.mxu0 0.0
        %3242 = vmatpush1.msra.mxu0 %v2987
        %3243 = vmatprep.subr.mxu0 0.0
        %3244 = vmatpush1.msra.mxu0 %v2986
        %3245 = vmatprep.subr.mxu0 0.0
        %3246 = vmatpush1.msra.mxu0 %v2985
        %3247 = vmatprep.subr.mxu0 0.0
        %3248 = vmatpush1.msra.mxu0 %v2984
        %3249 = vmatprep.subr.mxu0 0.0
        %3250 = vmatpush1.msra.mxu0 %v2983
        %3251 = vmatprep.subr.mxu0 0.0
        %3252 = vmatpush1.msra.mxu0 %v2982
        %3253 = vmatprep.subr.mxu0 0.0
        %3254 = vmatpush1.msra.mxu0 %v2981
        %3255 = vmatprep.subr.mxu0 0.0
        %3256 = vmatpush1.msra.mxu0 %v2980
        %3257 = vmatprep.subr.mxu0 0.0
        %3258 = vmatpush1.msra.mxu0 %v2979
        %3259 = vmatprep.subr.mxu0 0.0
        %3260 = vmatpush1.msra.mxu0 %v2978
        %3261 = vmatprep.subr.mxu0 0.0
        %3262 = vmatpush1.msra.mxu0 %v2977
        %3263 = vmatprep.subr.mxu0 0.0
        %3264 = vmatpush1.msra.mxu0 %v2976
        %3265 = vmatprep.subr.mxu0 0.0
        %3266 = vmatpush1.msra.mxu0 %v2975
        %3267 = vmatprep.subr.mxu0 0.0
        %3268 = vmatpush1.msra.mxu0 %v2974
        %3269 = vmatprep.subr.mxu0 0.0
        %3270 = vmatpush2.msra.mxu0 %v3005
        %3271 = vmatprep.subr.mxu0 0.0
        %3272 = vmatpush2.msra.mxu0 %v3004
        %3273 = vmatprep.subr.mxu0 0.0
        %3274 = vmatpush2.msra.mxu0 %v3003
        %3275 = vmatprep.subr.mxu0 0.0
        %3276 = vmatpush2.msra.mxu0 %v3002
        %3277 = vmatprep.subr.mxu0 0.0
        %3278 = vmatpush2.msra.mxu0 %v3001
        %3279 = vmatprep.subr.mxu0 0.0
        %3280 = vmatpush2.msra.mxu0 %v3000
        %3281 = vmatprep.subr.mxu0 0.0
        %3282 = vmatpush2.msra.mxu0 %v2999
        %3283 = vmatprep.subr.mxu0 0.0
        %3284 = vmatpush2.msra.mxu0 %v2998
        %3285 = vmatprep.subr.mxu0 0.0
        %3286 = vmatpush2.msra.mxu0 %v2997
        %3287 = vmatprep.subr.mxu0 0.0
        %3288 = vmatpush2.msra.mxu0 %v2996
        %3289 = vmatprep.subr.mxu0 0.0
        %3290 = vmatpush2.msra.mxu0 %v2995
        %3291 = vmatprep.subr.mxu0 0.0
        %3292 = vmatpush2.msra.mxu0 %v2994
        %3293 = vmatprep.subr.mxu0 0.0
        %3294 = vmatpush2.msra.mxu0 %v2993
        %3295 = vmatprep.subr.mxu0 0.0
        %3296 = vmatpush2.msra.mxu0 %v2992
        %3297 = vmatprep.subr.mxu0 0.0
        %3298 = vmatpush2.msra.mxu0 %v2991
        %3299 = vmatprep.subr.mxu0 0.0
        %3300 = vmatpush2.msra.mxu0 %v2990
        %3301 = vmatprep.mubr.f32.mxu0 %v2943
        %3302 = vmatmul.mubr.f32.gmra.mxu0 %v2942
        %v3303 = vpop.f32.mrf.mxu0
        %v3304 = vadd.f32 %v3235, %v3303
        %v3305 = vpop.f32.mrf.mxu0
        %3306 = vmatprep.mubr.f32.mxu0 %v2959
        %3307 = vmatmul.mubr.f32.gmra.mxu0 %v2958
        %v3308 = vpop.f32.mrf.mxu0
        %v3309 = vadd.f32 %v3235, %v3308
        %v3310 = vpop.f32.mrf.mxu0
        %3311 = vdwg.mxu0
        %3312 = vmatprep.subr.mxu0 0.0
        %3313 = vmatpush1.msra.mxu0 %v3021
        %3314 = vmatprep.subr.mxu0 0.0
        %3315 = vmatpush1.msra.mxu0 %v3020
        %3316 = vmatprep.subr.mxu0 0.0
        %3317 = vmatpush1.msra.mxu0 %v3019
        %3318 = vmatprep.subr.mxu0 0.0
        %3319 = vmatpush1.msra.mxu0 %v3018
        %3320 = vmatprep.subr.mxu0 0.0
        %3321 = vmatpush1.msra.mxu0 %v3017
        %3322 = vmatprep.subr.mxu0 0.0
        %3323 = vmatpush1.msra.mxu0 %v3016
        %3324 = vmatprep.subr.mxu0 0.0
        %3325 = vmatpush1.msra.mxu0 %v3015
        %3326 = vmatprep.subr.mxu0 0.0
        %3327 = vmatpush1.msra.mxu0 %v3014
        %3328 = vmatprep.subr.mxu0 0.0
        %3329 = vmatpush1.msra.mxu0 %v3013
        %3330 = vmatprep.subr.mxu0 0.0
        %3331 = vmatpush1.msra.mxu0 %v3012
        %3332 = vmatprep.subr.mxu0 0.0
        %3333 = vmatpush1.msra.mxu0 %v3011
        %3334 = vmatprep.subr.mxu0 0.0
        %3335 = vmatpush1.msra.mxu0 %v3010
        %3336 = vmatprep.subr.mxu0 0.0
        %3337 = vmatpush1.msra.mxu0 %v3009
        %3338 = vmatprep.subr.mxu0 0.0
        %3339 = vmatpush1.msra.mxu0 %v3008
        %3340 = vmatprep.subr.mxu0 0.0
        %3341 = vmatpush1.msra.mxu0 %v3007
        %3342 = vmatprep.subr.mxu0 0.0
        %3343 = vmatpush1.msra.mxu0 %v3006
        %3344 = vmatprep.subr.mxu0 0.0
        %3345 = vmatpush2.msra.mxu0 %v3037
        %3346 = vmatprep.subr.mxu0 0.0
        %3347 = vmatpush2.msra.mxu0 %v3036
        %3348 = vmatprep.subr.mxu0 0.0
        %3349 = vmatpush2.msra.mxu0 %v3035
        %3350 = vmatprep.subr.mxu0 0.0
        %3351 = vmatpush2.msra.mxu0 %v3034
        %3352 = vmatprep.subr.mxu0 0.0
        %3353 = vmatpush2.msra.mxu0 %v3033
        %3354 = vmatprep.subr.mxu0 0.0
        %3355 = vmatpush2.msra.mxu0 %v3032
        %3356 = vmatprep.subr.mxu0 0.0
        %3357 = vmatpush2.msra.mxu0 %v3031
        %3358 = vmatprep.subr.mxu0 0.0
        %3359 = vmatpush2.msra.mxu0 %v3030
        %3360 = vmatprep.subr.mxu0 0.0
        %3361 = vmatpush2.msra.mxu0 %v3029
        %3362 = vmatprep.subr.mxu0 0.0
        %3363 = vmatpush2.msra.mxu0 %v3028
        %3364 = vmatprep.subr.mxu0 0.0
        %3365 = vmatpush2.msra.mxu0 %v3027
        %3366 = vmatprep.subr.mxu0 0.0
        %3367 = vmatpush2.msra.mxu0 %v3026
        %3368 = vmatprep.subr.mxu0 0.0
        %3369 = vmatpush2.msra.mxu0 %v3025
        %3370 = vmatprep.subr.mxu0 0.0
        %3371 = vmatpush2.msra.mxu0 %v3024
        %3372 = vmatprep.subr.mxu0 0.0
        %3373 = vmatpush2.msra.mxu0 %v3023
        %3374 = vmatprep.subr.mxu0 0.0
        %3375 = vmatpush2.msra.mxu0 %v3022
        %3376 = vmatprep.mubr.f32.mxu0 %v2945
        %3377 = vmatmul.mubr.f32.gmra.mxu0 %v2944
        %v3378 = vpop.f32.mrf.mxu0
        %v3379 = vadd.f32 %v3304, %v3378
        %v3380 = vpop.f32.mrf.mxu0
        %3381 = vmatprep.mubr.f32.mxu0 %v2961
        %3382 = vmatmul.mubr.f32.gmra.mxu0 %v2960
        %v3383 = vpop.f32.mrf.mxu0
        %v3384 = vadd.f32 %v3309, %v3383
        %v3385 = vpop.f32.mrf.mxu0
        %3386 = vdwg.mxu0
        %3387 = vmatprep.subr.mxu0 0.0
        %3388 = vmatpush1.msra.mxu0 %v3053
        %3389 = vmatprep.subr.mxu0 0.0
        %3390 = vmatpush1.msra.mxu0 %v3052
        %3391 = vmatprep.subr.mxu0 0.0
        %3392 = vmatpush1.msra.mxu0 %v3051
        %3393 = vmatprep.subr.mxu0 0.0
        %3394 = vmatpush1.msra.mxu0 %v3050
        %3395 = vmatprep.subr.mxu0 0.0
        %3396 = vmatpush1.msra.mxu0 %v3049
        %3397 = vmatprep.subr.mxu0 0.0
        %3398 = vmatpush1.msra.mxu0 %v3048
        %3399 = vmatprep.subr.mxu0 0.0
        %3400 = vmatpush1.msra.mxu0 %v3047
        %3401 = vmatprep.subr.mxu0 0.0
        %3402 = vmatpush1.msra.mxu0 %v3046
        %3403 = vmatprep.subr.mxu0 0.0
        %3404 = vmatpush1.msra.mxu0 %v3045
        %3405 = vmatprep.subr.mxu0 0.0
        %3406 = vmatpush1.msra.mxu0 %v3044
        %3407 = vmatprep.subr.mxu0 0.0
        %3408 = vmatpush1.msra.mxu0 %v3043
        %3409 = vmatprep.subr.mxu0 0.0
        %3410 = vmatpush1.msra.mxu0 %v3042
        %3411 = vmatprep.subr.mxu0 0.0
        %3412 = vmatpush1.msra.mxu0 %v3041
        %3413 = vmatprep.subr.mxu0 0.0
        %3414 = vmatpush1.msra.mxu0 %v3040
        %3415 = vmatprep.subr.mxu0 0.0
        %3416 = vmatpush1.msra.mxu0 %v3039
        %3417 = vmatprep.subr.mxu0 0.0
        %3418 = vmatpush1.msra.mxu0 %v3038
        %3419 = vmatprep.subr.mxu0 0.0
        %3420 = vmatpush2.msra.mxu0 %v3069
        %3421 = vmatprep.subr.mxu0 0.0
        %3422 = vmatpush2.msra.mxu0 %v3068
        %3423 = vmatprep.subr.mxu0 0.0
        %3424 = vmatpush2.msra.mxu0 %v3067
        %3425 = vmatprep.subr.mxu0 0.0
        %3426 = vmatpush2.msra.mxu0 %v3066
        %3427 = vmatprep.subr.mxu0 0.0
        %3428 = vmatpush2.msra.mxu0 %v3065
        %3429 = vmatprep.subr.mxu0 0.0
        %3430 = vmatpush2.msra.mxu0 %v3064
        %3431 = vmatprep.subr.mxu0 0.0
        %3432 = vmatpush2.msra.mxu0 %v3063
        %3433 = vmatprep.subr.mxu0 0.0
        %3434 = vmatpush2.msra.mxu0 %v3062
        %3435 = vmatprep.subr.mxu0 0.0
        %3436 = vmatpush2.msra.mxu0 %v3061
        %3437 = vmatprep.subr.mxu0 0.0
        %3438 = vmatpush2.msra.mxu0 %v3060
        %3439 = vmatprep.subr.mxu0 0.0
        %3440 = vmatpush2.msra.mxu0 %v3059
        %3441 = vmatprep.subr.mxu0 0.0
        %3442 = vmatpush2.msra.mxu0 %v3058
        %3443 = vmatprep.subr.mxu0 0.0
        %3444 = vmatpush2.msra.mxu0 %v3057
        %3445 = vmatprep.subr.mxu0 0.0
        %3446 = vmatpush2.msra.mxu0 %v3056
        %3447 = vmatprep.subr.mxu0 0.0
        %3448 = vmatpush2.msra.mxu0 %v3055
        %3449 = vmatprep.subr.mxu0 0.0
        %3450 = vmatpush2.msra.mxu0 %v3054
        %3451 = vmatprep.mubr.f32.mxu0 %v2947
        %3452 = vmatmul.mubr.f32.gmra.mxu0 %v2946
        %v3453 = vpop.f32.mrf.mxu0
        %v3454 = vadd.f32 %v3379, %v3453
        %v3455 = vpop.f32.mrf.mxu0
        %3456 = vmatprep.mubr.f32.mxu0 %v2963
        %3457 = vmatmul.mubr.f32.gmra.mxu0 %v2962
        %v3458 = vpop.f32.mrf.mxu0
        %v3459 = vadd.f32 %v3384, %v3458
        %v3460 = vpop.f32.mrf.mxu0
        %3461 = vdwg.mxu0
        %3462 = vmatprep.subr.mxu0 0.0
        %3463 = vmatpush1.msra.mxu0 %v3085
        %3464 = vmatprep.subr.mxu0 0.0
        %3465 = vmatpush1.msra.mxu0 %v3084
        %3466 = vmatprep.subr.mxu0 0.0
        %3467 = vmatpush1.msra.mxu0 %v3083
        %3468 = vmatprep.subr.mxu0 0.0
        %3469 = vmatpush1.msra.mxu0 %v3082
        %3470 = vmatprep.subr.mxu0 0.0
        %3471 = vmatpush1.msra.mxu0 %v3081
        %3472 = vmatprep.subr.mxu0 0.0
        %3473 = vmatpush1.msra.mxu0 %v3080
        %3474 = vmatprep.subr.mxu0 0.0
        %3475 = vmatpush1.msra.mxu0 %v3079
        %3476 = vmatprep.subr.mxu0 0.0
        %3477 = vmatpush1.msra.mxu0 %v3078
        %3478 = vmatprep.subr.mxu0 0.0
        %3479 = vmatpush1.msra.mxu0 %v3077
        %3480 = vmatprep.subr.mxu0 0.0
        %3481 = vmatpush1.msra.mxu0 %v3076
        %3482 = vmatprep.subr.mxu0 0.0
        %3483 = vmatpush1.msra.mxu0 %v3075
        %3484 = vmatprep.subr.mxu0 0.0
        %3485 = vmatpush1.msra.mxu0 %v3074
        %3486 = vmatprep.subr.mxu0 0.0
        %3487 = vmatpush1.msra.mxu0 %v3073
        %3488 = vmatprep.subr.mxu0 0.0
        %3489 = vmatpush1.msra.mxu0 %v3072
        %3490 = vmatprep.subr.mxu0 0.0
        %3491 = vmatpush1.msra.mxu0 %v3071
        %3492 = vmatprep.subr.mxu0 0.0
        %3493 = vmatpush1.msra.mxu0 %v3070
        %3494 = vmatprep.subr.mxu0 0.0
        %3495 = vmatpush2.msra.mxu0 %v3101
        %3496 = vmatprep.subr.mxu0 0.0
        %3497 = vmatpush2.msra.mxu0 %v3100
        %3498 = vmatprep.subr.mxu0 0.0
        %3499 = vmatpush2.msra.mxu0 %v3099
        %3500 = vmatprep.subr.mxu0 0.0
        %3501 = vmatpush2.msra.mxu0 %v3098
        %3502 = vmatprep.subr.mxu0 0.0
        %3503 = vmatpush2.msra.mxu0 %v3097
        %3504 = vmatprep.subr.mxu0 0.0
        %3505 = vmatpush2.msra.mxu0 %v3096
        %3506 = vmatprep.subr.mxu0 0.0
        %3507 = vmatpush2.msra.mxu0 %v3095
        %3508 = vmatprep.subr.mxu0 0.0
        %3509 = vmatpush2.msra.mxu0 %v3094
        %3510 = vmatprep.subr.mxu0 0.0
        %3511 = vmatpush2.msra.mxu0 %v3093
        %3512 = vmatprep.subr.mxu0 0.0
        %3513 = vmatpush2.msra.mxu0 %v3092
        %3514 = vmatprep.subr.mxu0 0.0
        %3515 = vmatpush2.msra.mxu0 %v3091
        %3516 = vmatprep.subr.mxu0 0.0
        %3517 = vmatpush2.msra.mxu0 %v3090
        %3518 = vmatprep.subr.mxu0 0.0
        %3519 = vmatpush2.msra.mxu0 %v3089
        %3520 = vmatprep.subr.mxu0 0.0
        %3521 = vmatpush2.msra.mxu0 %v3088
        %3522 = vmatprep.subr.mxu0 0.0
        %3523 = vmatpush2.msra.mxu0 %v3087
        %3524 = vmatprep.subr.mxu0 0.0
        %3525 = vmatpush2.msra.mxu0 %v3086
        %3526 = vmatprep.mubr.f32.mxu0 %v2949
        %3527 = vmatmul.mubr.f32.gmra.mxu0 %v2948
        %v3528 = vpop.f32.mrf.mxu0
        %v3529 = vadd.f32 %v3454, %v3528
        %v3530 = vpop.f32.mrf.mxu0
        %3531 = vmatprep.mubr.f32.mxu0 %v2965
        %3532 = vmatmul.mubr.f32.gmra.mxu0 %v2964
        %v3533 = vpop.f32.mrf.mxu0
        %v3534 = vadd.f32 %v3459, %v3533
        %v3535 = vpop.f32.mrf.mxu0
        %3536 = vdwg.mxu0
        %3537 = vmatprep.subr.mxu0 0.0
        %3538 = vmatpush1.msra.mxu0 %v3117
        %3539 = vmatprep.subr.mxu0 0.0
        %3540 = vmatpush1.msra.mxu0 %v3116
        %3541 = vmatprep.subr.mxu0 0.0
        %3542 = vmatpush1.msra.mxu0 %v3115
        %3543 = vmatprep.subr.mxu0 0.0
        %3544 = vmatpush1.msra.mxu0 %v3114
        %3545 = vmatprep.subr.mxu0 0.0
        %3546 = vmatpush1.msra.mxu0 %v3113
        %3547 = vmatprep.subr.mxu0 0.0
        %3548 = vmatpush1.msra.mxu0 %v3112
        %3549 = vmatprep.subr.mxu0 0.0
        %3550 = vmatpush1.msra.mxu0 %v3111
        %3551 = vmatprep.subr.mxu0 0.0
        %3552 = vmatpush1.msra.mxu0 %v3110
        %3553 = vmatprep.subr.mxu0 0.0
        %3554 = vmatpush1.msra.mxu0 %v3109
        %3555 = vmatprep.subr.mxu0 0.0
        %3556 = vmatpush1.msra.mxu0 %v3108
        %3557 = vmatprep.subr.mxu0 0.0
        %3558 = vmatpush1.msra.mxu0 %v3107
        %3559 = vmatprep.subr.mxu0 0.0
        %3560 = vmatpush1.msra.mxu0 %v3106
        %3561 = vmatprep.subr.mxu0 0.0
        %3562 = vmatpush1.msra.mxu0 %v3105
        %3563 = vmatprep.subr.mxu0 0.0
        %3564 = vmatpush1.msra.mxu0 %v3104
        %3565 = vmatprep.subr.mxu0 0.0
        %3566 = vmatpush1.msra.mxu0 %v3103
        %3567 = vmatprep.subr.mxu0 0.0
        %3568 = vmatpush1.msra.mxu0 %v3102
        %3569 = vmatprep.subr.mxu0 0.0
        %3570 = vmatpush2.msra.mxu0 %v3133
        %3571 = vmatprep.subr.mxu0 0.0
        %3572 = vmatpush2.msra.mxu0 %v3132
        %3573 = vmatprep.subr.mxu0 0.0
        %3574 = vmatpush2.msra.mxu0 %v3131
        %3575 = vmatprep.subr.mxu0 0.0
        %3576 = vmatpush2.msra.mxu0 %v3130
        %3577 = vmatprep.subr.mxu0 0.0
        %3578 = vmatpush2.msra.mxu0 %v3129
        %3579 = vmatprep.subr.mxu0 0.0
        %3580 = vmatpush2.msra.mxu0 %v3128
        %3581 = vmatprep.subr.mxu0 0.0
        %3582 = vmatpush2.msra.mxu0 %v3127
        %3583 = vmatprep.subr.mxu0 0.0
        %3584 = vmatpush2.msra.mxu0 %v3126
        %3585 = vmatprep.subr.mxu0 0.0
        %3586 = vmatpush2.msra.mxu0 %v3125
        %3587 = vmatprep.subr.mxu0 0.0
        %3588 = vmatpush2.msra.mxu0 %v3124
        %3589 = vmatprep.subr.mxu0 0.0
        %3590 = vmatpush2.msra.mxu0 %v3123
        %3591 = vmatprep.subr.mxu0 0.0
        %3592 = vmatpush2.msra.mxu0 %v3122
        %3593 = vmatprep.subr.mxu0 0.0
        %3594 = vmatpush2.msra.mxu0 %v3121
        %3595 = vmatprep.subr.mxu0 0.0
        %3596 = vmatpush2.msra.mxu0 %v3120
        %3597 = vmatprep.subr.mxu0 0.0
        %3598 = vmatpush2.msra.mxu0 %v3119
        %3599 = vmatprep.subr.mxu0 0.0
        %3600 = vmatpush2.msra.mxu0 %v3118
        %3601 = vmatprep.mubr.f32.mxu0 %v2951
        %3602 = vmatmul.mubr.f32.gmra.mxu0 %v2950
        %v3603 = vpop.f32.mrf.mxu0
        %v3604 = vadd.f32 %v3529, %v3603
        %v3605 = vpop.f32.mrf.mxu0
        %3606 = vmatprep.mubr.f32.mxu0 %v2967
        %3607 = vmatmul.mubr.f32.gmra.mxu0 %v2966
        %v3608 = vpop.f32.mrf.mxu0
        %v3609 = vadd.f32 %v3534, %v3608
        %v3610 = vpop.f32.mrf.mxu0
        %3611 = vdwg.mxu0
        %3612 = vmatprep.subr.mxu0 0.0
        %3613 = vmatpush1.msra.mxu0 %v3149
        %3614 = vmatprep.subr.mxu0 0.0
        %3615 = vmatpush1.msra.mxu0 %v3148
        %3616 = vmatprep.subr.mxu0 0.0
        %3617 = vmatpush1.msra.mxu0 %v3147
        %3618 = vmatprep.subr.mxu0 0.0
        %3619 = vmatpush1.msra.mxu0 %v3146
        %3620 = vmatprep.subr.mxu0 0.0
        %3621 = vmatpush1.msra.mxu0 %v3145
        %3622 = vmatprep.subr.mxu0 0.0
        %3623 = vmatpush1.msra.mxu0 %v3144
        %3624 = vmatprep.subr.mxu0 0.0
        %3625 = vmatpush1.msra.mxu0 %v3143
        %3626 = vmatprep.subr.mxu0 0.0
        %3627 = vmatpush1.msra.mxu0 %v3142
        %3628 = vmatprep.subr.mxu0 0.0
        %3629 = vmatpush1.msra.mxu0 %v3141
        %3630 = vmatprep.subr.mxu0 0.0
        %3631 = vmatpush1.msra.mxu0 %v3140
        %3632 = vmatprep.subr.mxu0 0.0
        %3633 = vmatpush1.msra.mxu0 %v3139
        %3634 = vmatprep.subr.mxu0 0.0
        %3635 = vmatpush1.msra.mxu0 %v3138
        %3636 = vmatprep.subr.mxu0 0.0
        %3637 = vmatpush1.msra.mxu0 %v3137
        %3638 = vmatprep.subr.mxu0 0.0
        %3639 = vmatpush1.msra.mxu0 %v3136
        %3640 = vmatprep.subr.mxu0 0.0
        %3641 = vmatpush1.msra.mxu0 %v3135
        %3642 = vmatprep.subr.mxu0 0.0
        %3643 = vmatpush1.msra.mxu0 %v3134
        %3644 = vmatprep.subr.mxu0 0.0
        %3645 = vmatpush2.msra.mxu0 %v3165
        %3646 = vmatprep.subr.mxu0 0.0
        %3647 = vmatpush2.msra.mxu0 %v3164
        %3648 = vmatprep.subr.mxu0 0.0
        %3649 = vmatpush2.msra.mxu0 %v3163
        %3650 = vmatprep.subr.mxu0 0.0
        %3651 = vmatpush2.msra.mxu0 %v3162
        %3652 = vmatprep.subr.mxu0 0.0
        %3653 = vmatpush2.msra.mxu0 %v3161
        %3654 = vmatprep.subr.mxu0 0.0
        %3655 = vmatpush2.msra.mxu0 %v3160
        %3656 = vmatprep.subr.mxu0 0.0
        %3657 = vmatpush2.msra.mxu0 %v3159
        %3658 = vmatprep.subr.mxu0 0.0
        %3659 = vmatpush2.msra.mxu0 %v3158
        %3660 = vmatprep.subr.mxu0 0.0
        %3661 = vmatpush2.msra.mxu0 %v3157
        %3662 = vmatprep.subr.mxu0 0.0
        %3663 = vmatpush2.msra.mxu0 %v3156
        %3664 = vmatprep.subr.mxu0 0.0
        %3665 = vmatpush2.msra.mxu0 %v3155
        %3666 = vmatprep.subr.mxu0 0.0
        %3667 = vmatpush2.msra.mxu0 %v3154
        %3668 = vmatprep.subr.mxu0 0.0
        %3669 = vmatpush2.msra.mxu0 %v3153
        %3670 = vmatprep.subr.mxu0 0.0
        %3671 = vmatpush2.msra.mxu0 %v3152
        %3672 = vmatprep.subr.mxu0 0.0
        %3673 = vmatpush2.msra.mxu0 %v3151
        %3674 = vmatprep.subr.mxu0 0.0
        %3675 = vmatpush2.msra.mxu0 %v3150
        %3676 = vmatprep.mubr.f32.mxu0 %v2953
        %3677 = vmatmul.mubr.f32.gmra.mxu0 %v2952
        %v3678 = vpop.f32.mrf.mxu0
        %v3679 = vadd.f32 %v3604, %v3678
        %v3680 = vpop.f32.mrf.mxu0
        %3681 = vmatprep.mubr.f32.mxu0 %v2969
        %3682 = vmatmul.mubr.f32.gmra.mxu0 %v2968
        %v3683 = vpop.f32.mrf.mxu0
        %v3684 = vadd.f32 %v3609, %v3683
        %v3685 = vpop.f32.mrf.mxu0
        %3686 = vdwg.mxu0
        %3687 = vmatprep.subr.mxu0 0.0
        %3688 = vmatpush1.msra.mxu0 %v3181
        %3689 = vmatprep.subr.mxu0 0.0
        %3690 = vmatpush1.msra.mxu0 %v3180
        %3691 = vmatprep.subr.mxu0 0.0
        %3692 = vmatpush1.msra.mxu0 %v3179
        %3693 = vmatprep.subr.mxu0 0.0
        %3694 = vmatpush1.msra.mxu0 %v3178
        %3695 = vmatprep.subr.mxu0 0.0
        %3696 = vmatpush1.msra.mxu0 %v3177
        %3697 = vmatprep.subr.mxu0 0.0
        %3698 = vmatpush1.msra.mxu0 %v3176
        %3699 = vmatprep.subr.mxu0 0.0
        %3700 = vmatpush1.msra.mxu0 %v3175
        %3701 = vmatprep.subr.mxu0 0.0
        %3702 = vmatpush1.msra.mxu0 %v3174
        %3703 = vmatprep.subr.mxu0 0.0
        %3704 = vmatpush1.msra.mxu0 %v3173
        %3705 = vmatprep.subr.mxu0 0.0
        %3706 = vmatpush1.msra.mxu0 %v3172
        %3707 = vmatprep.subr.mxu0 0.0
        %3708 = vmatpush1.msra.mxu0 %v3171
        %3709 = vmatprep.subr.mxu0 0.0
        %3710 = vmatpush1.msra.mxu0 %v3170
        %3711 = vmatprep.subr.mxu0 0.0
        %3712 = vmatpush1.msra.mxu0 %v3169
        %3713 = vmatprep.subr.mxu0 0.0
        %3714 = vmatpush1.msra.mxu0 %v3168
        %3715 = vmatprep.subr.mxu0 0.0
        %3716 = vmatpush1.msra.mxu0 %v3167
        %3717 = vmatprep.subr.mxu0 0.0
        %3718 = vmatpush1.msra.mxu0 %v3166
        %3719 = vmatprep.subr.mxu0 0.0
        %3720 = vmatpush2.msra.mxu0 %v3197
        %3721 = vmatprep.subr.mxu0 0.0
        %3722 = vmatpush2.msra.mxu0 %v3196
        %3723 = vmatprep.subr.mxu0 0.0
        %3724 = vmatpush2.msra.mxu0 %v3195
        %3725 = vmatprep.subr.mxu0 0.0
        %3726 = vmatpush2.msra.mxu0 %v3194
        %3727 = vmatprep.subr.mxu0 0.0
        %3728 = vmatpush2.msra.mxu0 %v3193
        %3729 = vmatprep.subr.mxu0 0.0
        %3730 = vmatpush2.msra.mxu0 %v3192
        %3731 = vmatprep.subr.mxu0 0.0
        %3732 = vmatpush2.msra.mxu0 %v3191
        %3733 = vmatprep.subr.mxu0 0.0
        %3734 = vmatpush2.msra.mxu0 %v3190
        %3735 = vmatprep.subr.mxu0 0.0
        %3736 = vmatpush2.msra.mxu0 %v3189
        %3737 = vmatprep.subr.mxu0 0.0
        %3738 = vmatpush2.msra.mxu0 %v3188
        %3739 = vmatprep.subr.mxu0 0.0
        %3740 = vmatpush2.msra.mxu0 %v3187
        %3741 = vmatprep.subr.mxu0 0.0
        %3742 = vmatpush2.msra.mxu0 %v3186
        %3743 = vmatprep.subr.mxu0 0.0
        %3744 = vmatpush2.msra.mxu0 %v3185
        %3745 = vmatprep.subr.mxu0 0.0
        %3746 = vmatpush2.msra.mxu0 %v3184
        %3747 = vmatprep.subr.mxu0 0.0
        %3748 = vmatpush2.msra.mxu0 %v3183
        %3749 = vmatprep.subr.mxu0 0.0
        %3750 = vmatpush2.msra.mxu0 %v3182
        %3751 = vmatprep.mubr.f32.mxu0 %v2955
        %3752 = vmatmul.mubr.f32.gmra.mxu0 %v2954
        %v3753 = vpop.f32.mrf.mxu0
        %v3754 = vadd.f32 %v3679, %v3753
        %v3755 = vpop.f32.mrf.mxu0
        %3756 = vmatprep.mubr.f32.mxu0 %v2971
        %3757 = vmatmul.mubr.f32.gmra.mxu0 %v2970
        %v3758 = vpop.f32.mrf.mxu0
        %v3759 = vadd.f32 %v3684, %v3758
        %v3760 = vpop.f32.mrf.mxu0
        %3761 = vdwg.mxu0
        %3762 = vmatprep.subr.mxu0 0.0
        %3763 = vmatpush1.msra.mxu0 %v3213
        %3764 = vmatprep.subr.mxu0 0.0
        %3765 = vmatpush1.msra.mxu0 %v3212
        %3766 = vmatprep.subr.mxu0 0.0
        %3767 = vmatpush1.msra.mxu0 %v3211
        %3768 = vmatprep.subr.mxu0 0.0
        %3769 = vmatpush1.msra.mxu0 %v3210
        %3770 = vmatprep.subr.mxu0 0.0
        %3771 = vmatpush1.msra.mxu0 %v3209
        %3772 = vmatprep.subr.mxu0 0.0
        %3773 = vmatpush1.msra.mxu0 %v3208
        %3774 = vmatprep.subr.mxu0 0.0
        %3775 = vmatpush1.msra.mxu0 %v3207
        %3776 = vmatprep.subr.mxu0 0.0
        %3777 = vmatpush1.msra.mxu0 %v3206
        %3778 = vmatprep.subr.mxu0 0.0
        %3779 = vmatpush1.msra.mxu0 %v3205
        %3780 = vmatprep.subr.mxu0 0.0
        %3781 = vmatpush1.msra.mxu0 %v3204
        %3782 = vmatprep.subr.mxu0 0.0
        %3783 = vmatpush1.msra.mxu0 %v3203
        %3784 = vmatprep.subr.mxu0 0.0
        %3785 = vmatpush1.msra.mxu0 %v3202
        %3786 = vmatprep.subr.mxu0 0.0
        %3787 = vmatpush1.msra.mxu0 %v3201
        %3788 = vmatprep.subr.mxu0 0.0
        %3789 = vmatpush1.msra.mxu0 %v3200
        %3790 = vmatprep.subr.mxu0 0.0
        %3791 = vmatpush1.msra.mxu0 %v3199
        %3792 = vmatprep.subr.mxu0 0.0
        %3793 = vmatpush1.msra.mxu0 %v3198
        %3794 = vmatprep.subr.mxu0 0.0
        %3795 = vmatpush2.msra.mxu0 %v3229
        %3796 = vmatprep.subr.mxu0 0.0
        %3797 = vmatpush2.msra.mxu0 %v3228
        %3798 = vmatprep.subr.mxu0 0.0
        %3799 = vmatpush2.msra.mxu0 %v3227
        %3800 = vmatprep.subr.mxu0 0.0
        %3801 = vmatpush2.msra.mxu0 %v3226
        %3802 = vmatprep.subr.mxu0 0.0
        %3803 = vmatpush2.msra.mxu0 %v3225
        %3804 = vmatprep.subr.mxu0 0.0
        %3805 = vmatpush2.msra.mxu0 %v3224
        %3806 = vmatprep.subr.mxu0 0.0
        %3807 = vmatpush2.msra.mxu0 %v3223
        %3808 = vmatprep.subr.mxu0 0.0
        %3809 = vmatpush2.msra.mxu0 %v3222
        %3810 = vmatprep.subr.mxu0 0.0
        %3811 = vmatpush2.msra.mxu0 %v3221
        %3812 = vmatprep.subr.mxu0 0.0
        %3813 = vmatpush2.msra.mxu0 %v3220
        %3814 = vmatprep.subr.mxu0 0.0
        %3815 = vmatpush2.msra.mxu0 %v3219
        %3816 = vmatprep.subr.mxu0 0.0
        %3817 = vmatpush2.msra.mxu0 %v3218
        %3818 = vmatprep.subr.mxu0 0.0
        %3819 = vmatpush2.msra.mxu0 %v3217
        %3820 = vmatprep.subr.mxu0 0.0
        %3821 = vmatpush2.msra.mxu0 %v3216
        %3822 = vmatprep.subr.mxu0 0.0
        %3823 = vmatpush2.msra.mxu0 %v3215
        %3824 = vmatprep.subr.mxu0 0.0
        %3825 = vmatpush2.msra.mxu0 %v3214
        %3826 = vmatprep.mubr.f32.mxu0 %v2957
        %3827 = vmatmul.mubr.f32.gmra.mxu0 %v2956
        %v3828 = vpop.f32.mrf.mxu0
        %v3829 = vadd.f32 %v3754, %v3828
        %v3830 = vpop.f32.mrf.mxu0
        %3831 = vmatprep.mubr.f32.mxu0 %v2973
        %3832 = vmatmul.mubr.f32.gmra.mxu0 %v2972
        %v3833 = vpop.f32.mrf.mxu0
        %v3834 = vadd.f32 %v3759, %v3833
        %v3835 = vpop.f32.mrf.mxu0
        %3836 = vdwg.mxu0
        %v3837 = vadd.f32 %v2110, %v3829
        %v3838 = vadd.f32 %v2111, %v3834
        %3839 = vst.msk [vmem:[%s477] sm:$0xff] %vm501, %v3837
        %3840 = vst.msk [vmem:[%s477 + $0x8] sm:$0xff] %vm501, %v3838
        %s3841 = sand.u32 %s340, 1
        %s3842 = scalar_lea.sflag [#allocation3], %s3841
        %s3843 = sand.u32 %s340, 1
        %s3844 = smul.addr %s3843, 16
        %s3845 = scalar_lea.vmem [#allocation2], %s3844
        // Predicated region
        $region77: #{tpu_custom_call.1} parent=75 // pred_check
          %p3846 = pneg %p350
        $region78: #{tpu_custom_call.1} parent=75 // pred_check_branch
          %3848 = sbr.rel (%p3846) target = $region80
        $region79: #{tpu_custom_call.1} parent=75 // pred_region
          %s3849 = smul.u32 2, %s28
          %s3851 = ssub.s32 256, 256
          %3852 = vsyncadd %s3842, %s3851
          %s3853 = smul.addr %s3849, 128
          %s3854 = scalar_lea.hbm %s14, %s3853
          %s3855 = sshll.u32 %s3845, 4
          %s3856 = int_to_ptr.vmem [resolvable:$true] %s3855
          %3861 = dma.vmem_to_hbm [thread:$0]  %s3856, 256, %s3854, %s3842, 128, 128, 8
        $region80: #{tpu_custom_call.1} parent=75 // pred_fallthru
          _
      $region76: #{tpu_custom_call.1} parent=5 // pred_fallthru
        _
      %p3862 = scmp.le.s32.totalorder 2, %s23
      // Predicated region
      $region81: #{tpu_custom_call.1} parent=5 // pred_check
        %p3863 = pneg %p3862
      $region82: #{tpu_custom_call.1} parent=5 // pred_check_branch
        %3865 = sbr.rel (%p3863) target = $region84
      $region83: #{tpu_custom_call.1} parent=5 // pred_region
        %s3866 = ssub.s32 %s23, 2
        // Predicated region
        $region85: #{tpu_custom_call.1} parent=83 // pred_check
          %p3867 = pneg %p356
        $region86: #{tpu_custom_call.1} parent=83 // pred_check_branch
          %3869 = sbr.rel (%p3867) target = $region88
        $region87: #{tpu_custom_call.1} parent=83 // pred_region
          %s3870 = sand.u32 %s341, 1
          %s3871 = scalar_lea.sflag [#allocation3], %s3870
          %s3872 = sand.u32 %s341, 1
          %s3873 = smul.addr %s3872, 16
          %s3874 = scalar_lea.vmem [#allocation2], %s3873
          %3875 = dma.done %s3871, 256
        $region88: #{tpu_custom_call.1} parent=83 // pred_fallthru
          _
      $region84: #{tpu_custom_call.1} parent=5 // pred_fallthru
        _
    $region6: #{tpu_custom_call.1} parent=1 // loop_footer
      %s27 = sadd.s32 1, %s23
    $region7: #{tpu_custom_call.1} parent=1 // loop_footer_branch
      %22 = sbr.rel target = $region3
    $region8: #{tpu_custom_call.1} parent=1 // loop_exit
      _
    %3876 = vsyncpa [#allocation3], 1
    %s3877 = scalar_lea.sflag [#allocation3], 1
    %3878 = vsyncpa %s3877, 1

</llo_original>
